<compile_context>
chip_gen: v7x
topology: tpu7x:2x2x1
jax: 0.10.0
libtpu: 0.0.40
codegen_flags: <defaults>
</compile_context>

<pallas_src>
import jax
import jax.numpy as jnp
from jax import lax
from jax.experimental import pallas as pl
from jax.experimental.pallas import tpu as pltpu

KERNEL_SIZE = 3
HIGHEST = lax.Precision.HIGHEST  # used only by the pure-JAX reference


def _round_up(x, m):
    return ((x + m - 1) // m) * m


# ----------------------------- Pallas kernel ---------------------------------
def _make_kernel(num_blocks, dilations, Bt, Lp, L, Cp, n_convs):
    """Fused encoder kernel for one (Bt, Lp, Cp) batch tile."""
    n_cells = len(dilations)
    M = Bt * Lp
    C3 = 3 * Cp

    def kernel(video_ref, wc_ref, bc_ref, wfc_ref, bfc_ref, out_ref, xcat_ref):

        def conv(x, idx, d):
            # x: (Bt, Lp, Cp) f32.  3-tap dilated conv with "same" padding at the
            # TRUE length L, fused into one (M, 3Cp) @ (3Cp, Cp) MXU matmul by
            # writing the shifted taps into lane-aligned thirds of a bf16 scratch.
            xb = x.astype(jnp.bfloat16)
            xcat_ref[:, :, Cp:2 * Cp] = xb                       # centre tap x[l]
            # left tap x[l-d]: rows [0, d) are "same"-padding zeros
            xcat_ref[:, 0:d, 0:Cp] = jnp.zeros((Bt, d, Cp), jnp.bfloat16)
            xcat_ref[:, d:Lp, 0:Cp] = xb[:, 0:Lp - d, :]
            # right tap x[l+d]: rows [L-d, Lp) are zeros (boundary at the true L,
            # so padded-length rows never feed back into real positions)
            xcat_ref[:, 0:L - d, 2 * Cp:C3] = xb[:, d:L, :]
            xcat_ref[:, L - d:Lp, 2 * Cp:C3] = jnp.zeros(
                (Bt, Lp - L + d, Cp), jnp.bfloat16)
            w = wc_ref[idx]                    # (3Cp, Cp) bf16, idx may be dynamic
            b = bc_ref[pl.ds(idx, 1), :]       # (1, Cp) f32
            y = jnp.dot(xcat_ref[...].reshape(M, C3), w,
                        preferred_element_type=jnp.float32) + b
            return y.reshape(Bt, Lp, Cp)

        x0 = video_ref[...].astype(jnp.float32)           # (Bt, Lp, Cp)

        def block_body(bi, out_acc):
            base = bi * (2 * n_cells)
            h = x0                                        # every block sees the input
            block_o = jnp.zeros((Bt, Lp, Cp), jnp.float32)
            for ci, d in enumerate(dilations):            # few cells: keep unrolled
                idx = base + 2 * ci
                y = conv(h, idx, d)
                # sigmoid(y) == 0.5 + 0.5*tanh(0.5*y) (exact): the gate costs
                # exactly two EUP transcendentals per element.
                g = jnp.tanh(y) * (0.5 + 0.5 * jnp.tanh(0.5 * y))
                o = jnp.tanh(conv(g, idx + 1, 1))
                block_o = block_o + o
                h = h + o                                 # residual path
            return out_acc + block_o

        out_acc = lax.fori_loop(0, num_blocks, block_body,
                                jnp.zeros((Bt, Lp, Cp), jnp.float32))

        # out_conv -> tanh -> fc (lane-dense padded vocab)
        u = jnp.tanh(conv(out_acc, n_convs - 1, 1))
        logits = jnp.dot(u.reshape(M, Cp).astype(jnp.bfloat16), wfc_ref[...],
                         preferred_element_type=jnp.float32) + bfc_ref[...]
        # NOTE: the (Bt, Lp, Vp) f32 block is the largest per-step HBM write; emit
        # bf16 here if the consumer tolerates it to halve the writeback DMA.
        out_ref[...] = logits.reshape(out_ref.shape).astype(out_ref.dtype)

    return kernel


def _pick_batch_tile(B, Lp, target_rows=1024):
    """Largest divisor of B with Bt*Lp <= target_rows, keeping >= 2 grid steps
    whenever B >= 2 (both v7x TensorCores get work; harmless on 1-TC v5e/v6e)."""
    max_bt = 1 if B < 2 else B // 2
    bt = 1
    for cand in range(1, max_bt + 1):
        if B % cand == 0 and cand * Lp <= target_rows:
            bt = cand
    return bt


def _vmem_limit_bytes():
    """~80% of physical VMEM: ~102 MiB on v5e/v6e (128 MiB), ~51 MiB on v7x (64 MiB)."""
    phys = 64 * 1024 * 1024                    # conservative (v7x-sized) fallback
    try:
        phys = int(pltpu.get_tpu_info().vmem_capacity_bytes)
    except Exception:
        pass
    return int(phys * 0.8)


def dilated_slr_forward(video_ncl, params, *, dilations, num_blocks):
    """video_ncl: (B, C, L) float32 (PyTorch NCL). Returns logits (B, L, vocab)."""
    B, C, L = video_ncl.shape
    V = params["fc_w"].shape[0]
    dils = [int(d) for d in dilations]
    assert max(dils + [1]) < L, "dilation shift must be smaller than sequence length"
    # residual `o + res` in the first cell requires feature_dim == dilated_channels
    assert params["blocks"][0][0]["in_w"].shape[:2] == (C, C)

    Cp = _round_up(C, 128)   # channels -> lanes (dense vregs / MXU K,N)
    Lp = _round_up(L, 8)     # length   -> sublanes (aligned (Bt,L,C)->(M,C) reshape)
    Vp = _round_up(V, 128)   # vocab    -> lane-dense fc output (unmasked vst)

    # (B, C, L) -> (B, Lp, Cp), zero padded, bf16 storage.
    video = jnp.transpose(video_ncl, (0, 2, 1))
    video = jnp.pad(video, ((0, 0), (0, Lp - L), (0, Cp - C))).astype(jnp.bfloat16)

    def pack_conv(w):
        # (Cout, Cin, K) -> (3*Cp, Cp); row block k holds tap k, order [l-d, l, l+d]
        cout, cin, _ = w.shape
        wp = jnp.pad(w, ((0, Cp - cout), (0, Cp - cin), (0, 0)))
        return jnp.transpose(wp, (2, 1, 0)).reshape(KERNEL_SIZE * Cp, Cp)

    def pack_bias(b):
        return jnp.pad(b, (0, Cp - b.shape[0]))

    # Stack every conv weight/bias into one array each (one large DMA per class).
    conv_ws, conv_bs = [], []
    for bi in range(num_blocks):
        for cell_p in params["blocks"][bi]:
            conv_ws += [pack_conv(cell_p["in_w"]), pack_conv(cell_p["mid_w"])]
            conv_bs += [pack_bias(cell_p["in_b"]), pack_bias(cell_p["mid_b"])]
    conv_ws.append(pack_conv(params["out_w"]))
    conv_bs.append(pack_bias(params["out_b"]))
    w_conv = jnp.stack(conv_ws).astype(jnp.bfloat16)   # (n_convs, 3*Cp, Cp) bf16
    b_conv = jnp.stack(conv_bs).astype(jnp.float32)    # (n_convs, Cp)       f32
    n_convs = w_conv.shape[0]

    w_fc = jnp.pad(params["fc_w"].T, ((0, Cp - C), (0, Vp - V))).astype(jnp.bfloat16)
    b_fc = jnp.pad(params["fc_b"], (0, Vp - V)).reshape(1, Vp).astype(jnp.float32)

    Bt = _pick_batch_tile(B, Lp)
    nb = B // Bt
    kernel = _make_kernel(num_blocks, tuple(dils), Bt, Lp, L, Cp, n_convs)

    # TODO(synk): for configs where even the bf16, single-buffered weight stack does
    # not fit ~51 MiB (v7x), stream per-cell weight slabs via an extra grid axis or
    # a manually double-buffered make_async_copy instead of keeping them resident.
    def call(single_buffer_constants):
        cmode = ({"pipeline_mode": pl.Buffered(1)}
                 if single_buffer_constants else {})
        in_specs = [
            pl.BlockSpec((Bt, Lp, Cp), lambda b: (b, 0, 0)),
            pl.BlockSpec(w_conv.shape, lambda b: (0, 0, 0), **cmode),
            pl.BlockSpec(b_conv.shape, lambda b: (0, 0), **cmode),
            pl.BlockSpec(w_fc.shape, lambda b: (0, 0), **cmode),
            pl.BlockSpec(b_fc.shape, lambda b: (0, 0), **cmode),
        ]
        out = pl.pallas_call(
            kernel,
            out_shape=jax.ShapeDtypeStruct((B, Lp, Vp), jnp.float32),
            grid=(nb,),
            in_specs=in_specs,
            out_specs=pl.BlockSpec((Bt, Lp, Vp), lambda b: (b, 0, 0)),
            scratch_shapes=[pltpu.VMEM((Bt, Lp, 3 * Cp), jnp.bfloat16)],
            compiler_params=pltpu.CompilerParams(
                dimension_semantics=("parallel",),
                vmem_limit_bytes=_vmem_limit_bytes()),
        )(video, w_conv, b_conv, w_fc, b_fc)
        return jax.block_until_ready(out)

    try:
        out = call(True)     # constants single-buffered (halves their VMEM footprint)
    except Exception:
        # Narrow fallback for JAX builds that do not support pipeline_mode on
        # pallas_call operands; everything else is identical.
        out = call(False)
    return out[:, :L, :V]


# ---------------- pure-JAX reference (mirrors the PyTorch module) ----------------
def reference_forward(video_ncl, params, *, dilations, num_blocks):
    def conv1d(x, w, b, dilation=1):
        # x: (B, C, L), w: (Cout, Cin, K)
        K = w.shape[-1]
        pad = (K - 1) * dilation // 2
        y = lax.conv_general_dilated(
            x, w, window_strides=(1,), padding=[(pad, pad)],
            rhs_dilation=(dilation,),
            dimension_numbers=("NCH", "OIH", "NCH"),
            precision=HIGHEST)
        return y + b[None, :, None]

    out = jnp.zeros_like(video_ncl)
    for bi in range(num_blocks):
        h = video_ncl
        block_o = jnp.zeros_like(video_ncl)
        for ci, d in enumerate(dilations):
            p = params["blocks"][bi][ci]
            res = h
            y = conv1d(h, p["in_w"], p["in_b"], d)
            g = jnp.tanh(y) * jax.nn.sigmoid(y)
            o = jnp.tanh(conv1d(g, p["mid_w"], p["mid_b"], 1))
            h = o + res
            block_o = block_o + o
        out = out + block_o
    out = jnp.tanh(conv1d(out, params["out_w"], params["out_b"], 1))
    enc = jnp.transpose(out, (0, 2, 1))                    # (B, L, C)
    return jnp.matmul(enc, params["fc_w"].T, precision=HIGHEST) + params["fc_b"]


def init_params(key, feature_dim, dilated_channels, vocab_size, dilations, num_blocks):
    keys = iter(jax.random.split(key, 64))
    scale = 0.08

    def conv_p(cin, cout):
        return (scale * jax.random.normal(next(keys), (cout, cin, KERNEL_SIZE), jnp.float32),
                scale * jax.random.normal(next(keys), (cout,), jnp.float32))

    blocks = []
    for _ in range(num_blocks):
        cells = []
        cin = feature_dim
        for _d in dilations:
            in_w, in_b = conv_p(cin, dilated_channels)
            mid_w, mid_b = conv_p(dilated_channels, dilated_channels)
            cells.append({"in_w": in_w, "in_b": in_b, "mid_w": mid_w, "mid_b": mid_b})
            cin = dilated_channels
        blocks.append(cells)
    out_w, out_b = conv_p(dilated_channels, dilated_channels)
    fc_w = scale * jax.random.normal(next(keys), (vocab_size, dilated_channels), jnp.float32)
    fc_b = scale * jax.random.normal(next(keys), (vocab_size,), jnp.float32)
    return {"blocks": blocks, "out_w": out_w, "out_b": out_b,
            "fc_w": fc_w, "fc_b": fc_b}


if __name__ == "__main__":
    # Small synthetic config: feature_dim == dilated_channels (required by the
    # residual `o + res` in the first cell of the original module).
    B, C, L = 2, 32, 16
    VOCAB = 16
    DILATIONS = [1, 2, 4]
    NUM_BLOCKS = 2          # >1 exercises the fori_loop / dynamic weight indexing

    key = jax.random.PRNGKey(0)
    k_vid, k_par = jax.random.split(key)
    video = jax.random.normal(k_vid, (B, C, L), jnp.float32)     # PyTorch NCL layout
    len_video = jnp.full((B,), L, jnp.int32)                      # unused by forward()
    params = init_params(k_par, C, C, VOCAB, DILATIONS, NUM_BLOCKS)

    logits = dilated_slr_forward(video, params,
                                 dilations=DILATIONS, num_blocks=NUM_BLOCKS)
    logits = jax.block_until_ready(logits)

    ref = jax.block_until_ready(
        reference_forward(video, params, dilations=DILATIONS, num_blocks=NUM_BLOCKS))

    assert logits.shape == (B, L, VOCAB), logits.shape
    # Kernel matmuls run at bf16 multiply / f32 accumulate (default MXU precision)
    # with bf16-stored inputs; the reference runs at HIGHEST precision, so compare
    # with a bf16-level tolerance.
    assert jnp.allclose(logits, ref, atol=4e-2, rtol=4e-2), float(
        jnp.max(jnp.abs(logits - ref)))

    # TODO(synk): forward_decoder / CTC beam search / Levenshtein decoder paths are
    # host-side dynamic-shape decoding with no Pallas equivalent; only forward() is
    # implemented.
    print("KERNEL_OK")
</pallas_src>

<mosaic_0001>
module attributes {stable_mosaic.version = 11 : i64} {
  func.func @kernel(%arg0: i32, %arg1: memref<1x16x128xbf16, #tpu.memory_space<vmem>>, %arg2: memref<13x384x128xbf16, #tpu.memory_space<vmem>>, %arg3: memref<13x128xf32, #tpu.memory_space<vmem>>, %arg4: memref<128x128xbf16, #tpu.memory_space<vmem>>, %arg5: memref<1x128xf32, #tpu.memory_space<vmem>>, %arg6: memref<1x16x128xf32, #tpu.memory_space<vmem>>, %arg7: memref<1x16x384xbf16, #tpu.memory_space<vmem>>) attributes {dimension_semantics = [#tpu.dimension_semantics<parallel>], iteration_bounds = array<i64: 2>, scalar_prefetch = 0 : i64, scratch_operands = 1 : i64, tpu.core_type = #tpu.core_type<tc>, window_params = [{transform_indices = @transform_0, window_bounds = array<i64: 1, 16, 128>}, {pipeline_mode = #tpu.pipeline_mode<synchronous>, transform_indices = @transform_1, window_bounds = array<i64: 13, 384, 128>}, {pipeline_mode = #tpu.pipeline_mode<synchronous>, transform_indices = @transform_2, window_bounds = array<i64: 13, 128>}, {pipeline_mode = #tpu.pipeline_mode<synchronous>, transform_indices = @transform_3, window_bounds = array<i64: 128, 128>}, {pipeline_mode = #tpu.pipeline_mode<synchronous>, transform_indices = @transform_4, window_bounds = array<i64: 1, 128>}, {transform_indices = @transform_5, window_bounds = array<i64: 1, 16, 128>}]} {
    %c0 = arith.constant 0 : index
    %c0_0 = arith.constant 0 : index
    %c0_1 = arith.constant 0 : index
    %0 = vector.load %arg1[%c0, %c0_0, %c0_1] : memref<1x16x128xbf16, #tpu.memory_space<vmem>>, vector<1x16x128xbf16>
    %1 = arith.extf %0 : vector<1x16x128xbf16> to vector<1x16x128xf32>
    %cst = arith.constant 0.000000e+00 : f32
    %2 = vector.broadcast %cst : f32 to vector<1x16x128xf32>
    %c0_i32 = arith.constant 0 : i32
    %c2_i32 = arith.constant 2 : i32
    %3 = arith.addi %c0_i32, %c2_i32 : i32
    %c1_i32 = arith.constant 1 : i32
    %4 = scf.for %arg8 = %c0_i32 to %3 step %c1_i32 iter_args(%arg9 = %2) -> (vector<1x16x128xf32>)  : i32 {
      %c6_i32 = arith.constant 6 : i32
      %34 = arith.muli %arg8, %c6_i32 : i32
      %cst_32 = arith.constant 0.000000e+00 : f32
      %35 = vector.broadcast %cst_32 : f32 to vector<1x16x128xf32>
      %c0_i32_33 = arith.constant 0 : i32
      %36 = arith.addi %34, %c0_i32_33 : i32
      %37 = arith.truncf %1 : vector<1x16x128xf32> to vector<1x16x128xbf16>
      %c0_34 = arith.constant 0 : index
      %c0_35 = arith.constant 0 : index
      %c128_36 = arith.constant 128 : index
      %38 = vector.load %arg7[%c0_34, %c0_35, %c128_36] : memref<1x16x384xbf16, #tpu.memory_space<vmem>>, vector<1x16x128xbf16>
      tpu.vector_store %arg7[%c0_34, %c0_35, %c128_36], %37 {strides = array<i32>} : memref<1x16x384xbf16, #tpu.memory_space<vmem>>, vector<1x16x128xbf16>,
      %cst_37 = arith.constant 0.000000e+00 : bf16
      %39 = vector.broadcast %cst_37 : bf16 to vector<1x1x128xbf16>
      %c0_38 = arith.constant 0 : index
      %c0_39 = arith.constant 0 : index
      %c0_40 = arith.constant 0 : index
      %40 = vector.load %arg7[%c0_38, %c0_39, %c0_40] : memref<1x16x384xbf16, #tpu.memory_space<vmem>>, vector<1x1x128xbf16>
      tpu.vector_store %arg7[%c0_38, %c0_39, %c0_40], %39 {strides = array<i32>} : memref<1x16x384xbf16, #tpu.memory_space<vmem>>, vector<1x1x128xbf16>,
      %41 = vector.extract_strided_slice %37 {offsets = [0, 0, 0], sizes = [1, 15, 128], strides = [1, 1, 1]} : vector<1x16x128xbf16> to vector<1x15x128xbf16>
      %c0_41 = arith.constant 0 : index
      %c1_42 = arith.constant 1 : index
      %c0_43 = arith.constant 0 : index
      %42 = vector.load %arg7[%c0_41, %c1_42, %c0_43] : memref<1x16x384xbf16, #tpu.memory_space<vmem>>, vector<1x15x128xbf16>
      tpu.vector_store %arg7[%c0_41, %c1_42, %c0_43], %41 {strides = array<i32>} : memref<1x16x384xbf16, #tpu.memory_space<vmem>>, vector<1x15x128xbf16>,
      %43 = vector.extract_strided_slice %37 {offsets = [0, 1, 0], sizes = [1, 15, 128], strides = [1, 1, 1]} : vector<1x16x128xbf16> to vector<1x15x128xbf16>
      %c0_44 = arith.constant 0 : index
      %c0_45 = arith.constant 0 : index
      %c256_46 = arith.constant 256 : index
      %44 = vector.load %arg7[%c0_44, %c0_45, %c256_46] : memref<1x16x384xbf16, #tpu.memory_space<vmem>>, vector<1x15x128xbf16>
      tpu.vector_store %arg7[%c0_44, %c0_45, %c256_46], %43 {strides = array<i32>} : memref<1x16x384xbf16, #tpu.memory_space<vmem>>, vector<1x15x128xbf16>,
      %cst_47 = arith.constant 0.000000e+00 : bf16
      %45 = vector.broadcast %cst_47 : bf16 to vector<1x1x128xbf16>
      %c0_48 = arith.constant 0 : index
      %c15_49 = arith.constant 15 : index
      %c256_50 = arith.constant 256 : index
      %46 = vector.load %arg7[%c0_48, %c15_49, %c256_50] : memref<1x16x384xbf16, #tpu.memory_space<vmem>>, vector<1x1x128xbf16>
      tpu.vector_store %arg7[%c0_48, %c15_49, %c256_50], %45 {strides = array<i32>} : memref<1x16x384xbf16, #tpu.memory_space<vmem>>, vector<1x1x128xbf16>,
      %47 = arith.index_cast %36 : i32 to index
      %c0_51 = arith.constant 0 : index
      %c0_52 = arith.constant 0 : index
      %48 = vector.load %arg2[%47, %c0_51, %c0_52] : memref<13x384x128xbf16, #tpu.memory_space<vmem>>, vector<1x384x128xbf16>
      %49 = vector.shape_cast %48 : vector<1x384x128xbf16> to vector<384x128xbf16>
      %50 = arith.index_cast %36 : i32 to index
      %c0_53 = arith.constant 0 : index
      %51 = vector.load %arg3[%50, %c0_53] : memref<13x128xf32, #tpu.memory_space<vmem>>, vector<1x128xf32>
      %c0_54 = arith.constant 0 : index
      %c0_55 = arith.constant 0 : index
      %c0_56 = arith.constant 0 : index
      %52 = vector.load %arg7[%c0_54, %c0_55, %c0_56] : memref<1x16x384xbf16, #tpu.memory_space<vmem>>, vector<1x16x384xbf16>
      %53 = vector.shape_cast %52 : vector<1x16x384xbf16> to vector<16x384xbf16>
      %cst_57 = arith.constant dense<0.000000e+00> : vector<16x128xf32>
      %54 = tpu.matmul %53, %49, %cst_57 {dimension_numbers = #tpu.dot_dimension_numbers<[1], [0], [0], [1], [0, 0, 1, 1], [], []>} : vector<16x384xbf16>, vector<384x128xbf16>, vector<16x128xf32> -> vector<16x128xf32>
      %55 = vector.broadcast %51 : vector<1x128xf32> to vector<16x128xf32>
      %56 = arith.addf %54, %55 : vector<16x128xf32>
      %57 = vector.shape_cast %56 : vector<16x128xf32> to vector<1x16x128xf32>
      %58 = math.tanh %57 : vector<1x16x128xf32>
      %cst_58 = arith.constant 5.000000e-01 : f32
      %59 = vector.broadcast %cst_58 : f32 to vector<1x16x128xf32>
      %60 = arith.mulf %59, %57 : vector<1x16x128xf32>
      %61 = math.tanh %60 : vector<1x16x128xf32>
      %cst_59 = arith.constant 5.000000e-01 : f32
      %62 = vector.broadcast %cst_59 : f32 to vector<1x16x128xf32>
      %63 = arith.mulf %62, %61 : vector<1x16x128xf32>
      %cst_60 = arith.constant 5.000000e-01 : f32
      %64 = vector.broadcast %cst_60 : f32 to vector<1x16x128xf32>
      %65 = arith.addf %64, %63 : vector<1x16x128xf32>
      %66 = arith.mulf %58, %65 : vector<1x16x128xf32>
      %c1_i32_61 = arith.constant 1 : i32
      %67 = arith.addi %36, %c1_i32_61 : i32
      %68 = arith.truncf %66 : vector<1x16x128xf32> to vector<1x16x128xbf16>
      %c0_62 = arith.constant 0 : index
      %c0_63 = arith.constant 0 : index
      %c128_64 = arith.constant 128 : index
      %69 = vector.load %arg7[%c0_62, %c0_63, %c128_64] : memref<1x16x384xbf16, #tpu.memory_space<vmem>>, vector<1x16x128xbf16>
      tpu.vector_store %arg7[%c0_62, %c0_63, %c128_64], %68 {strides = array<i32>} : memref<1x16x384xbf16, #tpu.memory_space<vmem>>, vector<1x16x128xbf16>,
      %cst_65 = arith.constant 0.000000e+00 : bf16
      %70 = vector.broadcast %cst_65 : bf16 to vector<1x1x128xbf16>
      %c0_66 = arith.constant 0 : index
      %c0_67 = arith.constant 0 : index
      %c0_68 = arith.constant 0 : index
      %71 = vector.load %arg7[%c0_66, %c0_67, %c0_68] : memref<1x16x384xbf16, #tpu.memory_space<vmem>>, vector<1x1x128xbf16>
      tpu.vector_store %arg7[%c0_66, %c0_67, %c0_68], %70 {strides = array<i32>} : memref<1x16x384xbf16, #tpu.memory_space<vmem>>, vector<1x1x128xbf16>,
      %72 = vector.extract_strided_slice %68 {offsets = [0, 0, 0], sizes = [1, 15, 128], strides = [1, 1, 1]} : vector<1x16x128xbf16> to vector<1x15x128xbf16>
      %c0_69 = arith.constant 0 : index
      %c1_70 = arith.constant 1 : index
      %c0_71 = arith.constant 0 : index
      %73 = vector.load %arg7[%c0_69, %c1_70, %c0_71] : memref<1x16x384xbf16, #tpu.memory_space<vmem>>, vector<1x15x128xbf16>
      tpu.vector_store %arg7[%c0_69, %c1_70, %c0_71], %72 {strides = array<i32>} : memref<1x16x384xbf16, #tpu.memory_space<vmem>>, vector<1x15x128xbf16>,
      %74 = vector.extract_strided_slice %68 {offsets = [0, 1, 0], sizes = [1, 15, 128], strides = [1, 1, 1]} : vector<1x16x128xbf16> to vector<1x15x128xbf16>
      %c0_72 = arith.constant 0 : index
      %c0_73 = arith.constant 0 : index
      %c256_74 = arith.constant 256 : index
      %75 = vector.load %arg7[%c0_72, %c0_73, %c256_74] : memref<1x16x384xbf16, #tpu.memory_space<vmem>>, vector<1x15x128xbf16>
      tpu.vector_store %arg7[%c0_72, %c0_73, %c256_74], %74 {strides = array<i32>} : memref<1x16x384xbf16, #tpu.memory_space<vmem>>, vector<1x15x128xbf16>,
      %cst_75 = arith.constant 0.000000e+00 : bf16
      %76 = vector.broadcast %cst_75 : bf16 to vector<1x1x128xbf16>
      %c0_76 = arith.constant 0 : index
      %c15_77 = arith.constant 15 : index
      %c256_78 = arith.constant 256 : index
      %77 = vector.load %arg7[%c0_76, %c15_77, %c256_78] : memref<1x16x384xbf16, #tpu.memory_space<vmem>>, vector<1x1x128xbf16>
      tpu.vector_store %arg7[%c0_76, %c15_77, %c256_78], %76 {strides = array<i32>} : memref<1x16x384xbf16, #tpu.memory_space<vmem>>, vector<1x1x128xbf16>,
      %78 = arith.index_cast %67 : i32 to index
      %c0_79 = arith.constant 0 : index
      %c0_80 = arith.constant 0 : index
      %79 = vector.load %arg2[%78, %c0_79, %c0_80] : memref<13x384x128xbf16, #tpu.memory_space<vmem>>, vector<1x384x128xbf16>
      %80 = vector.shape_cast %79 : vector<1x384x128xbf16> to vector<384x128xbf16>
      %81 = arith.index_cast %67 : i32 to index
      %c0_81 = arith.constant 0 : index
      %82 = vector.load %arg3[%81, %c0_81] : memref<13x128xf32, #tpu.memory_space<vmem>>, vector<1x128xf32>
      %c0_82 = arith.constant 0 : index
      %c0_83 = arith.constant 0 : index
      %c0_84 = arith.constant 0 : index
      %83 = vector.load %arg7[%c0_82, %c0_83, %c0_84] : memref<1x16x384xbf16, #tpu.memory_space<vmem>>, vector<1x16x384xbf16>
      %84 = vector.shape_cast %83 : vector<1x16x384xbf16> to vector<16x384xbf16>
      %cst_85 = arith.constant dense<0.000000e+00> : vector<16x128xf32>
      %85 = tpu.matmul %84, %80, %cst_85 {dimension_numbers = #tpu.dot_dimension_numbers<[1], [0], [0], [1], [0, 0, 1, 1], [], []>} : vector<16x384xbf16>, vector<384x128xbf16>, vector<16x128xf32> -> vector<16x128xf32>
      %86 = vector.broadcast %82 : vector<1x128xf32> to vector<16x128xf32>
      %87 = arith.addf %85, %86 : vector<16x128xf32>
      %88 = vector.shape_cast %87 : vector<16x128xf32> to vector<1x16x128xf32>
      %89 = math.tanh %88 : vector<1x16x128xf32>
      %90 = arith.addf %35, %89 : vector<1x16x128xf32>
      %91 = arith.addf %1, %89 : vector<1x16x128xf32>
      %c2_i32_86 = arith.constant 2 : i32
      %92 = arith.addi %34, %c2_i32_86 : i32
      %93 = arith.truncf %91 : vector<1x16x128xf32> to vector<1x16x128xbf16>
      %c0_87 = arith.constant 0 : index
      %c0_88 = arith.constant 0 : index
      %c128_89 = arith.constant 128 : index
      %94 = vector.load %arg7[%c0_87, %c0_88, %c128_89] : memref<1x16x384xbf16, #tpu.memory_space<vmem>>, vector<1x16x128xbf16>
      tpu.vector_store %arg7[%c0_87, %c0_88, %c128_89], %93 {strides = array<i32>} : memref<1x16x384xbf16, #tpu.memory_space<vmem>>, vector<1x16x128xbf16>,
      %cst_90 = arith.constant 0.000000e+00 : bf16
      %95 = vector.broadcast %cst_90 : bf16 to vector<1x2x128xbf16>
      %c0_91 = arith.constant 0 : index
      %c0_92 = arith.constant 0 : index
      %c0_93 = arith.constant 0 : index
      %96 = vector.load %arg7[%c0_91, %c0_92, %c0_93] : memref<1x16x384xbf16, #tpu.memory_space<vmem>>, vector<1x2x128xbf16>
      tpu.vector_store %arg7[%c0_91, %c0_92, %c0_93], %95 {strides = array<i32>} : memref<1x16x384xbf16, #tpu.memory_space<vmem>>, vector<1x2x128xbf16>,
      %97 = vector.extract_strided_slice %93 {offsets = [0, 0, 0], sizes = [1, 14, 128], strides = [1, 1, 1]} : vector<1x16x128xbf16> to vector<1x14x128xbf16>
      %c0_94 = arith.constant 0 : index
      %c2 = arith.constant 2 : index
      %c0_95 = arith.constant 0 : index
      %98 = vector.load %arg7[%c0_94, %c2, %c0_95] : memref<1x16x384xbf16, #tpu.memory_space<vmem>>, vector<1x14x128xbf16>
      tpu.vector_store %arg7[%c0_94, %c2, %c0_95], %97 {strides = array<i32>} : memref<1x16x384xbf16, #tpu.memory_space<vmem>>, vector<1x14x128xbf16>,
      %99 = vector.extract_strided_slice %93 {offsets = [0, 2, 0], sizes = [1, 14, 128], strides = [1, 1, 1]} : vector<1x16x128xbf16> to vector<1x14x128xbf16>
      %c0_96 = arith.constant 0 : index
      %c0_97 = arith.constant 0 : index
      %c256_98 = arith.constant 256 : index
      %100 = vector.load %arg7[%c0_96, %c0_97, %c256_98] : memref<1x16x384xbf16, #tpu.memory_space<vmem>>, vector<1x14x128xbf16>
      tpu.vector_store %arg7[%c0_96, %c0_97, %c256_98], %99 {strides = array<i32>} : memref<1x16x384xbf16, #tpu.memory_space<vmem>>, vector<1x14x128xbf16>,
      %cst_99 = arith.constant 0.000000e+00 : bf16
      %101 = vector.broadcast %cst_99 : bf16 to vector<1x2x128xbf16>
      %c0_100 = arith.constant 0 : index
      %c14 = arith.constant 14 : index
      %c256_101 = arith.constant 256 : index
      %102 = vector.load %arg7[%c0_100, %c14, %c256_101] : memref<1x16x384xbf16, #tpu.memory_space<vmem>>, vector<1x2x128xbf16>
      tpu.vector_store %arg7[%c0_100, %c14, %c256_101], %101 {strides = array<i32>} : memref<1x16x384xbf16, #tpu.memory_space<vmem>>, vector<1x2x128xbf16>,
      %103 = arith.index_cast %92 : i32 to index
      %c0_102 = arith.constant 0 : index
      %c0_103 = arith.constant 0 : index
      %104 = vector.load %arg2[%103, %c0_102, %c0_103] : memref<13x384x128xbf16, #tpu.memory_space<vmem>>, vector<1x384x128xbf16>
      %105 = vector.shape_cast %104 : vector<1x384x128xbf16> to vector<384x128xbf16>
      %106 = arith.index_cast %92 : i32 to index
      %c0_104 = arith.constant 0 : index
      %107 = vector.load %arg3[%106, %c0_104] : memref<13x128xf32, #tpu.memory_space<vmem>>, vector<1x128xf32>
      %c0_105 = arith.constant 0 : index
      %c0_106 = arith.constant 0 : index
      %c0_107 = arith.constant 0 : index
      %108 = vector.load %arg7[%c0_105, %c0_106, %c0_107] : memref<1x16x384xbf16, #tpu.memory_space<vmem>>, vector<1x16x384xbf16>
      %109 = vector.shape_cast %108 : vector<1x16x384xbf16> to vector<16x384xbf16>
      %cst_108 = arith.constant dense<0.000000e+00> : vector<16x128xf32>
      %110 = tpu.matmul %109, %105, %cst_108 {dimension_numbers = #tpu.dot_dimension_numbers<[1], [0], [0], [1], [0, 0, 1, 1], [], []>} : vector<16x384xbf16>, vector<384x128xbf16>, vector<16x128xf32> -> vector<16x128xf32>
      %111 = vector.broadcast %107 : vector<1x128xf32> to vector<16x128xf32>
      %112 = arith.addf %110, %111 : vector<16x128xf32>
      %113 = vector.shape_cast %112 : vector<16x128xf32> to vector<1x16x128xf32>
      %114 = math.tanh %113 : vector<1x16x128xf32>
      %cst_109 = arith.constant 5.000000e-01 : f32
      %115 = vector.broadcast %cst_109 : f32 to vector<1x16x128xf32>
      %116 = arith.mulf %115, %113 : vector<1x16x128xf32>
      %117 = math.tanh %116 : vector<1x16x128xf32>
      %cst_110 = arith.constant 5.000000e-01 : f32
      %118 = vector.broadcast %cst_110 : f32 to vector<1x16x128xf32>
      %119 = arith.mulf %118, %117 : vector<1x16x128xf32>
      %cst_111 = arith.constant 5.000000e-01 : f32
      %120 = vector.broadcast %cst_111 : f32 to vector<1x16x128xf32>
      %121 = arith.addf %120, %119 : vector<1x16x128xf32>
      %122 = arith.mulf %114, %121 : vector<1x16x128xf32>
      %c1_i32_112 = arith.constant 1 : i32
      %123 = arith.addi %92, %c1_i32_112 : i32
      %124 = arith.truncf %122 : vector<1x16x128xf32> to vector<1x16x128xbf16>
      %c0_113 = arith.constant 0 : index
      %c0_114 = arith.constant 0 : index
      %c128_115 = arith.constant 128 : index
      %125 = vector.load %arg7[%c0_113, %c0_114, %c128_115] : memref<1x16x384xbf16, #tpu.memory_space<vmem>>, vector<1x16x128xbf16>
      tpu.vector_store %arg7[%c0_113, %c0_114, %c128_115], %124 {strides = array<i32>} : memref<1x16x384xbf16, #tpu.memory_space<vmem>>, vector<1x16x128xbf16>,
      %cst_116 = arith.constant 0.000000e+00 : bf16
      %126 = vector.broadcast %cst_116 : bf16 to vector<1x1x128xbf16>
      %c0_117 = arith.constant 0 : index
      %c0_118 = arith.constant 0 : index
      %c0_119 = arith.constant 0 : index
      %127 = vector.load %arg7[%c0_117, %c0_118, %c0_119] : memref<1x16x384xbf16, #tpu.memory_space<vmem>>, vector<1x1x128xbf16>
      tpu.vector_store %arg7[%c0_117, %c0_118, %c0_119], %126 {strides = array<i32>} : memref<1x16x384xbf16, #tpu.memory_space<vmem>>, vector<1x1x128xbf16>,
      %128 = vector.extract_strided_slice %124 {offsets = [0, 0, 0], sizes = [1, 15, 128], strides = [1, 1, 1]} : vector<1x16x128xbf16> to vector<1x15x128xbf16>
      %c0_120 = arith.constant 0 : index
      %c1_121 = arith.constant 1 : index
      %c0_122 = arith.constant 0 : index
      %129 = vector.load %arg7[%c0_120, %c1_121, %c0_122] : memref<1x16x384xbf16, #tpu.memory_space<vmem>>, vector<1x15x128xbf16>
      tpu.vector_store %arg7[%c0_120, %c1_121, %c0_122], %128 {strides = array<i32>} : memref<1x16x384xbf16, #tpu.memory_space<vmem>>, vector<1x15x128xbf16>,
      %130 = vector.extract_strided_slice %124 {offsets = [0, 1, 0], sizes = [1, 15, 128], strides = [1, 1, 1]} : vector<1x16x128xbf16> to vector<1x15x128xbf16>
      %c0_123 = arith.constant 0 : index
      %c0_124 = arith.constant 0 : index
      %c256_125 = arith.constant 256 : index
      %131 = vector.load %arg7[%c0_123, %c0_124, %c256_125] : memref<1x16x384xbf16, #tpu.memory_space<vmem>>, vector<1x15x128xbf16>
      tpu.vector_store %arg7[%c0_123, %c0_124, %c256_125], %130 {strides = array<i32>} : memref<1x16x384xbf16, #tpu.memory_space<vmem>>, vector<1x15x128xbf16>,
      %cst_126 = arith.constant 0.000000e+00 : bf16
      %132 = vector.broadcast %cst_126 : bf16 to vector<1x1x128xbf16>
      %c0_127 = arith.constant 0 : index
      %c15_128 = arith.constant 15 : index
      %c256_129 = arith.constant 256 : index
      %133 = vector.load %arg7[%c0_127, %c15_128, %c256_129] : memref<1x16x384xbf16, #tpu.memory_space<vmem>>, vector<1x1x128xbf16>
      tpu.vector_store %arg7[%c0_127, %c15_128, %c256_129], %132 {strides = array<i32>} : memref<1x16x384xbf16, #tpu.memory_space<vmem>>, vector<1x1x128xbf16>,
      %134 = arith.index_cast %123 : i32 to index
      %c0_130 = arith.constant 0 : index
      %c0_131 = arith.constant 0 : index
      %135 = vector.load %arg2[%134, %c0_130, %c0_131] : memref<13x384x128xbf16, #tpu.memory_space<vmem>>, vector<1x384x128xbf16>
      %136 = vector.shape_cast %135 : vector<1x384x128xbf16> to vector<384x128xbf16>
      %137 = arith.index_cast %123 : i32 to index
      %c0_132 = arith.constant 0 : index
      %138 = vector.load %arg3[%137, %c0_132] : memref<13x128xf32, #tpu.memory_space<vmem>>, vector<1x128xf32>
      %c0_133 = arith.constant 0 : index
      %c0_134 = arith.constant 0 : index
      %c0_135 = arith.constant 0 : index
      %139 = vector.load %arg7[%c0_133, %c0_134, %c0_135] : memref<1x16x384xbf16, #tpu.memory_space<vmem>>, vector<1x16x384xbf16>
      %140 = vector.shape_cast %139 : vector<1x16x384xbf16> to vector<16x384xbf16>
      %cst_136 = arith.constant dense<0.000000e+00> : vector<16x128xf32>
      %141 = tpu.matmul %140, %136, %cst_136 {dimension_numbers = #tpu.dot_dimension_numbers<[1], [0], [0], [1], [0, 0, 1, 1], [], []>} : vector<16x384xbf16>, vector<384x128xbf16>, vector<16x128xf32> -> vector<16x128xf32>
      %142 = vector.broadcast %138 : vector<1x128xf32> to vector<16x128xf32>
      %143 = arith.addf %141, %142 : vector<16x128xf32>
      %144 = vector.shape_cast %143 : vector<16x128xf32> to vector<1x16x128xf32>
      %145 = math.tanh %144 : vector<1x16x128xf32>
      %146 = arith.addf %90, %145 : vector<1x16x128xf32>
      %147 = arith.addf %91, %145 : vector<1x16x128xf32>
      %c4_i32 = arith.constant 4 : i32
      %148 = arith.addi %34, %c4_i32 : i32
      %149 = arith.truncf %147 : vector<1x16x128xf32> to vector<1x16x128xbf16>
      %c0_137 = arith.constant 0 : index
      %c0_138 = arith.constant 0 : index
      %c128_139 = arith.constant 128 : index
      %150 = vector.load %arg7[%c0_137, %c0_138, %c128_139] : memref<1x16x384xbf16, #tpu.memory_space<vmem>>, vector<1x16x128xbf16>
      tpu.vector_store %arg7[%c0_137, %c0_138, %c128_139], %149 {strides = array<i32>} : memref<1x16x384xbf16, #tpu.memory_space<vmem>>, vector<1x16x128xbf16>,
      %cst_140 = arith.constant 0.000000e+00 : bf16
      %151 = vector.broadcast %cst_140 : bf16 to vector<1x4x128xbf16>
      %c0_141 = arith.constant 0 : index
      %c0_142 = arith.constant 0 : index
      %c0_143 = arith.constant 0 : index
      %152 = vector.load %arg7[%c0_141, %c0_142, %c0_143] : memref<1x16x384xbf16, #tpu.memory_space<vmem>>, vector<1x4x128xbf16>
      tpu.vector_store %arg7[%c0_141, %c0_142, %c0_143], %151 {strides = array<i32>} : memref<1x16x384xbf16, #tpu.memory_space<vmem>>, vector<1x4x128xbf16>,
      %153 = vector.extract_strided_slice %149 {offsets = [0, 0, 0], sizes = [1, 12, 128], strides = [1, 1, 1]} : vector<1x16x128xbf16> to vector<1x12x128xbf16>
      %c0_144 = arith.constant 0 : index
      %c4 = arith.constant 4 : index
      %c0_145 = arith.constant 0 : index
      %154 = vector.load %arg7[%c0_144, %c4, %c0_145] : memref<1x16x384xbf16, #tpu.memory_space<vmem>>, vector<1x12x128xbf16>
      tpu.vector_store %arg7[%c0_144, %c4, %c0_145], %153 {strides = array<i32>} : memref<1x16x384xbf16, #tpu.memory_space<vmem>>, vector<1x12x128xbf16>,
      %155 = vector.extract_strided_slice %149 {offsets = [0, 4, 0], sizes = [1, 12, 128], strides = [1, 1, 1]} : vector<1x16x128xbf16> to vector<1x12x128xbf16>
      %c0_146 = arith.constant 0 : index
      %c0_147 = arith.constant 0 : index
      %c256_148 = arith.constant 256 : index
      %156 = vector.load %arg7[%c0_146, %c0_147, %c256_148] : memref<1x16x384xbf16, #tpu.memory_space<vmem>>, vector<1x12x128xbf16>
      tpu.vector_store %arg7[%c0_146, %c0_147, %c256_148], %155 {strides = array<i32>} : memref<1x16x384xbf16, #tpu.memory_space<vmem>>, vector<1x12x128xbf16>,
      %cst_149 = arith.constant 0.000000e+00 : bf16
      %157 = vector.broadcast %cst_149 : bf16 to vector<1x4x128xbf16>
      %c0_150 = arith.constant 0 : index
      %c12_151 = arith.constant 12 : index
      %c256_152 = arith.constant 256 : index
      %158 = vector.load %arg7[%c0_150, %c12_151, %c256_152] : memref<1x16x384xbf16, #tpu.memory_space<vmem>>, vector<1x4x128xbf16>
      tpu.vector_store %arg7[%c0_150, %c12_151, %c256_152], %157 {strides = array<i32>} : memref<1x16x384xbf16, #tpu.memory_space<vmem>>, vector<1x4x128xbf16>,
      %159 = arith.index_cast %148 : i32 to index
      %c0_153 = arith.constant 0 : index
      %c0_154 = arith.constant 0 : index
      %160 = vector.load %arg2[%159, %c0_153, %c0_154] : memref<13x384x128xbf16, #tpu.memory_space<vmem>>, vector<1x384x128xbf16>
      %161 = vector.shape_cast %160 : vector<1x384x128xbf16> to vector<384x128xbf16>
      %162 = arith.index_cast %148 : i32 to index
      %c0_155 = arith.constant 0 : index
      %163 = vector.load %arg3[%162, %c0_155] : memref<13x128xf32, #tpu.memory_space<vmem>>, vector<1x128xf32>
      %c0_156 = arith.constant 0 : index
      %c0_157 = arith.constant 0 : index
      %c0_158 = arith.constant 0 : index
      %164 = vector.load %arg7[%c0_156, %c0_157, %c0_158] : memref<1x16x384xbf16, #tpu.memory_space<vmem>>, vector<1x16x384xbf16>
      %165 = vector.shape_cast %164 : vector<1x16x384xbf16> to vector<16x384xbf16>
      %cst_159 = arith.constant dense<0.000000e+00> : vector<16x128xf32>
      %166 = tpu.matmul %165, %161, %cst_159 {dimension_numbers = #tpu.dot_dimension_numbers<[1], [0], [0], [1], [0, 0, 1, 1], [], []>} : vector<16x384xbf16>, vector<384x128xbf16>, vector<16x128xf32> -> vector<16x128xf32>
      %167 = vector.broadcast %163 : vector<1x128xf32> to vector<16x128xf32>
      %168 = arith.addf %166, %167 : vector<16x128xf32>
      %169 = vector.shape_cast %168 : vector<16x128xf32> to vector<1x16x128xf32>
      %170 = math.tanh %169 : vector<1x16x128xf32>
      %cst_160 = arith.constant 5.000000e-01 : f32
      %171 = vector.broadcast %cst_160 : f32 to vector<1x16x128xf32>
      %172 = arith.mulf %171, %169 : vector<1x16x128xf32>
      %173 = math.tanh %172 : vector<1x16x128xf32>
      %cst_161 = arith.constant 5.000000e-01 : f32
      %174 = vector.broadcast %cst_161 : f32 to vector<1x16x128xf32>
      %175 = arith.mulf %174, %173 : vector<1x16x128xf32>
      %cst_162 = arith.constant 5.000000e-01 : f32
      %176 = vector.broadcast %cst_162 : f32 to vector<1x16x128xf32>
      %177 = arith.addf %176, %175 : vector<1x16x128xf32>
      %178 = arith.mulf %170, %177 : vector<1x16x128xf32>
      %c1_i32_163 = arith.constant 1 : i32
      %179 = arith.addi %148, %c1_i32_163 : i32
      %180 = arith.truncf %178 : vector<1x16x128xf32> to vector<1x16x128xbf16>
      %c0_164 = arith.constant 0 : index
      %c0_165 = arith.constant 0 : index
      %c128_166 = arith.constant 128 : index
      %181 = vector.load %arg7[%c0_164, %c0_165, %c128_166] : memref<1x16x384xbf16, #tpu.memory_space<vmem>>, vector<1x16x128xbf16>
      tpu.vector_store %arg7[%c0_164, %c0_165, %c128_166], %180 {strides = array<i32>} : memref<1x16x384xbf16, #tpu.memory_space<vmem>>, vector<1x16x128xbf16>,
      %cst_167 = arith.constant 0.000000e+00 : bf16
      %182 = vector.broadcast %cst_167 : bf16 to vector<1x1x128xbf16>
      %c0_168 = arith.constant 0 : index
      %c0_169 = arith.constant 0 : index
      %c0_170 = arith.constant 0 : index
      %183 = vector.load %arg7[%c0_168, %c0_169, %c0_170] : memref<1x16x384xbf16, #tpu.memory_space<vmem>>, vector<1x1x128xbf16>
      tpu.vector_store %arg7[%c0_168, %c0_169, %c0_170], %182 {strides = array<i32>} : memref<1x16x384xbf16, #tpu.memory_space<vmem>>, vector<1x1x128xbf16>,
      %184 = vector.extract_strided_slice %180 {offsets = [0, 0, 0], sizes = [1, 15, 128], strides = [1, 1, 1]} : vector<1x16x128xbf16> to vector<1x15x128xbf16>
      %c0_171 = arith.constant 0 : index
      %c1_172 = arith.constant 1 : index
      %c0_173 = arith.constant 0 : index
      %185 = vector.load %arg7[%c0_171, %c1_172, %c0_173] : memref<1x16x384xbf16, #tpu.memory_space<vmem>>, vector<1x15x128xbf16>
      tpu.vector_store %arg7[%c0_171, %c1_172, %c0_173], %184 {strides = array<i32>} : memref<1x16x384xbf16, #tpu.memory_space<vmem>>, vector<1x15x128xbf16>,
      %186 = vector.extract_strided_slice %180 {offsets = [0, 1, 0], sizes = [1, 15, 128], strides = [1, 1, 1]} : vector<1x16x128xbf16> to vector<1x15x128xbf16>
      %c0_174 = arith.constant 0 : index
      %c0_175 = arith.constant 0 : index
      %c256_176 = arith.constant 256 : index
      %187 = vector.load %arg7[%c0_174, %c0_175, %c256_176] : memref<1x16x384xbf16, #tpu.memory_space<vmem>>, vector<1x15x128xbf16>
      tpu.vector_store %arg7[%c0_174, %c0_175, %c256_176], %186 {strides = array<i32>} : memref<1x16x384xbf16, #tpu.memory_space<vmem>>, vector<1x15x128xbf16>,
      %cst_177 = arith.constant 0.000000e+00 : bf16
      %188 = vector.broadcast %cst_177 : bf16 to vector<1x1x128xbf16>
      %c0_178 = arith.constant 0 : index
      %c15_179 = arith.constant 15 : index
      %c256_180 = arith.constant 256 : index
      %189 = vector.load %arg7[%c0_178, %c15_179, %c256_180] : memref<1x16x384xbf16, #tpu.memory_space<vmem>>, vector<1x1x128xbf16>
      tpu.vector_store %arg7[%c0_178, %c15_179, %c256_180], %188 {strides = array<i32>} : memref<1x16x384xbf16, #tpu.memory_space<vmem>>, vector<1x1x128xbf16>,
      %190 = arith.index_cast %179 : i32 to index
      %c0_181 = arith.constant 0 : index
      %c0_182 = arith.constant 0 : index
      %191 = vector.load %arg2[%190, %c0_181, %c0_182] : memref<13x384x128xbf16, #tpu.memory_space<vmem>>, vector<1x384x128xbf16>
      %192 = vector.shape_cast %191 : vector<1x384x128xbf16> to vector<384x128xbf16>
      %193 = arith.index_cast %179 : i32 to index
      %c0_183 = arith.constant 0 : index
      %194 = vector.load %arg3[%193, %c0_183] : memref<13x128xf32, #tpu.memory_space<vmem>>, vector<1x128xf32>
      %c0_184 = arith.constant 0 : index
      %c0_185 = arith.constant 0 : index
      %c0_186 = arith.constant 0 : index
      %195 = vector.load %arg7[%c0_184, %c0_185, %c0_186] : memref<1x16x384xbf16, #tpu.memory_space<vmem>>, vector<1x16x384xbf16>
      %196 = vector.shape_cast %195 : vector<1x16x384xbf16> to vector<16x384xbf16>
      %cst_187 = arith.constant dense<0.000000e+00> : vector<16x128xf32>
      %197 = tpu.matmul %196, %192, %cst_187 {dimension_numbers = #tpu.dot_dimension_numbers<[1], [0], [0], [1], [0, 0, 1, 1], [], []>} : vector<16x384xbf16>, vector<384x128xbf16>, vector<16x128xf32> -> vector<16x128xf32>
      %198 = vector.broadcast %194 : vector<1x128xf32> to vector<16x128xf32>
      %199 = arith.addf %197, %198 : vector<16x128xf32>
      %200 = vector.shape_cast %199 : vector<16x128xf32> to vector<1x16x128xf32>
      %201 = math.tanh %200 : vector<1x16x128xf32>
      %202 = arith.addf %146, %201 : vector<1x16x128xf32>
      %203 = arith.addf %arg9, %202 : vector<1x16x128xf32>
      scf.yield %203 : vector<1x16x128xf32>
    }
    %c2_i32_2 = arith.constant 2 : i32
    %5 = arith.truncf %4 : vector<1x16x128xf32> to vector<1x16x128xbf16>
    %c0_3 = arith.constant 0 : index
    %c0_4 = arith.constant 0 : index
    %c128 = arith.constant 128 : index
    %6 = vector.load %arg7[%c0_3, %c0_4, %c128] : memref<1x16x384xbf16, #tpu.memory_space<vmem>>, vector<1x16x128xbf16>
    tpu.vector_store %arg7[%c0_3, %c0_4, %c128], %5 {strides = array<i32>} : memref<1x16x384xbf16, #tpu.memory_space<vmem>>, vector<1x16x128xbf16>,
    %cst_5 = arith.constant 0.000000e+00 : bf16
    %7 = vector.broadcast %cst_5 : bf16 to vector<1x1x128xbf16>
    %c0_6 = arith.constant 0 : index
    %c0_7 = arith.constant 0 : index
    %c0_8 = arith.constant 0 : index
    %8 = vector.load %arg7[%c0_6, %c0_7, %c0_8] : memref<1x16x384xbf16, #tpu.memory_space<vmem>>, vector<1x1x128xbf16>
    tpu.vector_store %arg7[%c0_6, %c0_7, %c0_8], %7 {strides = array<i32>} : memref<1x16x384xbf16, #tpu.memory_space<vmem>>, vector<1x1x128xbf16>,
    %9 = vector.extract_strided_slice %5 {offsets = [0, 0, 0], sizes = [1, 15, 128], strides = [1, 1, 1]} : vector<1x16x128xbf16> to vector<1x15x128xbf16>
    %c0_9 = arith.constant 0 : index
    %c1 = arith.constant 1 : index
    %c0_10 = arith.constant 0 : index
    %10 = vector.load %arg7[%c0_9, %c1, %c0_10] : memref<1x16x384xbf16, #tpu.memory_space<vmem>>, vector<1x15x128xbf16>
    tpu.vector_store %arg7[%c0_9, %c1, %c0_10], %9 {strides = array<i32>} : memref<1x16x384xbf16, #tpu.memory_space<vmem>>, vector<1x15x128xbf16>,
    %11 = vector.extract_strided_slice %5 {offsets = [0, 1, 0], sizes = [1, 15, 128], strides = [1, 1, 1]} : vector<1x16x128xbf16> to vector<1x15x128xbf16>
    %c0_11 = arith.constant 0 : index
    %c0_12 = arith.constant 0 : index
    %c256 = arith.constant 256 : index
    %12 = vector.load %arg7[%c0_11, %c0_12, %c256] : memref<1x16x384xbf16, #tpu.memory_space<vmem>>, vector<1x15x128xbf16>
    tpu.vector_store %arg7[%c0_11, %c0_12, %c256], %11 {strides = array<i32>} : memref<1x16x384xbf16, #tpu.memory_space<vmem>>, vector<1x15x128xbf16>,
    %cst_13 = arith.constant 0.000000e+00 : bf16
    %13 = vector.broadcast %cst_13 : bf16 to vector<1x1x128xbf16>
    %c0_14 = arith.constant 0 : index
    %c15 = arith.constant 15 : index
    %c256_15 = arith.constant 256 : index
    %14 = vector.load %arg7[%c0_14, %c15, %c256_15] : memref<1x16x384xbf16, #tpu.memory_space<vmem>>, vector<1x1x128xbf16>
    tpu.vector_store %arg7[%c0_14, %c15, %c256_15], %13 {strides = array<i32>} : memref<1x16x384xbf16, #tpu.memory_space<vmem>>, vector<1x1x128xbf16>,
    %c12 = arith.constant 12 : index
    %c0_16 = arith.constant 0 : index
    %c0_17 = arith.constant 0 : index
    %15 = vector.load %arg2[%c12, %c0_16, %c0_17] : memref<13x384x128xbf16, #tpu.memory_space<vmem>>, vector<1x384x128xbf16>
    %16 = vector.shape_cast %15 : vector<1x384x128xbf16> to vector<384x128xbf16>
    %c12_18 = arith.constant 12 : index
    %c0_19 = arith.constant 0 : index
    %17 = vector.load %arg3[%c12_18, %c0_19] : memref<13x128xf32, #tpu.memory_space<vmem>>, vector<1x128xf32>
    %c0_20 = arith.constant 0 : index
    %c0_21 = arith.constant 0 : index
    %c0_22 = arith.constant 0 : index
    %18 = vector.load %arg7[%c0_20, %c0_21, %c0_22] : memref<1x16x384xbf16, #tpu.memory_space<vmem>>, vector<1x16x384xbf16>
    %19 = vector.shape_cast %18 : vector<1x16x384xbf16> to vector<16x384xbf16>
    %cst_23 = arith.constant dense<0.000000e+00> : vector<16x128xf32>
    %20 = tpu.matmul %19, %16, %cst_23 {dimension_numbers = #tpu.dot_dimension_numbers<[1], [0], [0], [1], [0, 0, 1, 1], [], []>} : vector<16x384xbf16>, vector<384x128xbf16>, vector<16x128xf32> -> vector<16x128xf32>
    %21 = vector.broadcast %17 : vector<1x128xf32> to vector<16x128xf32>
    %22 = arith.addf %20, %21 : vector<16x128xf32>
    %23 = vector.shape_cast %22 : vector<16x128xf32> to vector<1x16x128xf32>
    %24 = math.tanh %23 : vector<1x16x128xf32>
    %25 = vector.shape_cast %24 : vector<1x16x128xf32> to vector<16x128xf32>
    %26 = arith.truncf %25 : vector<16x128xf32> to vector<16x128xbf16>
    %c0_24 = arith.constant 0 : index
    %c0_25 = arith.constant 0 : index
    %27 = vector.load %arg4[%c0_24, %c0_25] : memref<128x128xbf16, #tpu.memory_space<vmem>>, vector<128x128xbf16>
    %cst_26 = arith.constant dense<0.000000e+00> : vector<16x128xf32>
    %28 = tpu.matmul %26, %27, %cst_26 {dimension_numbers = #tpu.dot_dimension_numbers<[1], [0], [0], [1], [0, 0, 1, 1], [], []>} : vector<16x128xbf16>, vector<128x128xbf16>, vector<16x128xf32> -> vector<16x128xf32>
    %c0_27 = arith.constant 0 : index
    %c0_28 = arith.constant 0 : index
    %29 = vector.load %arg5[%c0_27, %c0_28] : memref<1x128xf32, #tpu.memory_space<vmem>>, vector<1x128xf32>
    %30 = vector.broadcast %29 : vector<1x128xf32> to vector<16x128xf32>
    %31 = arith.addf %28, %30 : vector<16x128xf32>
    %32 = vector.shape_cast %31 : vector<16x128xf32> to vector<1x16x128xf32>
    %c0_29 = arith.constant 0 : index
    %c0_30 = arith.constant 0 : index
    %c0_31 = arith.constant 0 : index
    %33 = vector.load %arg6[%c0_29, %c0_30, %c0_31] : memref<1x16x128xf32, #tpu.memory_space<vmem>>, vector<1x16x128xf32>
    tpu.vector_store %arg6[%c0_29, %c0_30, %c0_31], %32 {strides = array<i32>} : memref<1x16x128xf32, #tpu.memory_space<vmem>>, vector<1x16x128xf32>,
    return
  }
  func.func @transform_0(%arg0: i32) -> (i32, i32, i32) {
    %c0_i32 = arith.constant 0 : i32
    %c0_i32_0 = arith.constant 0 : i32
    %c0_i32_1 = arith.constant 0 : i32
    return %arg0, %c0_i32, %c0_i32_0 : i32, i32, i32
  }
  func.func @transform_1(%arg0: i32) -> (i32, i32, i32) {
    %c0_i32 = arith.constant 0 : i32
    %c0_i32_0 = arith.constant 0 : i32
    %c0_i32_1 = arith.constant 0 : i32
    %c0_i32_2 = arith.constant 0 : i32
    return %c0_i32, %c0_i32_0, %c0_i32_1 : i32, i32, i32
  }
  func.func @transform_2(%arg0: i32) -> (i32, i32) {
    %c0_i32 = arith.constant 0 : i32
    %c0_i32_0 = arith.constant 0 : i32
    %c0_i32_1 = arith.constant 0 : i32
    return %c0_i32, %c0_i32_0 : i32, i32
  }
  func.func @transform_3(%arg0: i32) -> (i32, i32) {
    %c0_i32 = arith.constant 0 : i32
    %c0_i32_0 = arith.constant 0 : i32
    %c0_i32_1 = arith.constant 0 : i32
    return %c0_i32, %c0_i32_0 : i32, i32
  }
  func.func @transform_4(%arg0: i32) -> (i32, i32) {
    %c0_i32 = arith.constant 0 : i32
    %c0_i32_0 = arith.constant 0 : i32
    %c0_i32_1 = arith.constant 0 : i32
    return %c0_i32, %c0_i32_0 : i32, i32
  }
  func.func @transform_5(%arg0: i32) -> (i32, i32, i32) {
    %c0_i32 = arith.constant 0 : i32
    %c0_i32_0 = arith.constant 0 : i32
    %c0_i32_1 = arith.constant 0 : i32
    return %arg0, %c0_i32, %c0_i32_0 : i32, i32, i32
  }
}

module attributes {stable_mosaic.version = 11 : i64} {
  func.func @kernel(%arg0: i32, %arg1: memref<1x16x128xbf16, #tpu.memory_space<vmem>>, %arg2: memref<13x384x128xbf16, #tpu.memory_space<vmem>>, %arg3: memref<13x128xf32, #tpu.memory_space<vmem>>, %arg4: memref<128x128xbf16, #tpu.memory_space<vmem>>, %arg5: memref<1x128xf32, #tpu.memory_space<vmem>>, %arg6: memref<1x16x128xf32, #tpu.memory_space<vmem>>, %arg7: memref<1x16x384xbf16, #tpu.memory_space<vmem>>) attributes {dimension_semantics = [#tpu.dimension_semantics<parallel>], iteration_bounds = array<i64: 2>, scalar_prefetch = 0 : i64, scratch_operands = 1 : i64, tpu.core_type = #tpu.core_type<tc>, window_params = [{transform_indices = @transform_0, window_bounds = array<i64: 1, 16, 128>}, {pipeline_mode = #tpu.pipeline_mode<synchronous>, transform_indices = @transform_1, window_bounds = array<i64: 13, 384, 128>}, {pipeline_mode = #tpu.pipeline_mode<synchronous>, transform_indices = @transform_2, window_bounds = array<i64: 13, 128>}, {pipeline_mode = #tpu.pipeline_mode<synchronous>, transform_indices = @transform_3, window_bounds = array<i64: 128, 128>}, {pipeline_mode = #tpu.pipeline_mode<synchronous>, transform_indices = @transform_4, window_bounds = array<i64: 1, 128>}, {transform_indices = @transform_5, window_bounds = array<i64: 1, 16, 128>}]} {
    %c0 = arith.constant 0 : index
    %c0_0 = arith.constant 0 : index
    %c0_1 = arith.constant 0 : index
    %0 = vector.load %arg1[%c0, %c0_0, %c0_1] : memref<1x16x128xbf16, #tpu.memory_space<vmem>>, vector<1x16x128xbf16>
    %1 = arith.extf %0 : vector<1x16x128xbf16> to vector<1x16x128xf32>
    %cst = arith.constant 0.000000e+00 : f32
    %2 = vector.broadcast %cst : f32 to vector<1x16x128xf32>
    %c0_i32 = arith.constant 0 : i32
    %c2_i32 = arith.constant 2 : i32
    %3 = arith.addi %c0_i32, %c2_i32 : i32
    %c1_i32 = arith.constant 1 : i32
    %4 = scf.for %arg8 = %c0_i32 to %3 step %c1_i32 iter_args(%arg9 = %2) -> (vector<1x16x128xf32>)  : i32 {
      %c6_i32 = arith.constant 6 : i32
      %34 = arith.muli %arg8, %c6_i32 : i32
      %cst_32 = arith.constant 0.000000e+00 : f32
      %35 = vector.broadcast %cst_32 : f32 to vector<1x16x128xf32>
      %c0_i32_33 = arith.constant 0 : i32
      %36 = arith.addi %34, %c0_i32_33 : i32
      %37 = arith.truncf %1 : vector<1x16x128xf32> to vector<1x16x128xbf16>
      %c0_34 = arith.constant 0 : index
      %c0_35 = arith.constant 0 : index
      %c128_36 = arith.constant 128 : index
      %38 = vector.load %arg7[%c0_34, %c0_35, %c128_36] : memref<1x16x384xbf16, #tpu.memory_space<vmem>>, vector<1x16x128xbf16>
      tpu.vector_store %arg7[%c0_34, %c0_35, %c128_36], %37 {strides = array<i32>} : memref<1x16x384xbf16, #tpu.memory_space<vmem>>, vector<1x16x128xbf16>,
      %cst_37 = arith.constant 0.000000e+00 : bf16
      %39 = vector.broadcast %cst_37 : bf16 to vector<1x1x128xbf16>
      %c0_38 = arith.constant 0 : index
      %c0_39 = arith.constant 0 : index
      %c0_40 = arith.constant 0 : index
      %40 = vector.load %arg7[%c0_38, %c0_39, %c0_40] : memref<1x16x384xbf16, #tpu.memory_space<vmem>>, vector<1x1x128xbf16>
      tpu.vector_store %arg7[%c0_38, %c0_39, %c0_40], %39 {strides = array<i32>} : memref<1x16x384xbf16, #tpu.memory_space<vmem>>, vector<1x1x128xbf16>,
      %41 = vector.extract_strided_slice %37 {offsets = [0, 0, 0], sizes = [1, 15, 128], strides = [1, 1, 1]} : vector<1x16x128xbf16> to vector<1x15x128xbf16>
      %c0_41 = arith.constant 0 : index
      %c1_42 = arith.constant 1 : index
      %c0_43 = arith.constant 0 : index
      %42 = vector.load %arg7[%c0_41, %c1_42, %c0_43] : memref<1x16x384xbf16, #tpu.memory_space<vmem>>, vector<1x15x128xbf16>
      tpu.vector_store %arg7[%c0_41, %c1_42, %c0_43], %41 {strides = array<i32>} : memref<1x16x384xbf16, #tpu.memory_space<vmem>>, vector<1x15x128xbf16>,
      %43 = vector.extract_strided_slice %37 {offsets = [0, 1, 0], sizes = [1, 15, 128], strides = [1, 1, 1]} : vector<1x16x128xbf16> to vector<1x15x128xbf16>
      %c0_44 = arith.constant 0 : index
      %c0_45 = arith.constant 0 : index
      %c256_46 = arith.constant 256 : index
      %44 = vector.load %arg7[%c0_44, %c0_45, %c256_46] : memref<1x16x384xbf16, #tpu.memory_space<vmem>>, vector<1x15x128xbf16>
      tpu.vector_store %arg7[%c0_44, %c0_45, %c256_46], %43 {strides = array<i32>} : memref<1x16x384xbf16, #tpu.memory_space<vmem>>, vector<1x15x128xbf16>,
      %cst_47 = arith.constant 0.000000e+00 : bf16
      %45 = vector.broadcast %cst_47 : bf16 to vector<1x1x128xbf16>
      %c0_48 = arith.constant 0 : index
      %c15_49 = arith.constant 15 : index
      %c256_50 = arith.constant 256 : index
      %46 = vector.load %arg7[%c0_48, %c15_49, %c256_50] : memref<1x16x384xbf16, #tpu.memory_space<vmem>>, vector<1x1x128xbf16>
      tpu.vector_store %arg7[%c0_48, %c15_49, %c256_50], %45 {strides = array<i32>} : memref<1x16x384xbf16, #tpu.memory_space<vmem>>, vector<1x1x128xbf16>,
      %47 = arith.index_cast %36 : i32 to index
      %c0_51 = arith.constant 0 : index
      %c0_52 = arith.constant 0 : index
      %48 = vector.load %arg2[%47, %c0_51, %c0_52] : memref<13x384x128xbf16, #tpu.memory_space<vmem>>, vector<1x384x128xbf16>
      %49 = vector.shape_cast %48 : vector<1x384x128xbf16> to vector<384x128xbf16>
      %50 = arith.index_cast %36 : i32 to index
      %c0_53 = arith.constant 0 : index
      %51 = vector.load %arg3[%50, %c0_53] : memref<13x128xf32, #tpu.memory_space<vmem>>, vector<1x128xf32>
      %c0_54 = arith.constant 0 : index
      %c0_55 = arith.constant 0 : index
      %c0_56 = arith.constant 0 : index
      %52 = vector.load %arg7[%c0_54, %c0_55, %c0_56] : memref<1x16x384xbf16, #tpu.memory_space<vmem>>, vector<1x16x384xbf16>
      %53 = vector.shape_cast %52 : vector<1x16x384xbf16> to vector<16x384xbf16>
      %cst_57 = arith.constant dense<0.000000e+00> : vector<16x128xf32>
      %54 = tpu.matmul %53, %49, %cst_57 {dimension_numbers = #tpu.dot_dimension_numbers<[1], [0], [0], [1], [0, 0, 1, 1], [], []>} : vector<16x384xbf16>, vector<384x128xbf16>, vector<16x128xf32> -> vector<16x128xf32>
      %55 = vector.broadcast %51 : vector<1x128xf32> to vector<16x128xf32>
      %56 = arith.addf %54, %55 : vector<16x128xf32>
      %57 = vector.shape_cast %56 : vector<16x128xf32> to vector<1x16x128xf32>
      %58 = math.tanh %57 : vector<1x16x128xf32>
      %cst_58 = arith.constant 5.000000e-01 : f32
      %59 = vector.broadcast %cst_58 : f32 to vector<1x16x128xf32>
      %60 = arith.mulf %59, %57 : vector<1x16x128xf32>
      %61 = math.tanh %60 : vector<1x16x128xf32>
      %cst_59 = arith.constant 5.000000e-01 : f32
      %62 = vector.broadcast %cst_59 : f32 to vector<1x16x128xf32>
      %63 = arith.mulf %62, %61 : vector<1x16x128xf32>
      %cst_60 = arith.constant 5.000000e-01 : f32
      %64 = vector.broadcast %cst_60 : f32 to vector<1x16x128xf32>
      %65 = arith.addf %64, %63 : vector<1x16x128xf32>
      %66 = arith.mulf %58, %65 : vector<1x16x128xf32>
      %c1_i32_61 = arith.constant 1 : i32
      %67 = arith.addi %36, %c1_i32_61 : i32
      %68 = arith.truncf %66 : vector<1x16x128xf32> to vector<1x16x128xbf16>
      %c0_62 = arith.constant 0 : index
      %c0_63 = arith.constant 0 : index
      %c128_64 = arith.constant 128 : index
      %69 = vector.load %arg7[%c0_62, %c0_63, %c128_64] : memref<1x16x384xbf16, #tpu.memory_space<vmem>>, vector<1x16x128xbf16>
      tpu.vector_store %arg7[%c0_62, %c0_63, %c128_64], %68 {strides = array<i32>} : memref<1x16x384xbf16, #tpu.memory_space<vmem>>, vector<1x16x128xbf16>,
      %cst_65 = arith.constant 0.000000e+00 : bf16
      %70 = vector.broadcast %cst_65 : bf16 to vector<1x1x128xbf16>
      %c0_66 = arith.constant 0 : index
      %c0_67 = arith.constant 0 : index
      %c0_68 = arith.constant 0 : index
      %71 = vector.load %arg7[%c0_66, %c0_67, %c0_68] : memref<1x16x384xbf16, #tpu.memory_space<vmem>>, vector<1x1x128xbf16>
      tpu.vector_store %arg7[%c0_66, %c0_67, %c0_68], %70 {strides = array<i32>} : memref<1x16x384xbf16, #tpu.memory_space<vmem>>, vector<1x1x128xbf16>,
      %72 = vector.extract_strided_slice %68 {offsets = [0, 0, 0], sizes = [1, 15, 128], strides = [1, 1, 1]} : vector<1x16x128xbf16> to vector<1x15x128xbf16>
      %c0_69 = arith.constant 0 : index
      %c1_70 = arith.constant 1 : index
      %c0_71 = arith.constant 0 : index
      %73 = vector.load %arg7[%c0_69, %c1_70, %c0_71] : memref<1x16x384xbf16, #tpu.memory_space<vmem>>, vector<1x15x128xbf16>
      tpu.vector_store %arg7[%c0_69, %c1_70, %c0_71], %72 {strides = array<i32>} : memref<1x16x384xbf16, #tpu.memory_space<vmem>>, vector<1x15x128xbf16>,
      %74 = vector.extract_strided_slice %68 {offsets = [0, 1, 0], sizes = [1, 15, 128], strides = [1, 1, 1]} : vector<1x16x128xbf16> to vector<1x15x128xbf16>
      %c0_72 = arith.constant 0 : index
      %c0_73 = arith.constant 0 : index
      %c256_74 = arith.constant 256 : index
      %75 = vector.load %arg7[%c0_72, %c0_73, %c256_74] : memref<1x16x384xbf16, #tpu.memory_space<vmem>>, vector<1x15x128xbf16>
      tpu.vector_store %arg7[%c0_72, %c0_73, %c256_74], %74 {strides = array<i32>} : memref<1x16x384xbf16, #tpu.memory_space<vmem>>, vector<1x15x128xbf16>,
      %cst_75 = arith.constant 0.000000e+00 : bf16
      %76 = vector.broadcast %cst_75 : bf16 to vector<1x1x128xbf16>
      %c0_76 = arith.constant 0 : index
      %c15_77 = arith.constant 15 : index
      %c256_78 = arith.constant 256 : index
      %77 = vector.load %arg7[%c0_76, %c15_77, %c256_78] : memref<1x16x384xbf16, #tpu.memory_space<vmem>>, vector<1x1x128xbf16>
      tpu.vector_store %arg7[%c0_76, %c15_77, %c256_78], %76 {strides = array<i32>} : memref<1x16x384xbf16, #tpu.memory_space<vmem>>, vector<1x1x128xbf16>,
      %78 = arith.index_cast %67 : i32 to index
      %c0_79 = arith.constant 0 : index
      %c0_80 = arith.constant 0 : index
      %79 = vector.load %arg2[%78, %c0_79, %c0_80] : memref<13x384x128xbf16, #tpu.memory_space<vmem>>, vector<1x384x128xbf16>
      %80 = vector.shape_cast %79 : vector<1x384x128xbf16> to vector<384x128xbf16>
      %81 = arith.index_cast %67 : i32 to index
      %c0_81 = arith.constant 0 : index
      %82 = vector.load %arg3[%81, %c0_81] : memref<13x128xf32, #tpu.memory_space<vmem>>, vector<1x128xf32>
      %c0_82 = arith.constant 0 : index
      %c0_83 = arith.constant 0 : index
      %c0_84 = arith.constant 0 : index
      %83 = vector.load %arg7[%c0_82, %c0_83, %c0_84] : memref<1x16x384xbf16, #tpu.memory_space<vmem>>, vector<1x16x384xbf16>
      %84 = vector.shape_cast %83 : vector<1x16x384xbf16> to vector<16x384xbf16>
      %cst_85 = arith.constant dense<0.000000e+00> : vector<16x128xf32>
      %85 = tpu.matmul %84, %80, %cst_85 {dimension_numbers = #tpu.dot_dimension_numbers<[1], [0], [0], [1], [0, 0, 1, 1], [], []>} : vector<16x384xbf16>, vector<384x128xbf16>, vector<16x128xf32> -> vector<16x128xf32>
      %86 = vector.broadcast %82 : vector<1x128xf32> to vector<16x128xf32>
      %87 = arith.addf %85, %86 : vector<16x128xf32>
      %88 = vector.shape_cast %87 : vector<16x128xf32> to vector<1x16x128xf32>
      %89 = math.tanh %88 : vector<1x16x128xf32>
      %90 = arith.addf %35, %89 : vector<1x16x128xf32>
      %91 = arith.addf %1, %89 : vector<1x16x128xf32>
      %c2_i32_86 = arith.constant 2 : i32
      %92 = arith.addi %34, %c2_i32_86 : i32
      %93 = arith.truncf %91 : vector<1x16x128xf32> to vector<1x16x128xbf16>
      %c0_87 = arith.constant 0 : index
      %c0_88 = arith.constant 0 : index
      %c128_89 = arith.constant 128 : index
      %94 = vector.load %arg7[%c0_87, %c0_88, %c128_89] : memref<1x16x384xbf16, #tpu.memory_space<vmem>>, vector<1x16x128xbf16>
      tpu.vector_store %arg7[%c0_87, %c0_88, %c128_89], %93 {strides = array<i32>} : memref<1x16x384xbf16, #tpu.memory_space<vmem>>, vector<1x16x128xbf16>,
      %cst_90 = arith.constant 0.000000e+00 : bf16
      %95 = vector.broadcast %cst_90 : bf16 to vector<1x2x128xbf16>
      %c0_91 = arith.constant 0 : index
      %c0_92 = arith.constant 0 : index
      %c0_93 = arith.constant 0 : index
      %96 = vector.load %arg7[%c0_91, %c0_92, %c0_93] : memref<1x16x384xbf16, #tpu.memory_space<vmem>>, vector<1x2x128xbf16>
      tpu.vector_store %arg7[%c0_91, %c0_92, %c0_93], %95 {strides = array<i32>} : memref<1x16x384xbf16, #tpu.memory_space<vmem>>, vector<1x2x128xbf16>,
      %97 = vector.extract_strided_slice %93 {offsets = [0, 0, 0], sizes = [1, 14, 128], strides = [1, 1, 1]} : vector<1x16x128xbf16> to vector<1x14x128xbf16>
      %c0_94 = arith.constant 0 : index
      %c2 = arith.constant 2 : index
      %c0_95 = arith.constant 0 : index
      %98 = vector.load %arg7[%c0_94, %c2, %c0_95] : memref<1x16x384xbf16, #tpu.memory_space<vmem>>, vector<1x14x128xbf16>
      tpu.vector_store %arg7[%c0_94, %c2, %c0_95], %97 {strides = array<i32>} : memref<1x16x384xbf16, #tpu.memory_space<vmem>>, vector<1x14x128xbf16>,
      %99 = vector.extract_strided_slice %93 {offsets = [0, 2, 0], sizes = [1, 14, 128], strides = [1, 1, 1]} : vector<1x16x128xbf16> to vector<1x14x128xbf16>
      %c0_96 = arith.constant 0 : index
      %c0_97 = arith.constant 0 : index
      %c256_98 = arith.constant 256 : index
      %100 = vector.load %arg7[%c0_96, %c0_97, %c256_98] : memref<1x16x384xbf16, #tpu.memory_space<vmem>>, vector<1x14x128xbf16>
      tpu.vector_store %arg7[%c0_96, %c0_97, %c256_98], %99 {strides = array<i32>} : memref<1x16x384xbf16, #tpu.memory_space<vmem>>, vector<1x14x128xbf16>,
      %cst_99 = arith.constant 0.000000e+00 : bf16
      %101 = vector.broadcast %cst_99 : bf16 to vector<1x2x128xbf16>
      %c0_100 = arith.constant 0 : index
      %c14 = arith.constant 14 : index
      %c256_101 = arith.constant 256 : index
      %102 = vector.load %arg7[%c0_100, %c14, %c256_101] : memref<1x16x384xbf16, #tpu.memory_space<vmem>>, vector<1x2x128xbf16>
      tpu.vector_store %arg7[%c0_100, %c14, %c256_101], %101 {strides = array<i32>} : memref<1x16x384xbf16, #tpu.memory_space<vmem>>, vector<1x2x128xbf16>,
      %103 = arith.index_cast %92 : i32 to index
      %c0_102 = arith.constant 0 : index
      %c0_103 = arith.constant 0 : index
      %104 = vector.load %arg2[%103, %c0_102, %c0_103] : memref<13x384x128xbf16, #tpu.memory_space<vmem>>, vector<1x384x128xbf16>
      %105 = vector.shape_cast %104 : vector<1x384x128xbf16> to vector<384x128xbf16>
      %106 = arith.index_cast %92 : i32 to index
      %c0_104 = arith.constant 0 : index
      %107 = vector.load %arg3[%106, %c0_104] : memref<13x128xf32, #tpu.memory_space<vmem>>, vector<1x128xf32>
      %c0_105 = arith.constant 0 : index
      %c0_106 = arith.constant 0 : index
      %c0_107 = arith.constant 0 : index
      %108 = vector.load %arg7[%c0_105, %c0_106, %c0_107] : memref<1x16x384xbf16, #tpu.memory_space<vmem>>, vector<1x16x384xbf16>
      %109 = vector.shape_cast %108 : vector<1x16x384xbf16> to vector<16x384xbf16>
      %cst_108 = arith.constant dense<0.000000e+00> : vector<16x128xf32>
      %110 = tpu.matmul %109, %105, %cst_108 {dimension_numbers = #tpu.dot_dimension_numbers<[1], [0], [0], [1], [0, 0, 1, 1], [], []>} : vector<16x384xbf16>, vector<384x128xbf16>, vector<16x128xf32> -> vector<16x128xf32>
      %111 = vector.broadcast %107 : vector<1x128xf32> to vector<16x128xf32>
      %112 = arith.addf %110, %111 : vector<16x128xf32>
      %113 = vector.shape_cast %112 : vector<16x128xf32> to vector<1x16x128xf32>
      %114 = math.tanh %113 : vector<1x16x128xf32>
      %cst_109 = arith.constant 5.000000e-01 : f32
      %115 = vector.broadcast %cst_109 : f32 to vector<1x16x128xf32>
      %116 = arith.mulf %115, %113 : vector<1x16x128xf32>
      %117 = math.tanh %116 : vector<1x16x128xf32>
      %cst_110 = arith.constant 5.000000e-01 : f32
      %118 = vector.broadcast %cst_110 : f32 to vector<1x16x128xf32>
      %119 = arith.mulf %118, %117 : vector<1x16x128xf32>
      %cst_111 = arith.constant 5.000000e-01 : f32
      %120 = vector.broadcast %cst_111 : f32 to vector<1x16x128xf32>
      %121 = arith.addf %120, %119 : vector<1x16x128xf32>
      %122 = arith.mulf %114, %121 : vector<1x16x128xf32>
      %c1_i32_112 = arith.constant 1 : i32
      %123 = arith.addi %92, %c1_i32_112 : i32
      %124 = arith.truncf %122 : vector<1x16x128xf32> to vector<1x16x128xbf16>
      %c0_113 = arith.constant 0 : index
      %c0_114 = arith.constant 0 : index
      %c128_115 = arith.constant 128 : index
      %125 = vector.load %arg7[%c0_113, %c0_114, %c128_115] : memref<1x16x384xbf16, #tpu.memory_space<vmem>>, vector<1x16x128xbf16>
      tpu.vector_store %arg7[%c0_113, %c0_114, %c128_115], %124 {strides = array<i32>} : memref<1x16x384xbf16, #tpu.memory_space<vmem>>, vector<1x16x128xbf16>,
      %cst_116 = arith.constant 0.000000e+00 : bf16
      %126 = vector.broadcast %cst_116 : bf16 to vector<1x1x128xbf16>
      %c0_117 = arith.constant 0 : index
      %c0_118 = arith.constant 0 : index
      %c0_119 = arith.constant 0 : index
      %127 = vector.load %arg7[%c0_117, %c0_118, %c0_119] : memref<1x16x384xbf16, #tpu.memory_space<vmem>>, vector<1x1x128xbf16>
      tpu.vector_store %arg7[%c0_117, %c0_118, %c0_119], %126 {strides = array<i32>} : memref<1x16x384xbf16, #tpu.memory_space<vmem>>, vector<1x1x128xbf16>,
      %128 = vector.extract_strided_slice %124 {offsets = [0, 0, 0], sizes = [1, 15, 128], strides = [1, 1, 1]} : vector<1x16x128xbf16> to vector<1x15x128xbf16>
      %c0_120 = arith.constant 0 : index
      %c1_121 = arith.constant 1 : index
      %c0_122 = arith.constant 0 : index
      %129 = vector.load %arg7[%c0_120, %c1_121, %c0_122] : memref<1x16x384xbf16, #tpu.memory_space<vmem>>, vector<1x15x128xbf16>
      tpu.vector_store %arg7[%c0_120, %c1_121, %c0_122], %128 {strides = array<i32>} : memref<1x16x384xbf16, #tpu.memory_space<vmem>>, vector<1x15x128xbf16>,
      %130 = vector.extract_strided_slice %124 {offsets = [0, 1, 0], sizes = [1, 15, 128], strides = [1, 1, 1]} : vector<1x16x128xbf16> to vector<1x15x128xbf16>
      %c0_123 = arith.constant 0 : index
      %c0_124 = arith.constant 0 : index
      %c256_125 = arith.constant 256 : index
      %131 = vector.load %arg7[%c0_123, %c0_124, %c256_125] : memref<1x16x384xbf16, #tpu.memory_space<vmem>>, vector<1x15x128xbf16>
      tpu.vector_store %arg7[%c0_123, %c0_124, %c256_125], %130 {strides = array<i32>} : memref<1x16x384xbf16, #tpu.memory_space<vmem>>, vector<1x15x128xbf16>,
      %cst_126 = arith.constant 0.000000e+00 : bf16
      %132 = vector.broadcast %cst_126 : bf16 to vector<1x1x128xbf16>
      %c0_127 = arith.constant 0 : index
      %c15_128 = arith.constant 15 : index
      %c256_129 = arith.constant 256 : index
      %133 = vector.load %arg7[%c0_127, %c15_128, %c256_129] : memref<1x16x384xbf16, #tpu.memory_space<vmem>>, vector<1x1x128xbf16>
      tpu.vector_store %arg7[%c0_127, %c15_128, %c256_129], %132 {strides = array<i32>} : memref<1x16x384xbf16, #tpu.memory_space<vmem>>, vector<1x1x128xbf16>,
      %134 = arith.index_cast %123 : i32 to index
      %c0_130 = arith.constant 0 : index
      %c0_131 = arith.constant 0 : index
      %135 = vector.load %arg2[%134, %c0_130, %c0_131] : memref<13x384x128xbf16, #tpu.memory_space<vmem>>, vector<1x384x128xbf16>
      %136 = vector.shape_cast %135 : vector<1x384x128xbf16> to vector<384x128xbf16>
      %137 = arith.index_cast %123 : i32 to index
      %c0_132 = arith.constant 0 : index
      %138 = vector.load %arg3[%137, %c0_132] : memref<13x128xf32, #tpu.memory_space<vmem>>, vector<1x128xf32>
      %c0_133 = arith.constant 0 : index
      %c0_134 = arith.constant 0 : index
      %c0_135 = arith.constant 0 : index
      %139 = vector.load %arg7[%c0_133, %c0_134, %c0_135] : memref<1x16x384xbf16, #tpu.memory_space<vmem>>, vector<1x16x384xbf16>
      %140 = vector.shape_cast %139 : vector<1x16x384xbf16> to vector<16x384xbf16>
      %cst_136 = arith.constant dense<0.000000e+00> : vector<16x128xf32>
      %141 = tpu.matmul %140, %136, %cst_136 {dimension_numbers = #tpu.dot_dimension_numbers<[1], [0], [0], [1], [0, 0, 1, 1], [], []>} : vector<16x384xbf16>, vector<384x128xbf16>, vector<16x128xf32> -> vector<16x128xf32>
      %142 = vector.broadcast %138 : vector<1x128xf32> to vector<16x128xf32>
      %143 = arith.addf %141, %142 : vector<16x128xf32>
      %144 = vector.shape_cast %143 : vector<16x128xf32> to vector<1x16x128xf32>
      %145 = math.tanh %144 : vector<1x16x128xf32>
      %146 = arith.addf %90, %145 : vector<1x16x128xf32>
      %147 = arith.addf %91, %145 : vector<1x16x128xf32>
      %c4_i32 = arith.constant 4 : i32
      %148 = arith.addi %34, %c4_i32 : i32
      %149 = arith.truncf %147 : vector<1x16x128xf32> to vector<1x16x128xbf16>
      %c0_137 = arith.constant 0 : index
      %c0_138 = arith.constant 0 : index
      %c128_139 = arith.constant 128 : index
      %150 = vector.load %arg7[%c0_137, %c0_138, %c128_139] : memref<1x16x384xbf16, #tpu.memory_space<vmem>>, vector<1x16x128xbf16>
      tpu.vector_store %arg7[%c0_137, %c0_138, %c128_139], %149 {strides = array<i32>} : memref<1x16x384xbf16, #tpu.memory_space<vmem>>, vector<1x16x128xbf16>,
      %cst_140 = arith.constant 0.000000e+00 : bf16
      %151 = vector.broadcast %cst_140 : bf16 to vector<1x4x128xbf16>
      %c0_141 = arith.constant 0 : index
      %c0_142 = arith.constant 0 : index
      %c0_143 = arith.constant 0 : index
      %152 = vector.load %arg7[%c0_141, %c0_142, %c0_143] : memref<1x16x384xbf16, #tpu.memory_space<vmem>>, vector<1x4x128xbf16>
      tpu.vector_store %arg7[%c0_141, %c0_142, %c0_143], %151 {strides = array<i32>} : memref<1x16x384xbf16, #tpu.memory_space<vmem>>, vector<1x4x128xbf16>,
      %153 = vector.extract_strided_slice %149 {offsets = [0, 0, 0], sizes = [1, 12, 128], strides = [1, 1, 1]} : vector<1x16x128xbf16> to vector<1x12x128xbf16>
      %c0_144 = arith.constant 0 : index
      %c4 = arith.constant 4 : index
      %c0_145 = arith.constant 0 : index
      %154 = vector.load %arg7[%c0_144, %c4, %c0_145] : memref<1x16x384xbf16, #tpu.memory_space<vmem>>, vector<1x12x128xbf16>
      tpu.vector_store %arg7[%c0_144, %c4, %c0_145], %153 {strides = array<i32>} : memref<1x16x384xbf16, #tpu.memory_space<vmem>>, vector<1x12x128xbf16>,
      %155 = vector.extract_strided_slice %149 {offsets = [0, 4, 0], sizes = [1, 12, 128], strides = [1, 1, 1]} : vector<1x16x128xbf16> to vector<1x12x128xbf16>
      %c0_146 = arith.constant 0 : index
      %c0_147 = arith.constant 0 : index
      %c256_148 = arith.constant 256 : index
      %156 = vector.load %arg7[%c0_146, %c0_147, %c256_148] : memref<1x16x384xbf16, #tpu.memory_space<vmem>>, vector<1x12x128xbf16>
      tpu.vector_store %arg7[%c0_146, %c0_147, %c256_148], %155 {strides = array<i32>} : memref<1x16x384xbf16, #tpu.memory_space<vmem>>, vector<1x12x128xbf16>,
      %cst_149 = arith.constant 0.000000e+00 : bf16
      %157 = vector.broadcast %cst_149 : bf16 to vector<1x4x128xbf16>
      %c0_150 = arith.constant 0 : index
      %c12_151 = arith.constant 12 : index
      %c256_152 = arith.constant 256 : index
      %158 = vector.load %arg7[%c0_150, %c12_151, %c256_152] : memref<1x16x384xbf16, #tpu.memory_space<vmem>>, vector<1x4x128xbf16>
      tpu.vector_store %arg7[%c0_150, %c12_151, %c256_152], %157 {strides = array<i32>} : memref<1x16x384xbf16, #tpu.memory_space<vmem>>, vector<1x4x128xbf16>,
      %159 = arith.index_cast %148 : i32 to index
      %c0_153 = arith.constant 0 : index
      %c0_154 = arith.constant 0 : index
      %160 = vector.load %arg2[%159, %c0_153, %c0_154] : memref<13x384x128xbf16, #tpu.memory_space<vmem>>, vector<1x384x128xbf16>
      %161 = vector.shape_cast %160 : vector<1x384x128xbf16> to vector<384x128xbf16>
      %162 = arith.index_cast %148 : i32 to index
      %c0_155 = arith.constant 0 : index
      %163 = vector.load %arg3[%162, %c0_155] : memref<13x128xf32, #tpu.memory_space<vmem>>, vector<1x128xf32>
      %c0_156 = arith.constant 0 : index
      %c0_157 = arith.constant 0 : index
      %c0_158 = arith.constant 0 : index
      %164 = vector.load %arg7[%c0_156, %c0_157, %c0_158] : memref<1x16x384xbf16, #tpu.memory_space<vmem>>, vector<1x16x384xbf16>
      %165 = vector.shape_cast %164 : vector<1x16x384xbf16> to vector<16x384xbf16>
      %cst_159 = arith.constant dense<0.000000e+00> : vector<16x128xf32>
      %166 = tpu.matmul %165, %161, %cst_159 {dimension_numbers = #tpu.dot_dimension_numbers<[1], [0], [0], [1], [0, 0, 1, 1], [], []>} : vector<16x384xbf16>, vector<384x128xbf16>, vector<16x128xf32> -> vector<16x128xf32>
      %167 = vector.broadcast %163 : vector<1x128xf32> to vector<16x128xf32>
      %168 = arith.addf %166, %167 : vector<16x128xf32>
      %169 = vector.shape_cast %168 : vector<16x128xf32> to vector<1x16x128xf32>
      %170 = math.tanh %169 : vector<1x16x128xf32>
      %cst_160 = arith.constant 5.000000e-01 : f32
      %171 = vector.broadcast %cst_160 : f32 to vector<1x16x128xf32>
      %172 = arith.mulf %171, %169 : vector<1x16x128xf32>
      %173 = math.tanh %172 : vector<1x16x128xf32>
      %cst_161 = arith.constant 5.000000e-01 : f32
      %174 = vector.broadcast %cst_161 : f32 to vector<1x16x128xf32>
      %175 = arith.mulf %174, %173 : vector<1x16x128xf32>
      %cst_162 = arith.constant 5.000000e-01 : f32
      %176 = vector.broadcast %cst_162 : f32 to vector<1x16x128xf32>
      %177 = arith.addf %176, %175 : vector<1x16x128xf32>
      %178 = arith.mulf %170, %177 : vector<1x16x128xf32>
      %c1_i32_163 = arith.constant 1 : i32
      %179 = arith.addi %148, %c1_i32_163 : i32
      %180 = arith.truncf %178 : vector<1x16x128xf32> to vector<1x16x128xbf16>
      %c0_164 = arith.constant 0 : index
      %c0_165 = arith.constant 0 : index
      %c128_166 = arith.constant 128 : index
      %181 = vector.load %arg7[%c0_164, %c0_165, %c128_166] : memref<1x16x384xbf16, #tpu.memory_space<vmem>>, vector<1x16x128xbf16>
      tpu.vector_store %arg7[%c0_164, %c0_165, %c128_166], %180 {strides = array<i32>} : memref<1x16x384xbf16, #tpu.memory_space<vmem>>, vector<1x16x128xbf16>,
      %cst_167 = arith.constant 0.000000e+00 : bf16
      %182 = vector.broadcast %cst_167 : bf16 to vector<1x1x128xbf16>
      %c0_168 = arith.constant 0 : index
      %c0_169 = arith.constant 0 : index
      %c0_170 = arith.constant 0 : index
      %183 = vector.load %arg7[%c0_168, %c0_169, %c0_170] : memref<1x16x384xbf16, #tpu.memory_space<vmem>>, vector<1x1x128xbf16>
      tpu.vector_store %arg7[%c0_168, %c0_169, %c0_170], %182 {strides = array<i32>} : memref<1x16x384xbf16, #tpu.memory_space<vmem>>, vector<1x1x128xbf16>,
      %184 = vector.extract_strided_slice %180 {offsets = [0, 0, 0], sizes = [1, 15, 128], strides = [1, 1, 1]} : vector<1x16x128xbf16> to vector<1x15x128xbf16>
      %c0_171 = arith.constant 0 : index
      %c1_172 = arith.constant 1 : index
      %c0_173 = arith.constant 0 : index
      %185 = vector.load %arg7[%c0_171, %c1_172, %c0_173] : memref<1x16x384xbf16, #tpu.memory_space<vmem>>, vector<1x15x128xbf16>
      tpu.vector_store %arg7[%c0_171, %c1_172, %c0_173], %184 {strides = array<i32>} : memref<1x16x384xbf16, #tpu.memory_space<vmem>>, vector<1x15x128xbf16>,
      %186 = vector.extract_strided_slice %180 {offsets = [0, 1, 0], sizes = [1, 15, 128], strides = [1, 1, 1]} : vector<1x16x128xbf16> to vector<1x15x128xbf16>
      %c0_174 = arith.constant 0 : index
      %c0_175 = arith.constant 0 : index
      %c256_176 = arith.constant 256 : index
      %187 = vector.load %arg7[%c0_174, %c0_175, %c256_176] : memref<1x16x384xbf16, #tpu.memory_space<vmem>>, vector<1x15x128xbf16>
      tpu.vector_store %arg7[%c0_174, %c0_175, %c256_176], %186 {strides = array<i32>} : memref<1x16x384xbf16, #tpu.memory_space<vmem>>, vector<1x15x128xbf16>,
      %cst_177 = arith.constant 0.000000e+00 : bf16
      %188 = vector.broadcast %cst_177 : bf16 to vector<1x1x128xbf16>
      %c0_178 = arith.constant 0 : index
      %c15_179 = arith.constant 15 : index
      %c256_180 = arith.constant 256 : index
      %189 = vector.load %arg7[%c0_178, %c15_179, %c256_180] : memref<1x16x384xbf16, #tpu.memory_space<vmem>>, vector<1x1x128xbf16>
      tpu.vector_store %arg7[%c0_178, %c15_179, %c256_180], %188 {strides = array<i32>} : memref<1x16x384xbf16, #tpu.memory_space<vmem>>, vector<1x1x128xbf16>,
      %190 = arith.index_cast %179 : i32 to index
      %c0_181 = arith.constant 0 : index
      %c0_182 = arith.constant 0 : index
      %191 = vector.load %arg2[%190, %c0_181, %c0_182] : memref<13x384x128xbf16, #tpu.memory_space<vmem>>, vector<1x384x128xbf16>
      %192 = vector.shape_cast %191 : vector<1x384x128xbf16> to vector<384x128xbf16>
      %193 = arith.index_cast %179 : i32 to index
      %c0_183 = arith.constant 0 : index
      %194 = vector.load %arg3[%193, %c0_183] : memref<13x128xf32, #tpu.memory_space<vmem>>, vector<1x128xf32>
      %c0_184 = arith.constant 0 : index
      %c0_185 = arith.constant 0 : index
      %c0_186 = arith.constant 0 : index
      %195 = vector.load %arg7[%c0_184, %c0_185, %c0_186] : memref<1x16x384xbf16, #tpu.memory_space<vmem>>, vector<1x16x384xbf16>
      %196 = vector.shape_cast %195 : vector<1x16x384xbf16> to vector<16x384xbf16>
      %cst_187 = arith.constant dense<0.000000e+00> : vector<16x128xf32>
      %197 = tpu.matmul %196, %192, %cst_187 {dimension_numbers = #tpu.dot_dimension_numbers<[1], [0], [0], [1], [0, 0, 1, 1], [], []>} : vector<16x384xbf16>, vector<384x128xbf16>, vector<16x128xf32> -> vector<16x128xf32>
      %198 = vector.broadcast %194 : vector<1x128xf32> to vector<16x128xf32>
      %199 = arith.addf %197, %198 : vector<16x128xf32>
      %200 = vector.shape_cast %199 : vector<16x128xf32> to vector<1x16x128xf32>
      %201 = math.tanh %200 : vector<1x16x128xf32>
      %202 = arith.addf %146, %201 : vector<1x16x128xf32>
      %203 = arith.addf %arg9, %202 : vector<1x16x128xf32>
      scf.yield %203 : vector<1x16x128xf32>
    }
    %c2_i32_2 = arith.constant 2 : i32
    %5 = arith.truncf %4 : vector<1x16x128xf32> to vector<1x16x128xbf16>
    %c0_3 = arith.constant 0 : index
    %c0_4 = arith.constant 0 : index
    %c128 = arith.constant 128 : index
    %6 = vector.load %arg7[%c0_3, %c0_4, %c128] : memref<1x16x384xbf16, #tpu.memory_space<vmem>>, vector<1x16x128xbf16>
    tpu.vector_store %arg7[%c0_3, %c0_4, %c128], %5 {strides = array<i32>} : memref<1x16x384xbf16, #tpu.memory_space<vmem>>, vector<1x16x128xbf16>,
    %cst_5 = arith.constant 0.000000e+00 : bf16
    %7 = vector.broadcast %cst_5 : bf16 to vector<1x1x128xbf16>
    %c0_6 = arith.constant 0 : index
    %c0_7 = arith.constant 0 : index
    %c0_8 = arith.constant 0 : index
    %8 = vector.load %arg7[%c0_6, %c0_7, %c0_8] : memref<1x16x384xbf16, #tpu.memory_space<vmem>>, vector<1x1x128xbf16>
    tpu.vector_store %arg7[%c0_6, %c0_7, %c0_8], %7 {strides = array<i32>} : memref<1x16x384xbf16, #tpu.memory_space<vmem>>, vector<1x1x128xbf16>,
    %9 = vector.extract_strided_slice %5 {offsets = [0, 0, 0], sizes = [1, 15, 128], strides = [1, 1, 1]} : vector<1x16x128xbf16> to vector<1x15x128xbf16>
    %c0_9 = arith.constant 0 : index
    %c1 = arith.constant 1 : index
    %c0_10 = arith.constant 0 : index
    %10 = vector.load %arg7[%c0_9, %c1, %c0_10] : memref<1x16x384xbf16, #tpu.memory_space<vmem>>, vector<1x15x128xbf16>
    tpu.vector_store %arg7[%c0_9, %c1, %c0_10], %9 {strides = array<i32>} : memref<1x16x384xbf16, #tpu.memory_space<vmem>>, vector<1x15x128xbf16>,
    %11 = vector.extract_strided_slice %5 {offsets = [0, 1, 0], sizes = [1, 15, 128], strides = [1, 1, 1]} : vector<1x16x128xbf16> to vector<1x15x128xbf16>
    %c0_11 = arith.constant 0 : index
    %c0_12 = arith.constant 0 : index
    %c256 = arith.constant 256 : index
    %12 = vector.load %arg7[%c0_11, %c0_12, %c256] : memref<1x16x384xbf16, #tpu.memory_space<vmem>>, vector<1x15x128xbf16>
    tpu.vector_store %arg7[%c0_11, %c0_12, %c256], %11 {strides = array<i32>} : memref<1x16x384xbf16, #tpu.memory_space<vmem>>, vector<1x15x128xbf16>,
    %cst_13 = arith.constant 0.000000e+00 : bf16
    %13 = vector.broadcast %cst_13 : bf16 to vector<1x1x128xbf16>
    %c0_14 = arith.constant 0 : index
    %c15 = arith.constant 15 : index
    %c256_15 = arith.constant 256 : index
    %14 = vector.load %arg7[%c0_14, %c15, %c256_15] : memref<1x16x384xbf16, #tpu.memory_space<vmem>>, vector<1x1x128xbf16>
    tpu.vector_store %arg7[%c0_14, %c15, %c256_15], %13 {strides = array<i32>} : memref<1x16x384xbf16, #tpu.memory_space<vmem>>, vector<1x1x128xbf16>,
    %c12 = arith.constant 12 : index
    %c0_16 = arith.constant 0 : index
    %c0_17 = arith.constant 0 : index
    %15 = vector.load %arg2[%c12, %c0_16, %c0_17] : memref<13x384x128xbf16, #tpu.memory_space<vmem>>, vector<1x384x128xbf16>
    %16 = vector.shape_cast %15 : vector<1x384x128xbf16> to vector<384x128xbf16>
    %c12_18 = arith.constant 12 : index
    %c0_19 = arith.constant 0 : index
    %17 = vector.load %arg3[%c12_18, %c0_19] : memref<13x128xf32, #tpu.memory_space<vmem>>, vector<1x128xf32>
    %c0_20 = arith.constant 0 : index
    %c0_21 = arith.constant 0 : index
    %c0_22 = arith.constant 0 : index
    %18 = vector.load %arg7[%c0_20, %c0_21, %c0_22] : memref<1x16x384xbf16, #tpu.memory_space<vmem>>, vector<1x16x384xbf16>
    %19 = vector.shape_cast %18 : vector<1x16x384xbf16> to vector<16x384xbf16>
    %cst_23 = arith.constant dense<0.000000e+00> : vector<16x128xf32>
    %20 = tpu.matmul %19, %16, %cst_23 {dimension_numbers = #tpu.dot_dimension_numbers<[1], [0], [0], [1], [0, 0, 1, 1], [], []>} : vector<16x384xbf16>, vector<384x128xbf16>, vector<16x128xf32> -> vector<16x128xf32>
    %21 = vector.broadcast %17 : vector<1x128xf32> to vector<16x128xf32>
    %22 = arith.addf %20, %21 : vector<16x128xf32>
    %23 = vector.shape_cast %22 : vector<16x128xf32> to vector<1x16x128xf32>
    %24 = math.tanh %23 : vector<1x16x128xf32>
    %25 = vector.shape_cast %24 : vector<1x16x128xf32> to vector<16x128xf32>
    %26 = arith.truncf %25 : vector<16x128xf32> to vector<16x128xbf16>
    %c0_24 = arith.constant 0 : index
    %c0_25 = arith.constant 0 : index
    %27 = vector.load %arg4[%c0_24, %c0_25] : memref<128x128xbf16, #tpu.memory_space<vmem>>, vector<128x128xbf16>
    %cst_26 = arith.constant dense<0.000000e+00> : vector<16x128xf32>
    %28 = tpu.matmul %26, %27, %cst_26 {dimension_numbers = #tpu.dot_dimension_numbers<[1], [0], [0], [1], [0, 0, 1, 1], [], []>} : vector<16x128xbf16>, vector<128x128xbf16>, vector<16x128xf32> -> vector<16x128xf32>
    %c0_27 = arith.constant 0 : index
    %c0_28 = arith.constant 0 : index
    %29 = vector.load %arg5[%c0_27, %c0_28] : memref<1x128xf32, #tpu.memory_space<vmem>>, vector<1x128xf32>
    %30 = vector.broadcast %29 : vector<1x128xf32> to vector<16x128xf32>
    %31 = arith.addf %28, %30 : vector<16x128xf32>
    %32 = vector.shape_cast %31 : vector<16x128xf32> to vector<1x16x128xf32>
    %c0_29 = arith.constant 0 : index
    %c0_30 = arith.constant 0 : index
    %c0_31 = arith.constant 0 : index
    %33 = vector.load %arg6[%c0_29, %c0_30, %c0_31] : memref<1x16x128xf32, #tpu.memory_space<vmem>>, vector<1x16x128xf32>
    tpu.vector_store %arg6[%c0_29, %c0_30, %c0_31], %32 {strides = array<i32>} : memref<1x16x128xf32, #tpu.memory_space<vmem>>, vector<1x16x128xf32>,
    return
  }
  func.func @transform_0(%arg0: i32) -> (i32, i32, i32) {
    %c0_i32 = arith.constant 0 : i32
    %c0_i32_0 = arith.constant 0 : i32
    %c0_i32_1 = arith.constant 0 : i32
    return %arg0, %c0_i32, %c0_i32_0 : i32, i32, i32
  }
  func.func @transform_1(%arg0: i32) -> (i32, i32, i32) {
    %c0_i32 = arith.constant 0 : i32
    %c0_i32_0 = arith.constant 0 : i32
    %c0_i32_1 = arith.constant 0 : i32
    %c0_i32_2 = arith.constant 0 : i32
    return %c0_i32, %c0_i32_0, %c0_i32_1 : i32, i32, i32
  }
  func.func @transform_2(%arg0: i32) -> (i32, i32) {
    %c0_i32 = arith.constant 0 : i32
    %c0_i32_0 = arith.constant 0 : i32
    %c0_i32_1 = arith.constant 0 : i32
    return %c0_i32, %c0_i32_0 : i32, i32
  }
  func.func @transform_3(%arg0: i32) -> (i32, i32) {
    %c0_i32 = arith.constant 0 : i32
    %c0_i32_0 = arith.constant 0 : i32
    %c0_i32_1 = arith.constant 0 : i32
    return %c0_i32, %c0_i32_0 : i32, i32
  }
  func.func @transform_4(%arg0: i32) -> (i32, i32) {
    %c0_i32 = arith.constant 0 : i32
    %c0_i32_0 = arith.constant 0 : i32
    %c0_i32_1 = arith.constant 0 : i32
    return %c0_i32, %c0_i32_0 : i32, i32
  }
  func.func @transform_5(%arg0: i32) -> (i32, i32, i32) {
    %c0_i32 = arith.constant 0 : i32
    %c0_i32_0 = arith.constant 0 : i32
    %c0_i32_1 = arith.constant 0 : i32
    return %arg0, %c0_i32, %c0_i32_0 : i32, i32, i32
  }
}

</mosaic_0001>

<llo_original>
// kernel: tpu_custom_call.1
$region0: #{tpu_custom_call.1}
  #allocation0 [shape = 'u32[]', space=smem, size = 0x4, offset = 0x4, fixed_abs, tag = 'smem constant byte address 0x4 - core index']
  #allocation1 [shape = 'u32[144,128]{1,0:T(1,128)}', space=vmem, size = 0x12000, scoped, tag = 'internal scratch']
  #allocation2 [shape = 'bf16[1,16,384]{2,1,0:T(16,128)(2,1)}', space=vmem, size = 0x3000, scoped, tag = 'scratch operand']
  %s0 = inlined_call_operand.hbm [shape: bf16[2,16,128], index: 0, kind: input, shape index: {}]
  %s1 = inlined_call_operand.hbm [shape: bf16[13,384,128], index: 1, kind: input, shape index: {}]
  %s2 = inlined_call_operand.hbm [shape: f32[13,128], index: 2, kind: input, shape index: {}]
  %s3 = inlined_call_operand.hbm [shape: bf16[128,128], index: 3, kind: input, shape index: {}]
  %s4 = inlined_call_operand.hbm [shape: f32[1,128], index: 4, kind: input, shape index: {}]
  %s5 = inlined_call_operand.hbm [shape: f32[2,16,128], index: 5, kind: output, shape index: {}]
  %s6 = sld [smem:[#allocation0]]
  $region80: #{tpu_custom_call.1} parent=0
    _
  %s8 = ssub.s32 1, %s6
  %s9 = scalar_select 0, %s8, %s6
  $region1: #{tpu_custom_call.1} parent=0
    #allocation3 [shape = 'u8[8192]{0}', space=vmem, size = 0x2000, scoped, tag = 'input window, operand 0']
    #allocation4 [shape = 's32[2]{0}', space=sflag, size = 0x8, scoped, tag = 'scoped memory for tpu_custom_call.1']
    #allocation5 [shape = 's32[2]{0}', space=sflag, size = 0x8, scoped, tag = 'scoped memory for tpu_custom_call.1']
    #allocation6 [shape = 'u8[1277952]{0}', space=vmem, size = 0x138000, scoped, tag = 'input window, operand 1, single buffered']
    #allocation7 [shape = 's32[1]{0}', space=sflag, size = 0x4, scoped, tag = 'scoped memory for tpu_custom_call.1']
    #allocation8 [shape = 'u8[8192]{0}', space=vmem, size = 0x2000, scoped, tag = 'input window, operand 2, single buffered']
    #allocation9 [shape = 'u8[32768]{0}', space=vmem, size = 0x8000, scoped, tag = 'input window, operand 3, single buffered']
    #allocation10 [shape = 's32[1]{0}', space=sflag, size = 0x4, scoped, tag = 'scoped memory for tpu_custom_call.1']
    #allocation11 [shape = 'u8[512]{0}', space=vmem, size = 0x400, scoped, tag = 'input window, operand 4, single buffered']
    #allocation12 [shape = 'u8[16384]{0}', space=vmem, size = 0x4000, scoped, tag = 'output window, operand 0']
    %10 = vsyncpa [#allocation4], 0
    %s11 = scalar_lea.sflag [#allocation4], 1
    %12 = vsyncpa %s11, 0
    %13 = vsyncpa [#allocation7], 0
    %14 = vsyncpa [#allocation10], 0
    %15 = vsyncpa [#allocation5], 0
    %s16 = scalar_lea.sflag [#allocation5], 1
    %17 = vsyncpa %s16, 0
    loop: start=0, step=1, limit=4
    $region2: #{tpu_custom_call.1} parent=1 // loop_pre_header
      _
    $region3: #{tpu_custom_call.1} parent=1 // loop_header
      %s19 = sphi 0, %s23
      %p20 = scmp.ge.s32.totalorder %s19, 4
      %s29 = sphi 0, %s31
      %s32 = sphi 0, %s29
      %s33 = sphi 0, %s32
      %s49 = sphi 0, %s33
      %s53 = sphi 0, %s53
      %s55 = sphi 0, %s53
      %s56 = sphi 0, %s55
      %s70 = sphi 0, %s56
      %s74 = sphi 0, %s74
      %s76 = sphi 0, %s74
      %s77 = sphi 0, %s76
      %s91 = sphi 0, %s77
      %s95 = sphi 0, %s95
      %s97 = sphi 0, %s95
      %s98 = sphi 0, %s97
      %s112 = sphi 0, %s98
      %s116 = sphi 0, %s116
      %s118 = sphi 0, %s116
      %s119 = sphi 0, %s118
      %s133 = sphi 0, %s119
      %s139 = sphi 0, %s141
      %s142 = sphi 0, %s139
      %s143 = sphi 0, %s142
      %s159 = sphi 0, %s143
    $region4: #{tpu_custom_call.1} parent=1 // loop_header_branch
      %22 = sbr.rel (%p20) target = $region8
    $region5: #{tpu_custom_call.1} parent=1 // loop_body
      %s24 = ssub.s32 %s19, 1
      %s25 = ssub.s32 %s19, 2
      %s26 = sadd.s32 %s19, 1
      %s27 = ssub.s32 %s19, %s26
      %p28 = scmp.eq.s32.totalorder %s27, 0
      %s30 = sadd.s32 %s29, 1
      %s31 = scalar_select %p28, %s29, %s30
      %p34 = pneg %p28
      %p35 = scmp.eq.s32.totalorder %s19, 1
      %p36 = por %p34, %p35
      %p37 = scmp.ne.s32.totalorder %s29, %s32
      %p38 = scmp.eq.s32.totalorder %s19, 0
      %p39 = por %p37, %p38
      %p40 = scmp.ne.s32.totalorder %s29, %s32
      %p41 = scmp.eq.s32.totalorder %s24, 1
      %p42 = por %p40, %p41
      %p43 = scmp.ne.s32.totalorder %s32, %s33
      %p44 = scmp.eq.s32.totalorder %s24, 0
      %p45 = por %p43, %p44
      %p46 = scmp.ne.s32.totalorder %s32, %s33
      %p47 = scmp.eq.s32.totalorder %s25, 1
      %p48 = por %p46, %p47
      %p50 = scmp.ne.s32.totalorder %s33, %s49
      %p51 = scmp.eq.s32.totalorder %s25, 0
      %p52 = por %p50, %p51
      %s54 = sadd.s32 %s53, 1
      %p57 = scmp.eq.s32.totalorder %s19, 1
      %p58 = scmp.ne.s32.totalorder %s53, %s55
      %p59 = scmp.eq.s32.totalorder %s19, 0
      %p60 = por %p58, %p59
      %p61 = scmp.ne.s32.totalorder %s53, %s55
      %p62 = scmp.eq.s32.totalorder %s24, 1
      %p63 = por %p61, %p62
      %p64 = scmp.ne.s32.totalorder %s55, %s56
      %p65 = scmp.eq.s32.totalorder %s24, 0
      %p66 = por %p64, %p65
      %p67 = scmp.ne.s32.totalorder %s55, %s56
      %p68 = scmp.eq.s32.totalorder %s25, 1
      %p69 = por %p67, %p68
      %p71 = scmp.ne.s32.totalorder %s56, %s70
      %p72 = scmp.eq.s32.totalorder %s25, 0
      %p73 = por %p71, %p72
      %s75 = sadd.s32 %s74, 1
      %p78 = scmp.eq.s32.totalorder %s19, 1
      %p79 = scmp.ne.s32.totalorder %s74, %s76
      %p80 = scmp.eq.s32.totalorder %s19, 0
      %p81 = por %p79, %p80
      %p82 = scmp.ne.s32.totalorder %s74, %s76
      %p83 = scmp.eq.s32.totalorder %s24, 1
      %p84 = por %p82, %p83
      %p85 = scmp.ne.s32.totalorder %s76, %s77
      %p86 = scmp.eq.s32.totalorder %s24, 0
      %p87 = por %p85, %p86
      %p88 = scmp.ne.s32.totalorder %s76, %s77
      %p89 = scmp.eq.s32.totalorder %s25, 1
      %p90 = por %p88, %p89
      %p92 = scmp.ne.s32.totalorder %s77, %s91
      %p93 = scmp.eq.s32.totalorder %s25, 0
      %p94 = por %p92, %p93
      %s96 = sadd.s32 %s95, 1
      %p99 = scmp.eq.s32.totalorder %s19, 1
      %p100 = scmp.ne.s32.totalorder %s95, %s97
      %p101 = scmp.eq.s32.totalorder %s19, 0
      %p102 = por %p100, %p101
      %p103 = scmp.ne.s32.totalorder %s95, %s97
      %p104 = scmp.eq.s32.totalorder %s24, 1
      %p105 = por %p103, %p104
      %p106 = scmp.ne.s32.totalorder %s97, %s98
      %p107 = scmp.eq.s32.totalorder %s24, 0
      %p108 = por %p106, %p107
      %p109 = scmp.ne.s32.totalorder %s97, %s98
      %p110 = scmp.eq.s32.totalorder %s25, 1
      %p111 = por %p109, %p110
      %p113 = scmp.ne.s32.totalorder %s98, %s112
      %p114 = scmp.eq.s32.totalorder %s25, 0
      %p115 = por %p113, %p114
      %s117 = sadd.s32 %s116, 1
      %p120 = scmp.eq.s32.totalorder %s19, 1
      %p121 = scmp.ne.s32.totalorder %s116, %s118
      %p122 = scmp.eq.s32.totalorder %s19, 0
      %p123 = por %p121, %p122
      %p124 = scmp.ne.s32.totalorder %s116, %s118
      %p125 = scmp.eq.s32.totalorder %s24, 1
      %p126 = por %p124, %p125
      %p127 = scmp.ne.s32.totalorder %s118, %s119
      %p128 = scmp.eq.s32.totalorder %s24, 0
      %p129 = por %p127, %p128
      %p130 = scmp.ne.s32.totalorder %s118, %s119
      %p131 = scmp.eq.s32.totalorder %s25, 1
      %p132 = por %p130, %p131
      %p134 = scmp.ne.s32.totalorder %s119, %s133
      %p135 = scmp.eq.s32.totalorder %s25, 0
      %p136 = por %p134, %p135
      %s137 = ssub.s32 %s19, %s26
      %p138 = scmp.eq.s32.totalorder %s137, 0
      %s140 = sadd.s32 %s139, 1
      %s141 = scalar_select %p138, %s139, %s140
      %p144 = pneg %p138
      %p145 = scmp.eq.s32.totalorder %s19, 1
      %p146 = por %p144, %p145
      %p147 = scmp.ne.s32.totalorder %s139, %s142
      %p148 = scmp.eq.s32.totalorder %s19, 0
      %p149 = por %p147, %p148
      %p150 = scmp.ne.s32.totalorder %s139, %s142
      %p151 = scmp.eq.s32.totalorder %s24, 1
      %p152 = por %p150, %p151
      %p153 = scmp.ne.s32.totalorder %s142, %s143
      %p154 = scmp.eq.s32.totalorder %s24, 0
      %p155 = por %p153, %p154
      %p156 = scmp.ne.s32.totalorder %s142, %s143
      %p157 = scmp.eq.s32.totalorder %s25, 1
      %p158 = por %p156, %p157
      %p160 = scmp.ne.s32.totalorder %s143, %s159
      %p161 = scmp.eq.s32.totalorder %s25, 0
      %p162 = por %p160, %p161
      %p163 = scmp.le.s32.totalorder 1, %s19
      %p164 = scmp.lt.s32.totalorder %s19, 3
      %p165 = pnand %p163, %p164
      %p166 = pneg %p165
      // Predicated region
      $region9: #{tpu_custom_call.1} parent=5 // pred_check
        _
      $region10: #{tpu_custom_call.1} parent=5 // pred_check_branch
        %168 = sbr.rel (%p165) target = $region12
      $region11: #{tpu_custom_call.1} parent=5 // pred_region
        %s169 = ssub.s32 %s19, 1
        // Predicated region
        $region13: #{tpu_custom_call.1} parent=11 // pred_check
          %p170 = pneg %p66
        $region14: #{tpu_custom_call.1} parent=11 // pred_check_branch
          %172 = sbr.rel (%p170) target = $region16
        $region15: #{tpu_custom_call.1} parent=11 // pred_region
          %s174 = ssub.s32 39936, 39936
          %175 = vsyncadd [#allocation7], %s174
          %s176 = sshll.u32 [#allocation6], 4
          %s177 = int_to_ptr.vmem [resolvable:$true] %s176
          %182 = dma.hbm_to_vmem [thread:$0]  %s1, 39936, %s177, [#allocation7], 64, 64, 4
        $region16: #{tpu_custom_call.1} parent=11 // pred_fallthru
          _
        // Predicated region
        $region17: #{tpu_custom_call.1} parent=11 // pred_check
          %p183 = pneg %p87
        $region18: #{tpu_custom_call.1} parent=11 // pred_check_branch
          %185 = sbr.rel (%p183) target = $region20
        $region19: #{tpu_custom_call.1} parent=11 // pred_region
          %s187 = ssub.s32 256, 256
          %188 = vsyncadd [#allocation7], %s187
          %s189 = sshll.u32 [#allocation8], 4
          %s190 = int_to_ptr.vmem [resolvable:$true] %s189
          %195 = dma.hbm_to_vmem [thread:$0]  %s2, 256, %s190, [#allocation7], 128, 128, 8
        $region20: #{tpu_custom_call.1} parent=11 // pred_fallthru
          _
        // Predicated region
        $region21: #{tpu_custom_call.1} parent=11 // pred_check
          %p196 = pneg %p108
        $region22: #{tpu_custom_call.1} parent=11 // pred_check_branch
          %198 = sbr.rel (%p196) target = $region24
        $region23: #{tpu_custom_call.1} parent=11 // pred_region
          %s200 = ssub.s32 1024, 1024
          %201 = vsyncadd [#allocation10], %s200
          %s202 = sshll.u32 [#allocation9], 4
          %s203 = int_to_ptr.vmem [resolvable:$true] %s202
          %208 = dma.hbm_to_vmem [thread:$0]  %s3, 1024, %s203, [#allocation10], 64, 64, 4
        $region24: #{tpu_custom_call.1} parent=11 // pred_fallthru
          _
        // Predicated region
        $region25: #{tpu_custom_call.1} parent=11 // pred_check
          %p209 = pneg %p129
        $region26: #{tpu_custom_call.1} parent=11 // pred_check_branch
          %211 = sbr.rel (%p209) target = $region28
        $region27: #{tpu_custom_call.1} parent=11 // pred_region
          %s213 = ssub.s32 16, 16
          %214 = vsyncadd [#allocation10], %s213
          %s216 = sshll.u32 [#allocation11], 4
          %s217 = int_to_ptr.vmem [resolvable:$true] %s216
          %219 = dma.hbm_to_vmem [thread:$0]  %s4, 16, %s217, [#allocation10]
        $region28: #{tpu_custom_call.1} parent=11 // pred_fallthru
          _
      $region12: #{tpu_custom_call.1} parent=5 // pred_fallthru
        _
      %p220 = scmp.lt.s32.totalorder %s19, 2
      // Predicated region
      $region29: #{tpu_custom_call.1} parent=5 // pred_check
        %p221 = pneg %p220
      $region30: #{tpu_custom_call.1} parent=5 // pred_check_branch
        %223 = sbr.rel (%p221) target = $region32
      $region31: #{tpu_custom_call.1} parent=5 // pred_region
        // Predicated region
        $region33: #{tpu_custom_call.1} parent=31 // pred_check
          %p224 = pneg %p39
        $region34: #{tpu_custom_call.1} parent=31 // pred_check_branch
          %226 = sbr.rel (%p224) target = $region36
        $region35: #{tpu_custom_call.1} parent=31 // pred_region
          %s227 = sand.u32 %s29, 1
          %s228 = scalar_lea.sflag [#allocation4], %s227
          %s229 = sand.u32 %s29, 1
          %s230 = smul.addr %s229, 8
          %s231 = scalar_lea.vmem [#allocation3], %s230
          %s233 = ssub.s32 128, 128
          %234 = vsyncadd %s228, %s233
          %s235 = smul.addr %s19, 2
          %s236 = smul.addr %s235, 64
          %s237 = scalar_lea.hbm %s0, %s236
          %s238 = sshll.u32 %s231, 4
          %s239 = int_to_ptr.vmem [resolvable:$true] %s238
          %244 = dma.hbm_to_vmem [thread:$0]  %s237, 128, %s239, %s228, 64, 64, 4
        $region36: #{tpu_custom_call.1} parent=31 // pred_fallthru
          _
      $region32: #{tpu_custom_call.1} parent=5 // pred_fallthru
        _
      %p245 = scmp.le.s32.totalorder 1, %s19
      %p246 = scmp.lt.s32.totalorder %s19, 3
      %p247 = pnand %p245, %p246
      %p248 = pneg %p247
      // Predicated region
      $region37: #{tpu_custom_call.1} parent=5 // pred_check
        _
      $region38: #{tpu_custom_call.1} parent=5 // pred_check_branch
        %250 = sbr.rel (%p247) target = $region40
      $region39: #{tpu_custom_call.1} parent=5 // pred_region
        %s251 = ssub.s32 %s19, 1
        %s252 = sand.u32 %s32, 1
        %s253 = scalar_lea.sflag [#allocation4], %s252
        %s254 = sand.u32 %s32, 1
        %s255 = smul.addr %s254, 8
        %s256 = scalar_lea.vmem [#allocation3], %s255
        // Predicated region
        $region41: #{tpu_custom_call.1} parent=39 // pred_check
          %p257 = pneg %p45
        $region42: #{tpu_custom_call.1} parent=39 // pred_check_branch
          %259 = sbr.rel (%p257) target = $region44
        $region43: #{tpu_custom_call.1} parent=39 // pred_region
          %260 = dma.done %s253, 128
        $region44: #{tpu_custom_call.1} parent=39 // pred_fallthru
          _
        // Predicated region
        $region45: #{tpu_custom_call.1} parent=39 // pred_check
          %p261 = pneg %p66
        $region46: #{tpu_custom_call.1} parent=39 // pred_check_branch
          %263 = sbr.rel (%p261) target = $region48
        $region47: #{tpu_custom_call.1} parent=39 // pred_region
          %264 = dma.done [#allocation7], 39936
        $region48: #{tpu_custom_call.1} parent=39 // pred_fallthru
          _
        // Predicated region
        $region49: #{tpu_custom_call.1} parent=39 // pred_check
          %p265 = pneg %p87
        $region50: #{tpu_custom_call.1} parent=39 // pred_check_branch
          %267 = sbr.rel (%p265) target = $region52
        $region51: #{tpu_custom_call.1} parent=39 // pred_region
          %268 = dma.done [#allocation7], 256
        $region52: #{tpu_custom_call.1} parent=39 // pred_fallthru
          _
        // Predicated region
        $region53: #{tpu_custom_call.1} parent=39 // pred_check
          %p269 = pneg %p108
        $region54: #{tpu_custom_call.1} parent=39 // pred_check_branch
          %271 = sbr.rel (%p269) target = $region56
        $region55: #{tpu_custom_call.1} parent=39 // pred_region
          %272 = dma.done [#allocation10], 1024
        $region56: #{tpu_custom_call.1} parent=39 // pred_fallthru
          _
        // Predicated region
        $region57: #{tpu_custom_call.1} parent=39 // pred_check
          %p273 = pneg %p129
        $region58: #{tpu_custom_call.1} parent=39 // pred_check_branch
          %275 = sbr.rel (%p273) target = $region60
        $region59: #{tpu_custom_call.1} parent=39 // pred_region
          %276 = dma.done [#allocation10], 16
        $region60: #{tpu_custom_call.1} parent=39 // pred_fallthru
          _
        %s277 = sand.u32 %s32, 1
        %s278 = scalar_lea.sflag [#allocation4], %s277
        %s279 = sand.u32 %s32, 1
        %s280 = smul.addr %s279, 8
        %s281 = scalar_lea.vmem [#allocation3], %s280
        %p282 = pneg %p45
        %p283 = pneg %p42
        %p284 = pneg %p66
        %p285 = pneg %p63
        %p286 = pneg %p87
        %p287 = pneg %p84
        %p288 = pneg %p108
        %p289 = pneg %p105
        %p290 = pneg %p129
        %p291 = pneg %p126
        %p292 = pneg %p155
        %p293 = pneg %p152
        %s294 = sand.u32 %s142, 1
        %s295 = scalar_lea.sflag [#allocation5], %s294
        %s296 = sand.u32 %s142, 1
        %s297 = smul.addr %s296, 16
        %s298 = scalar_lea.vmem [#allocation12], %s297
        %v300 = vld [vmem:[%s256] sm:$0xf]
        %v301 = vld [vmem:[%s256 + $0x4] sm:$0xf]
        %v302 = vunpack.c.l.bf16 %v300
        %v303 = vunpack.c.l.bf16 %v301
        loop: start=0, step=1, limit=2
        $region61: #{tpu_custom_call.1} parent=39 // loop_pre_header
          _
        $region62: #{tpu_custom_call.1} parent=39 // loop_header
          %s305 = sphi 0, %s309
          %p306 = scmp.ge.s32.totalorder %s305, 2
          %v310 = vphi 0.0, %v2224
          %v311 = vphi 0.0, %v2225
        $region63: #{tpu_custom_call.1} parent=39 // loop_header_branch
          %308 = sbr.rel (%p306) target = $region67
        $region64: #{tpu_custom_call.1} parent=39 // loop_body
          %s312 = smul.u32 %s305, 6
          %v315 = vunpack.c.l.b16 %v300
          %v316 = vunpack.c.l.b16 %v301
          %v317 = vpack.c.b16 %v316, %v315
          %319 = vst [vmem:[#allocation2 + $0x8] sm:$0xff] %v317
          %vm320 = vcmask 1040384
          %vm321 = vsmask.f32 256
          %vm322 = vmand %vm320, %vm321
          %v323 = vld [vmem:[#allocation2] sm:$0x1]
          %v324 = vsel %vm322, 0, %v323
          %325 = vst [vmem:[#allocation2] sm:$0x1] %v324
          %v327 = vshrl.u32 %v317, 16
          %v329 = vrot.slane %v327, 7
          %v330 = vshll.u32 %v317, 16
          %v332 = vor.u32 %v329, %v330
          %vm334 = vcmask 1047552
          %vm335 = vsmask.f32 7938
          %vm336 = vmand %vm334, %vm335
          %v337 = vld [vmem:[#allocation2] sm:$0xff]
          %v338 = vsel %vm336, %v332, %v337
          %339 = vst [vmem:[#allocation2] sm:$0xff] %v338
          %v340 = vrot.slane %v330, 1
          %v341 = vor.u32 %v327, %v340
          %vm343 = vsmask.f32 7424
          %vm344 = vmand %vm334, %vm343
          %v345 = vld [vmem:[#allocation2 + $0x10] sm:$0xff]
          %v346 = vsel %vm344, %v341, %v345
          %347 = vst [vmem:[#allocation2 + $0x10] sm:$0xff] %v346
          %vm348 = vcmask 1047559
          %vm349 = vsmask.f32 7966
          %vm350 = vmand %vm348, %vm349
          %v351 = vld [vmem:[#allocation2 + $0x10] sm:$0x80]
          %v352 = vsel %vm350, 0, %v351
          %353 = vst [vmem:[#allocation2 + $0x10] sm:$0x80] %v352
          %s354 = smul.u32 %s312, 48
          %s355 = smul.addr %s354, 4
          %s356 = scalar_lea.vmem [#allocation6], %s355
          %v357 = vld [vmem:[%s356] sm:$0xf]
          %v358 = vld [vmem:[%s356 + $0x4] sm:$0xf]
          %v359 = vld [vmem:[%s356 + $0x8] sm:$0xf]
          %v360 = vld [vmem:[%s356 + $0xc] sm:$0xf]
          %v361 = vld [vmem:[%s356 + $0x10] sm:$0xf]
          %v362 = vld [vmem:[%s356 + $0x14] sm:$0xf]
          %v363 = vld [vmem:[%s356 + $0x18] sm:$0xf]
          %v364 = vld [vmem:[%s356 + $0x1c] sm:$0xf]
          %v365 = vld [vmem:[%s356 + $0x20] sm:$0xf]
          %v366 = vld [vmem:[%s356 + $0x24] sm:$0xf]
          %v367 = vld [vmem:[%s356 + $0x28] sm:$0xf]
          %v368 = vld [vmem:[%s356 + $0x2c] sm:$0xf]
          %v369 = vld [vmem:[%s356 + $0x30] sm:$0xf]
          %v370 = vld [vmem:[%s356 + $0x34] sm:$0xf]
          %v371 = vld [vmem:[%s356 + $0x38] sm:$0xf]
          %v372 = vld [vmem:[%s356 + $0x3c] sm:$0xf]
          %v373 = vld [vmem:[%s356 + $0x40] sm:$0xf]
          %v374 = vld [vmem:[%s356 + $0x44] sm:$0xf]
          %v375 = vld [vmem:[%s356 + $0x48] sm:$0xf]
          %v376 = vld [vmem:[%s356 + $0x4c] sm:$0xf]
          %v377 = vld [vmem:[%s356 + $0x50] sm:$0xf]
          %v378 = vld [vmem:[%s356 + $0x54] sm:$0xf]
          %v379 = vld [vmem:[%s356 + $0x58] sm:$0xf]
          %v380 = vld [vmem:[%s356 + $0x5c] sm:$0xf]
          %v381 = vld [vmem:[%s356 + $0x60] sm:$0xf]
          %v382 = vld [vmem:[%s356 + $0x64] sm:$0xf]
          %v383 = vld [vmem:[%s356 + $0x68] sm:$0xf]
          %v384 = vld [vmem:[%s356 + $0x6c] sm:$0xf]
          %v385 = vld [vmem:[%s356 + $0x70] sm:$0xf]
          %v386 = vld [vmem:[%s356 + $0x74] sm:$0xf]
          %v387 = vld [vmem:[%s356 + $0x78] sm:$0xf]
          %v388 = vld [vmem:[%s356 + $0x7c] sm:$0xf]
          %v389 = vld [vmem:[%s356 + $0x80] sm:$0xf]
          %v390 = vld [vmem:[%s356 + $0x84] sm:$0xf]
          %v391 = vld [vmem:[%s356 + $0x88] sm:$0xf]
          %v392 = vld [vmem:[%s356 + $0x8c] sm:$0xf]
          %v393 = vld [vmem:[%s356 + $0x90] sm:$0xf]
          %v394 = vld [vmem:[%s356 + $0x94] sm:$0xf]
          %v395 = vld [vmem:[%s356 + $0x98] sm:$0xf]
          %v396 = vld [vmem:[%s356 + $0x9c] sm:$0xf]
          %v397 = vld [vmem:[%s356 + $0xa0] sm:$0xf]
          %v398 = vld [vmem:[%s356 + $0xa4] sm:$0xf]
          %v399 = vld [vmem:[%s356 + $0xa8] sm:$0xf]
          %v400 = vld [vmem:[%s356 + $0xac] sm:$0xf]
          %v401 = vld [vmem:[%s356 + $0xb0] sm:$0xf]
          %v402 = vld [vmem:[%s356 + $0xb4] sm:$0xf]
          %v403 = vld [vmem:[%s356 + $0xb8] sm:$0xf]
          %v404 = vld [vmem:[%s356 + $0xbc] sm:$0xf]
          %s405 = scalar_lea.vmem [#allocation8], %s312
          %v406 = vld [vmem:[%s405] sm:$0x1]
          %v407 = vld [vmem:[#allocation2] sm:$0xff]
          %v408 = vld [vmem:[#allocation2 + $0x8] sm:$0xff]
          %v409 = vld [vmem:[#allocation2 + $0x10] sm:$0xff]
          %v410 = vlaneseq
          %v411 = vshrl.u32 %v410, 7
          %v412 = vsub.s32 0, %v411
          %v413 = vrot.slane %v406, %v412
          %v462 = vunpack.c.l.b16 %v357
          %v463 = vunpack.c.l.b16 %v358
          %v464 = vunpack.c.l.b16 %v359
          %v465 = vunpack.c.l.b16 %v360
          %v466 = vunpack.c.l.b16 %v361
          %v467 = vunpack.c.l.b16 %v362
          %v468 = vunpack.c.l.b16 %v363
          %v469 = vunpack.c.l.b16 %v364
          %v470 = vunpack.c.l.b16 %v365
          %v471 = vunpack.c.l.b16 %v366
          %v472 = vunpack.c.l.b16 %v367
          %v473 = vunpack.c.l.b16 %v368
          %v474 = vunpack.c.l.b16 %v369
          %v475 = vunpack.c.l.b16 %v370
          %v476 = vunpack.c.l.b16 %v371
          %v477 = vunpack.c.l.b16 %v372
          %v478 = vunpack.c.l.b16 %v373
          %v479 = vunpack.c.l.b16 %v374
          %v480 = vunpack.c.l.b16 %v375
          %v481 = vunpack.c.l.b16 %v376
          %v482 = vunpack.c.l.b16 %v377
          %v483 = vunpack.c.l.b16 %v378
          %v484 = vunpack.c.l.b16 %v379
          %v485 = vunpack.c.l.b16 %v380
          %v486 = vunpack.c.l.b16 %v381
          %v487 = vunpack.c.l.b16 %v382
          %v488 = vunpack.c.l.b16 %v383
          %v489 = vunpack.c.l.b16 %v384
          %v490 = vunpack.c.l.b16 %v385
          %v491 = vunpack.c.l.b16 %v386
          %v492 = vunpack.c.l.b16 %v387
          %v493 = vunpack.c.l.b16 %v388
          %v494 = vunpack.c.l.b16 %v389
          %v495 = vunpack.c.l.b16 %v390
          %v496 = vunpack.c.l.b16 %v391
          %v497 = vunpack.c.l.b16 %v392
          %v498 = vunpack.c.l.b16 %v393
          %v499 = vunpack.c.l.b16 %v394
          %v500 = vunpack.c.l.b16 %v395
          %v501 = vunpack.c.l.b16 %v396
          %v502 = vunpack.c.l.b16 %v397
          %v503 = vunpack.c.l.b16 %v398
          %v504 = vunpack.c.l.b16 %v399
          %v505 = vunpack.c.l.b16 %v400
          %v506 = vunpack.c.l.b16 %v401
          %v507 = vunpack.c.l.b16 %v402
          %v508 = vunpack.c.l.b16 %v403
          %v509 = vunpack.c.l.b16 %v404
          %v510 = vpack.c.b16 %v463, %v462
          %v511 = vpack.c.b16 %v465, %v464
          %v512 = vpack.c.b16 %v467, %v466
          %v513 = vpack.c.b16 %v469, %v468
          %v514 = vpack.c.b16 %v471, %v470
          %v515 = vpack.c.b16 %v473, %v472
          %v516 = vpack.c.b16 %v475, %v474
          %v517 = vpack.c.b16 %v477, %v476
          %v518 = vpack.c.b16 %v479, %v478
          %v519 = vpack.c.b16 %v481, %v480
          %v520 = vpack.c.b16 %v483, %v482
          %v521 = vpack.c.b16 %v485, %v484
          %v522 = vpack.c.b16 %v487, %v486
          %v523 = vpack.c.b16 %v489, %v488
          %v524 = vpack.c.b16 %v491, %v490
          %v525 = vpack.c.b16 %v493, %v492
          %v526 = vpack.c.b16 %v495, %v494
          %v527 = vpack.c.b16 %v497, %v496
          %v528 = vpack.c.b16 %v499, %v498
          %v529 = vpack.c.b16 %v501, %v500
          %v530 = vpack.c.b16 %v503, %v502
          %v531 = vpack.c.b16 %v505, %v504
          %v532 = vpack.c.b16 %v507, %v506
          %v533 = vpack.c.b16 %v509, %v508
          %558 = vmatprep.subr.bf16.mxu0 0
          %559 = vmatpush1.bf16.msra.mxu0 %v510
          %560 = vmatprep.subr.bf16.mxu0 0
          %561 = vmatpush1.bf16.msra.mxu0 %v511
          %562 = vmatprep.subr.bf16.mxu0 0
          %563 = vmatpush1.bf16.msra.mxu0 %v512
          %564 = vmatprep.subr.bf16.mxu0 0
          %565 = vmatpush1.bf16.msra.mxu0 %v513
          %566 = vmatprep.subr.bf16.mxu0 0
          %567 = vmatpush1.bf16.msra.mxu0 %v514
          %568 = vmatprep.subr.bf16.mxu0 0
          %569 = vmatpush1.bf16.msra.mxu0 %v515
          %570 = vmatprep.subr.bf16.mxu0 0
          %571 = vmatpush1.bf16.msra.mxu0 %v516
          %572 = vmatprep.subr.bf16.mxu0 0
          %573 = vmatpush1.bf16.msra.mxu0 %v517
          %574 = vmatprep.subr.bf16.mxu0 0
          %575 = vmatpush1.bf16.msra.mxu0 %v518
          %576 = vmatprep.subr.bf16.mxu0 0
          %577 = vmatpush1.bf16.msra.mxu0 %v519
          %578 = vmatprep.subr.bf16.mxu0 0
          %579 = vmatpush1.bf16.msra.mxu0 %v520
          %580 = vmatprep.subr.bf16.mxu0 0
          %581 = vmatpush1.bf16.msra.mxu0 %v521
          %582 = vmatprep.subr.bf16.mxu0 0
          %583 = vmatpush1.bf16.msra.mxu0 %v522
          %584 = vmatprep.subr.bf16.mxu0 0
          %585 = vmatpush1.bf16.msra.mxu0 %v523
          %586 = vmatprep.subr.bf16.mxu0 0
          %587 = vmatpush1.bf16.msra.mxu0 %v524
          %588 = vmatprep.subr.bf16.mxu0 0
          %589 = vmatpush1.bf16.msra.mxu0 %v525
          %590 = vmatprep.mubr.bf16.mxu0 %v408
          %591 = vmatmul.mubr.bf16.gmra.mrb[0].mxu0 %v407
          %v592 = vpop.f32.mrb[0].mxu0
          %v593 = vadd.f32 %v413, %v592
          %v594 = vpop.f32.mrb[0].mxu0
          %v595 = vpop.f32.mrb[0].mxu0
          %v596 = vadd.f32 %v413, %v595
          %v597 = vpop.f32.mrb[0].mxu0
          %598 = vdwg.mxu0
          %599 = vmatprep.subr.bf16.mxu0 0
          %600 = vmatpush1.bf16.msra.mxu0 %v526
          %601 = vmatprep.subr.bf16.mxu0 0
          %602 = vmatpush1.bf16.msra.mxu0 %v527
          %603 = vmatprep.subr.bf16.mxu0 0
          %604 = vmatpush1.bf16.msra.mxu0 %v528
          %605 = vmatprep.subr.bf16.mxu0 0
          %606 = vmatpush1.bf16.msra.mxu0 %v529
          %607 = vmatprep.subr.bf16.mxu0 0
          %608 = vmatpush1.bf16.msra.mxu0 %v530
          %609 = vmatprep.subr.bf16.mxu0 0
          %610 = vmatpush1.bf16.msra.mxu0 %v531
          %611 = vmatprep.subr.bf16.mxu0 0
          %612 = vmatpush1.bf16.msra.mxu0 %v532
          %613 = vmatprep.subr.bf16.mxu0 0
          %614 = vmatpush1.bf16.msra.mxu0 %v533
          %615 = vmatprep.subr.bf16.mxu0 0
          %616 = vmatpush1.bf16.msra.mxu0 0
          %617 = vmatprep.subr.bf16.mxu0 0
          %618 = vmatpush1.bf16.msra.mxu0 0
          %619 = vmatprep.subr.bf16.mxu0 0
          %620 = vmatpush1.bf16.msra.mxu0 0
          %621 = vmatprep.subr.bf16.mxu0 0
          %622 = vmatpush1.bf16.msra.mxu0 0
          %623 = vmatprep.subr.bf16.mxu0 0
          %624 = vmatpush1.bf16.msra.mxu0 0
          %625 = vmatprep.subr.bf16.mxu0 0
          %626 = vmatpush1.bf16.msra.mxu0 0
          %627 = vmatprep.subr.bf16.mxu0 0
          %628 = vmatpush1.bf16.msra.mxu0 0
          %629 = vmatprep.subr.bf16.mxu0 0
          %630 = vmatpush1.bf16.msra.mxu0 0
          %631 = vmatprep.mubr.bf16.mxu0 0
          %632 = vmatmul.mubr.bf16.gmra.mrb[0].mxu0 %v409
          %v633 = vpop.f32.mrb[0].mxu0
          %v634 = vadd.f32 %v593, %v633
          %v635 = vpop.f32.mrb[0].mxu0
          %v636 = vpop.f32.mrb[0].mxu0
          %v637 = vadd.f32 %v596, %v636
          %v638 = vpop.f32.mrb[0].mxu0
          %639 = vdwg.mxu0
          %v640 = vtanh.pop %v634
          %v641 = vtanh.pop %v637
          %v642 = vmul.f32 %v634, 0.5
          %v643 = vmul.f32 %v637, 0.5
          %v644 = vtanh.pop %v642
          %v645 = vtanh.pop %v643
          %v646 = vmul.f32 %v644, 0.5
          %v647 = vmul.f32 %v645, 0.5
          %v648 = vadd.f32 %v646, 0.5
          %v649 = vadd.f32 %v647, 0.5
          %v650 = vmul.f32 %v640, %v648
          %v651 = vmul.f32 %v641, %v649
          %s652 = sadd.s32 %s312, 1
          %v653 = vpack.c.bf16 %v651, %v650
          %654 = vst [vmem:[#allocation2 + $0x8] sm:$0xff] %v653
          %v655 = vld [vmem:[#allocation2] sm:$0x1]
          %v656 = vsel %vm322, 0, %v655
          %657 = vst [vmem:[#allocation2] sm:$0x1] %v656
          %v659 = vshrl.u32 %v653, 16
          %v661 = vrot.slane %v659, 7
          %v662 = vshll.u32 %v653, 16
          %v664 = vor.u32 %v661, %v662
          %v666 = vld [vmem:[#allocation2] sm:$0xff]
          %v667 = vsel %vm336, %v664, %v666
          %668 = vst [vmem:[#allocation2] sm:$0xff] %v667
          %v669 = vrot.slane %v662, 1
          %v670 = vor.u32 %v659, %v669
          %v672 = vld [vmem:[#allocation2 + $0x10] sm:$0xff]
          %v673 = vsel %vm344, %v670, %v672
          %674 = vst [vmem:[#allocation2 + $0x10] sm:$0xff] %v673
          %v675 = vld [vmem:[#allocation2 + $0x10] sm:$0x80]
          %v676 = vsel %vm350, 0, %v675
          %677 = vst [vmem:[#allocation2 + $0x10] sm:$0x80] %v676
          %s678 = smul.u32 %s652, 48
          %s679 = smul.addr %s678, 4
          %s680 = scalar_lea.vmem [#allocation6], %s679
          %v681 = vld [vmem:[%s680] sm:$0xf]
          %v682 = vld [vmem:[%s680 + $0x4] sm:$0xf]
          %v683 = vld [vmem:[%s680 + $0x8] sm:$0xf]
          %v684 = vld [vmem:[%s680 + $0xc] sm:$0xf]
          %v685 = vld [vmem:[%s680 + $0x10] sm:$0xf]
          %v686 = vld [vmem:[%s680 + $0x14] sm:$0xf]
          %v687 = vld [vmem:[%s680 + $0x18] sm:$0xf]
          %v688 = vld [vmem:[%s680 + $0x1c] sm:$0xf]
          %v689 = vld [vmem:[%s680 + $0x20] sm:$0xf]
          %v690 = vld [vmem:[%s680 + $0x24] sm:$0xf]
          %v691 = vld [vmem:[%s680 + $0x28] sm:$0xf]
          %v692 = vld [vmem:[%s680 + $0x2c] sm:$0xf]
          %v693 = vld [vmem:[%s680 + $0x30] sm:$0xf]
          %v694 = vld [vmem:[%s680 + $0x34] sm:$0xf]
          %v695 = vld [vmem:[%s680 + $0x38] sm:$0xf]
          %v696 = vld [vmem:[%s680 + $0x3c] sm:$0xf]
          %v697 = vld [vmem:[%s680 + $0x40] sm:$0xf]
          %v698 = vld [vmem:[%s680 + $0x44] sm:$0xf]
          %v699 = vld [vmem:[%s680 + $0x48] sm:$0xf]
          %v700 = vld [vmem:[%s680 + $0x4c] sm:$0xf]
          %v701 = vld [vmem:[%s680 + $0x50] sm:$0xf]
          %v702 = vld [vmem:[%s680 + $0x54] sm:$0xf]
          %v703 = vld [vmem:[%s680 + $0x58] sm:$0xf]
          %v704 = vld [vmem:[%s680 + $0x5c] sm:$0xf]
          %v705 = vld [vmem:[%s680 + $0x60] sm:$0xf]
          %v706 = vld [vmem:[%s680 + $0x64] sm:$0xf]
          %v707 = vld [vmem:[%s680 + $0x68] sm:$0xf]
          %v708 = vld [vmem:[%s680 + $0x6c] sm:$0xf]
          %v709 = vld [vmem:[%s680 + $0x70] sm:$0xf]
          %v710 = vld [vmem:[%s680 + $0x74] sm:$0xf]
          %v711 = vld [vmem:[%s680 + $0x78] sm:$0xf]
          %v712 = vld [vmem:[%s680 + $0x7c] sm:$0xf]
          %v713 = vld [vmem:[%s680 + $0x80] sm:$0xf]
          %v714 = vld [vmem:[%s680 + $0x84] sm:$0xf]
          %v715 = vld [vmem:[%s680 + $0x88] sm:$0xf]
          %v716 = vld [vmem:[%s680 + $0x8c] sm:$0xf]
          %v717 = vld [vmem:[%s680 + $0x90] sm:$0xf]
          %v718 = vld [vmem:[%s680 + $0x94] sm:$0xf]
          %v719 = vld [vmem:[%s680 + $0x98] sm:$0xf]
          %v720 = vld [vmem:[%s680 + $0x9c] sm:$0xf]
          %v721 = vld [vmem:[%s680 + $0xa0] sm:$0xf]
          %v722 = vld [vmem:[%s680 + $0xa4] sm:$0xf]
          %v723 = vld [vmem:[%s680 + $0xa8] sm:$0xf]
          %v724 = vld [vmem:[%s680 + $0xac] sm:$0xf]
          %v725 = vld [vmem:[%s680 + $0xb0] sm:$0xf]
          %v726 = vld [vmem:[%s680 + $0xb4] sm:$0xf]
          %v727 = vld [vmem:[%s680 + $0xb8] sm:$0xf]
          %v728 = vld [vmem:[%s680 + $0xbc] sm:$0xf]
          %s729 = scalar_lea.vmem [#allocation8], %s652
          %v730 = vld [vmem:[%s729] sm:$0x1]
          %v731 = vld [vmem:[#allocation2] sm:$0xff]
          %v732 = vld [vmem:[#allocation2 + $0x8] sm:$0xff]
          %v733 = vld [vmem:[#allocation2 + $0x10] sm:$0xff]
          %v734 = vlaneseq
          %v735 = vshrl.u32 %v734, 7
          %v736 = vsub.s32 0, %v735
          %v737 = vrot.slane %v730, %v736
          %v786 = vunpack.c.l.b16 %v681
          %v787 = vunpack.c.l.b16 %v682
          %v788 = vunpack.c.l.b16 %v683
          %v789 = vunpack.c.l.b16 %v684
          %v790 = vunpack.c.l.b16 %v685
          %v791 = vunpack.c.l.b16 %v686
          %v792 = vunpack.c.l.b16 %v687
          %v793 = vunpack.c.l.b16 %v688
          %v794 = vunpack.c.l.b16 %v689
          %v795 = vunpack.c.l.b16 %v690
          %v796 = vunpack.c.l.b16 %v691
          %v797 = vunpack.c.l.b16 %v692
          %v798 = vunpack.c.l.b16 %v693
          %v799 = vunpack.c.l.b16 %v694
          %v800 = vunpack.c.l.b16 %v695
          %v801 = vunpack.c.l.b16 %v696
          %v802 = vunpack.c.l.b16 %v697
          %v803 = vunpack.c.l.b16 %v698
          %v804 = vunpack.c.l.b16 %v699
          %v805 = vunpack.c.l.b16 %v700
          %v806 = vunpack.c.l.b16 %v701
          %v807 = vunpack.c.l.b16 %v702
          %v808 = vunpack.c.l.b16 %v703
          %v809 = vunpack.c.l.b16 %v704
          %v810 = vunpack.c.l.b16 %v705
          %v811 = vunpack.c.l.b16 %v706
          %v812 = vunpack.c.l.b16 %v707
          %v813 = vunpack.c.l.b16 %v708
          %v814 = vunpack.c.l.b16 %v709
          %v815 = vunpack.c.l.b16 %v710
          %v816 = vunpack.c.l.b16 %v711
          %v817 = vunpack.c.l.b16 %v712
          %v818 = vunpack.c.l.b16 %v713
          %v819 = vunpack.c.l.b16 %v714
          %v820 = vunpack.c.l.b16 %v715
          %v821 = vunpack.c.l.b16 %v716
          %v822 = vunpack.c.l.b16 %v717
          %v823 = vunpack.c.l.b16 %v718
          %v824 = vunpack.c.l.b16 %v719
          %v825 = vunpack.c.l.b16 %v720
          %v826 = vunpack.c.l.b16 %v721
          %v827 = vunpack.c.l.b16 %v722
          %v828 = vunpack.c.l.b16 %v723
          %v829 = vunpack.c.l.b16 %v724
          %v830 = vunpack.c.l.b16 %v725
          %v831 = vunpack.c.l.b16 %v726
          %v832 = vunpack.c.l.b16 %v727
          %v833 = vunpack.c.l.b16 %v728
          %v834 = vpack.c.b16 %v787, %v786
          %v835 = vpack.c.b16 %v789, %v788
          %v836 = vpack.c.b16 %v791, %v790
          %v837 = vpack.c.b16 %v793, %v792
          %v838 = vpack.c.b16 %v795, %v794
          %v839 = vpack.c.b16 %v797, %v796
          %v840 = vpack.c.b16 %v799, %v798
          %v841 = vpack.c.b16 %v801, %v800
          %v842 = vpack.c.b16 %v803, %v802
          %v843 = vpack.c.b16 %v805, %v804
          %v844 = vpack.c.b16 %v807, %v806
          %v845 = vpack.c.b16 %v809, %v808
          %v846 = vpack.c.b16 %v811, %v810
          %v847 = vpack.c.b16 %v813, %v812
          %v848 = vpack.c.b16 %v815, %v814
          %v849 = vpack.c.b16 %v817, %v816
          %v850 = vpack.c.b16 %v819, %v818
          %v851 = vpack.c.b16 %v821, %v820
          %v852 = vpack.c.b16 %v823, %v822
          %v853 = vpack.c.b16 %v825, %v824
          %v854 = vpack.c.b16 %v827, %v826
          %v855 = vpack.c.b16 %v829, %v828
          %v856 = vpack.c.b16 %v831, %v830
          %v857 = vpack.c.b16 %v833, %v832
          %882 = vmatprep.subr.bf16.mxu0 0
          %883 = vmatpush1.bf16.msra.mxu0 %v834
          %884 = vmatprep.subr.bf16.mxu0 0
          %885 = vmatpush1.bf16.msra.mxu0 %v835
          %886 = vmatprep.subr.bf16.mxu0 0
          %887 = vmatpush1.bf16.msra.mxu0 %v836
          %888 = vmatprep.subr.bf16.mxu0 0
          %889 = vmatpush1.bf16.msra.mxu0 %v837
          %890 = vmatprep.subr.bf16.mxu0 0
          %891 = vmatpush1.bf16.msra.mxu0 %v838
          %892 = vmatprep.subr.bf16.mxu0 0
          %893 = vmatpush1.bf16.msra.mxu0 %v839
          %894 = vmatprep.subr.bf16.mxu0 0
          %895 = vmatpush1.bf16.msra.mxu0 %v840
          %896 = vmatprep.subr.bf16.mxu0 0
          %897 = vmatpush1.bf16.msra.mxu0 %v841
          %898 = vmatprep.subr.bf16.mxu0 0
          %899 = vmatpush1.bf16.msra.mxu0 %v842
          %900 = vmatprep.subr.bf16.mxu0 0
          %901 = vmatpush1.bf16.msra.mxu0 %v843
          %902 = vmatprep.subr.bf16.mxu0 0
          %903 = vmatpush1.bf16.msra.mxu0 %v844
          %904 = vmatprep.subr.bf16.mxu0 0
          %905 = vmatpush1.bf16.msra.mxu0 %v845
          %906 = vmatprep.subr.bf16.mxu0 0
          %907 = vmatpush1.bf16.msra.mxu0 %v846
          %908 = vmatprep.subr.bf16.mxu0 0
          %909 = vmatpush1.bf16.msra.mxu0 %v847
          %910 = vmatprep.subr.bf16.mxu0 0
          %911 = vmatpush1.bf16.msra.mxu0 %v848
          %912 = vmatprep.subr.bf16.mxu0 0
          %913 = vmatpush1.bf16.msra.mxu0 %v849
          %914 = vmatprep.mubr.bf16.mxu0 %v732
          %915 = vmatmul.mubr.bf16.gmra.mrb[0].mxu0 %v731
          %v916 = vpop.f32.mrb[0].mxu0
          %v917 = vadd.f32 %v737, %v916
          %v918 = vpop.f32.mrb[0].mxu0
          %v919 = vpop.f32.mrb[0].mxu0
          %v920 = vadd.f32 %v737, %v919
          %v921 = vpop.f32.mrb[0].mxu0
          %922 = vdwg.mxu0
          %923 = vmatprep.subr.bf16.mxu0 0
          %924 = vmatpush1.bf16.msra.mxu0 %v850
          %925 = vmatprep.subr.bf16.mxu0 0
          %926 = vmatpush1.bf16.msra.mxu0 %v851
          %927 = vmatprep.subr.bf16.mxu0 0
          %928 = vmatpush1.bf16.msra.mxu0 %v852
          %929 = vmatprep.subr.bf16.mxu0 0
          %930 = vmatpush1.bf16.msra.mxu0 %v853
          %931 = vmatprep.subr.bf16.mxu0 0
          %932 = vmatpush1.bf16.msra.mxu0 %v854
          %933 = vmatprep.subr.bf16.mxu0 0
          %934 = vmatpush1.bf16.msra.mxu0 %v855
          %935 = vmatprep.subr.bf16.mxu0 0
          %936 = vmatpush1.bf16.msra.mxu0 %v856
          %937 = vmatprep.subr.bf16.mxu0 0
          %938 = vmatpush1.bf16.msra.mxu0 %v857
          %939 = vmatprep.subr.bf16.mxu0 0
          %940 = vmatpush1.bf16.msra.mxu0 0
          %941 = vmatprep.subr.bf16.mxu0 0
          %942 = vmatpush1.bf16.msra.mxu0 0
          %943 = vmatprep.subr.bf16.mxu0 0
          %944 = vmatpush1.bf16.msra.mxu0 0
          %945 = vmatprep.subr.bf16.mxu0 0
          %946 = vmatpush1.bf16.msra.mxu0 0
          %947 = vmatprep.subr.bf16.mxu0 0
          %948 = vmatpush1.bf16.msra.mxu0 0
          %949 = vmatprep.subr.bf16.mxu0 0
          %950 = vmatpush1.bf16.msra.mxu0 0
          %951 = vmatprep.subr.bf16.mxu0 0
          %952 = vmatpush1.bf16.msra.mxu0 0
          %953 = vmatprep.subr.bf16.mxu0 0
          %954 = vmatpush1.bf16.msra.mxu0 0
          %955 = vmatprep.mubr.bf16.mxu0 0
          %956 = vmatmul.mubr.bf16.gmra.mrb[0].mxu0 %v733
          %v957 = vpop.f32.mrb[0].mxu0
          %v958 = vadd.f32 %v917, %v957
          %v959 = vpop.f32.mrb[0].mxu0
          %v960 = vpop.f32.mrb[0].mxu0
          %v961 = vadd.f32 %v920, %v960
          %v962 = vpop.f32.mrb[0].mxu0
          %963 = vdwg.mxu0
          %v964 = vtanh.pop %v958
          %v965 = vtanh.pop %v961
          %v966 = vadd.f32 %v964, 0.0
          %v967 = vadd.f32 %v965, 0.0
          %v968 = vadd.f32 %v302, %v964
          %v969 = vadd.f32 %v303, %v965
          %s970 = sadd.s32 %s312, 2
          %v971 = vpack.c.bf16 %v969, %v968
          %972 = vst [vmem:[#allocation2 + $0x8] sm:$0xff] %v971
          %973 = vst [vmem:[#allocation2] sm:$0x1] 0
          %v975 = vrot.slane %v971, 7
          %977 = vst [vmem:[#allocation2] sm:$0xfe] %v975
          %v978 = vrot.slane %v971, 1
          %980 = vst [vmem:[#allocation2 + $0x10] sm:$0x7f] %v978
          %981 = vst [vmem:[#allocation2 + $0x10] sm:$0x80] 0
          %s982 = smul.u32 %s970, 48
          %s983 = smul.addr %s982, 4
          %s984 = scalar_lea.vmem [#allocation6], %s983
          %v985 = vld [vmem:[%s984] sm:$0xf]
          %v986 = vld [vmem:[%s984 + $0x4] sm:$0xf]
          %v987 = vld [vmem:[%s984 + $0x8] sm:$0xf]
          %v988 = vld [vmem:[%s984 + $0xc] sm:$0xf]
          %v989 = vld [vmem:[%s984 + $0x10] sm:$0xf]
          %v990 = vld [vmem:[%s984 + $0x14] sm:$0xf]
          %v991 = vld [vmem:[%s984 + $0x18] sm:$0xf]
          %v992 = vld [vmem:[%s984 + $0x1c] sm:$0xf]
          %v993 = vld [vmem:[%s984 + $0x20] sm:$0xf]
          %v994 = vld [vmem:[%s984 + $0x24] sm:$0xf]
          %v995 = vld [vmem:[%s984 + $0x28] sm:$0xf]
          %v996 = vld [vmem:[%s984 + $0x2c] sm:$0xf]
          %v997 = vld [vmem:[%s984 + $0x30] sm:$0xf]
          %v998 = vld [vmem:[%s984 + $0x34] sm:$0xf]
          %v999 = vld [vmem:[%s984 + $0x38] sm:$0xf]
          %v1000 = vld [vmem:[%s984 + $0x3c] sm:$0xf]
          %v1001 = vld [vmem:[%s984 + $0x40] sm:$0xf]
          %v1002 = vld [vmem:[%s984 + $0x44] sm:$0xf]
          %v1003 = vld [vmem:[%s984 + $0x48] sm:$0xf]
          %v1004 = vld [vmem:[%s984 + $0x4c] sm:$0xf]
          %v1005 = vld [vmem:[%s984 + $0x50] sm:$0xf]
          %v1006 = vld [vmem:[%s984 + $0x54] sm:$0xf]
          %v1007 = vld [vmem:[%s984 + $0x58] sm:$0xf]
          %v1008 = vld [vmem:[%s984 + $0x5c] sm:$0xf]
          %v1009 = vld [vmem:[%s984 + $0x60] sm:$0xf]
          %v1010 = vld [vmem:[%s984 + $0x64] sm:$0xf]
          %v1011 = vld [vmem:[%s984 + $0x68] sm:$0xf]
          %v1012 = vld [vmem:[%s984 + $0x6c] sm:$0xf]
          %v1013 = vld [vmem:[%s984 + $0x70] sm:$0xf]
          %v1014 = vld [vmem:[%s984 + $0x74] sm:$0xf]
          %v1015 = vld [vmem:[%s984 + $0x78] sm:$0xf]
          %v1016 = vld [vmem:[%s984 + $0x7c] sm:$0xf]
          %v1017 = vld [vmem:[%s984 + $0x80] sm:$0xf]
          %v1018 = vld [vmem:[%s984 + $0x84] sm:$0xf]
          %v1019 = vld [vmem:[%s984 + $0x88] sm:$0xf]
          %v1020 = vld [vmem:[%s984 + $0x8c] sm:$0xf]
          %v1021 = vld [vmem:[%s984 + $0x90] sm:$0xf]
          %v1022 = vld [vmem:[%s984 + $0x94] sm:$0xf]
          %v1023 = vld [vmem:[%s984 + $0x98] sm:$0xf]
          %v1024 = vld [vmem:[%s984 + $0x9c] sm:$0xf]
          %v1025 = vld [vmem:[%s984 + $0xa0] sm:$0xf]
          %v1026 = vld [vmem:[%s984 + $0xa4] sm:$0xf]
          %v1027 = vld [vmem:[%s984 + $0xa8] sm:$0xf]
          %v1028 = vld [vmem:[%s984 + $0xac] sm:$0xf]
          %v1029 = vld [vmem:[%s984 + $0xb0] sm:$0xf]
          %v1030 = vld [vmem:[%s984 + $0xb4] sm:$0xf]
          %v1031 = vld [vmem:[%s984 + $0xb8] sm:$0xf]
          %v1032 = vld [vmem:[%s984 + $0xbc] sm:$0xf]
          %s1033 = scalar_lea.vmem [#allocation8], %s970
          %v1034 = vld [vmem:[%s1033] sm:$0x1]
          %v1035 = vld [vmem:[#allocation2] sm:$0xff]
          %v1036 = vld [vmem:[#allocation2 + $0x8] sm:$0xff]
          %v1037 = vld [vmem:[#allocation2 + $0x10] sm:$0xff]
          %v1038 = vlaneseq
          %v1039 = vshrl.u32 %v1038, 7
          %v1040 = vsub.s32 0, %v1039
          %v1041 = vrot.slane %v1034, %v1040
          %v1090 = vunpack.c.l.b16 %v985
          %v1091 = vunpack.c.l.b16 %v986
          %v1092 = vunpack.c.l.b16 %v987
          %v1093 = vunpack.c.l.b16 %v988
          %v1094 = vunpack.c.l.b16 %v989
          %v1095 = vunpack.c.l.b16 %v990
          %v1096 = vunpack.c.l.b16 %v991
          %v1097 = vunpack.c.l.b16 %v992
          %v1098 = vunpack.c.l.b16 %v993
          %v1099 = vunpack.c.l.b16 %v994
          %v1100 = vunpack.c.l.b16 %v995
          %v1101 = vunpack.c.l.b16 %v996
          %v1102 = vunpack.c.l.b16 %v997
          %v1103 = vunpack.c.l.b16 %v998
          %v1104 = vunpack.c.l.b16 %v999
          %v1105 = vunpack.c.l.b16 %v1000
          %v1106 = vunpack.c.l.b16 %v1001
          %v1107 = vunpack.c.l.b16 %v1002
          %v1108 = vunpack.c.l.b16 %v1003
          %v1109 = vunpack.c.l.b16 %v1004
          %v1110 = vunpack.c.l.b16 %v1005
          %v1111 = vunpack.c.l.b16 %v1006
          %v1112 = vunpack.c.l.b16 %v1007
          %v1113 = vunpack.c.l.b16 %v1008
          %v1114 = vunpack.c.l.b16 %v1009
          %v1115 = vunpack.c.l.b16 %v1010
          %v1116 = vunpack.c.l.b16 %v1011
          %v1117 = vunpack.c.l.b16 %v1012
          %v1118 = vunpack.c.l.b16 %v1013
          %v1119 = vunpack.c.l.b16 %v1014
          %v1120 = vunpack.c.l.b16 %v1015
          %v1121 = vunpack.c.l.b16 %v1016
          %v1122 = vunpack.c.l.b16 %v1017
          %v1123 = vunpack.c.l.b16 %v1018
          %v1124 = vunpack.c.l.b16 %v1019
          %v1125 = vunpack.c.l.b16 %v1020
          %v1126 = vunpack.c.l.b16 %v1021
          %v1127 = vunpack.c.l.b16 %v1022
          %v1128 = vunpack.c.l.b16 %v1023
          %v1129 = vunpack.c.l.b16 %v1024
          %v1130 = vunpack.c.l.b16 %v1025
          %v1131 = vunpack.c.l.b16 %v1026
          %v1132 = vunpack.c.l.b16 %v1027
          %v1133 = vunpack.c.l.b16 %v1028
          %v1134 = vunpack.c.l.b16 %v1029
          %v1135 = vunpack.c.l.b16 %v1030
          %v1136 = vunpack.c.l.b16 %v1031
          %v1137 = vunpack.c.l.b16 %v1032
          %v1138 = vpack.c.b16 %v1091, %v1090
          %v1139 = vpack.c.b16 %v1093, %v1092
          %v1140 = vpack.c.b16 %v1095, %v1094
          %v1141 = vpack.c.b16 %v1097, %v1096
          %v1142 = vpack.c.b16 %v1099, %v1098
          %v1143 = vpack.c.b16 %v1101, %v1100
          %v1144 = vpack.c.b16 %v1103, %v1102
          %v1145 = vpack.c.b16 %v1105, %v1104
          %v1146 = vpack.c.b16 %v1107, %v1106
          %v1147 = vpack.c.b16 %v1109, %v1108
          %v1148 = vpack.c.b16 %v1111, %v1110
          %v1149 = vpack.c.b16 %v1113, %v1112
          %v1150 = vpack.c.b16 %v1115, %v1114
          %v1151 = vpack.c.b16 %v1117, %v1116
          %v1152 = vpack.c.b16 %v1119, %v1118
          %v1153 = vpack.c.b16 %v1121, %v1120
          %v1154 = vpack.c.b16 %v1123, %v1122
          %v1155 = vpack.c.b16 %v1125, %v1124
          %v1156 = vpack.c.b16 %v1127, %v1126
          %v1157 = vpack.c.b16 %v1129, %v1128
          %v1158 = vpack.c.b16 %v1131, %v1130
          %v1159 = vpack.c.b16 %v1133, %v1132
          %v1160 = vpack.c.b16 %v1135, %v1134
          %v1161 = vpack.c.b16 %v1137, %v1136
          %1186 = vmatprep.subr.bf16.mxu0 0
          %1187 = vmatpush1.bf16.msra.mxu0 %v1138
          %1188 = vmatprep.subr.bf16.mxu0 0
          %1189 = vmatpush1.bf16.msra.mxu0 %v1139
          %1190 = vmatprep.subr.bf16.mxu0 0
          %1191 = vmatpush1.bf16.msra.mxu0 %v1140
          %1192 = vmatprep.subr.bf16.mxu0 0
          %1193 = vmatpush1.bf16.msra.mxu0 %v1141
          %1194 = vmatprep.subr.bf16.mxu0 0
          %1195 = vmatpush1.bf16.msra.mxu0 %v1142
          %1196 = vmatprep.subr.bf16.mxu0 0
          %1197 = vmatpush1.bf16.msra.mxu0 %v1143
          %1198 = vmatprep.subr.bf16.mxu0 0
          %1199 = vmatpush1.bf16.msra.mxu0 %v1144
          %1200 = vmatprep.subr.bf16.mxu0 0
          %1201 = vmatpush1.bf16.msra.mxu0 %v1145
          %1202 = vmatprep.subr.bf16.mxu0 0
          %1203 = vmatpush1.bf16.msra.mxu0 %v1146
          %1204 = vmatprep.subr.bf16.mxu0 0
          %1205 = vmatpush1.bf16.msra.mxu0 %v1147
          %1206 = vmatprep.subr.bf16.mxu0 0
          %1207 = vmatpush1.bf16.msra.mxu0 %v1148
          %1208 = vmatprep.subr.bf16.mxu0 0
          %1209 = vmatpush1.bf16.msra.mxu0 %v1149
          %1210 = vmatprep.subr.bf16.mxu0 0
          %1211 = vmatpush1.bf16.msra.mxu0 %v1150
          %1212 = vmatprep.subr.bf16.mxu0 0
          %1213 = vmatpush1.bf16.msra.mxu0 %v1151
          %1214 = vmatprep.subr.bf16.mxu0 0
          %1215 = vmatpush1.bf16.msra.mxu0 %v1152
          %1216 = vmatprep.subr.bf16.mxu0 0
          %1217 = vmatpush1.bf16.msra.mxu0 %v1153
          %1218 = vmatprep.mubr.bf16.mxu0 %v1036
          %1219 = vmatmul.mubr.bf16.gmra.mrb[0].mxu0 %v1035
          %v1220 = vpop.f32.mrb[0].mxu0
          %v1221 = vadd.f32 %v1041, %v1220
          %v1222 = vpop.f32.mrb[0].mxu0
          %v1223 = vpop.f32.mrb[0].mxu0
          %v1224 = vadd.f32 %v1041, %v1223
          %v1225 = vpop.f32.mrb[0].mxu0
          %1226 = vdwg.mxu0
          %1227 = vmatprep.subr.bf16.mxu0 0
          %1228 = vmatpush1.bf16.msra.mxu0 %v1154
          %1229 = vmatprep.subr.bf16.mxu0 0
          %1230 = vmatpush1.bf16.msra.mxu0 %v1155
          %1231 = vmatprep.subr.bf16.mxu0 0
          %1232 = vmatpush1.bf16.msra.mxu0 %v1156
          %1233 = vmatprep.subr.bf16.mxu0 0
          %1234 = vmatpush1.bf16.msra.mxu0 %v1157
          %1235 = vmatprep.subr.bf16.mxu0 0
          %1236 = vmatpush1.bf16.msra.mxu0 %v1158
          %1237 = vmatprep.subr.bf16.mxu0 0
          %1238 = vmatpush1.bf16.msra.mxu0 %v1159
          %1239 = vmatprep.subr.bf16.mxu0 0
          %1240 = vmatpush1.bf16.msra.mxu0 %v1160
          %1241 = vmatprep.subr.bf16.mxu0 0
          %1242 = vmatpush1.bf16.msra.mxu0 %v1161
          %1243 = vmatprep.subr.bf16.mxu0 0
          %1244 = vmatpush1.bf16.msra.mxu0 0
          %1245 = vmatprep.subr.bf16.mxu0 0
          %1246 = vmatpush1.bf16.msra.mxu0 0
          %1247 = vmatprep.subr.bf16.mxu0 0
          %1248 = vmatpush1.bf16.msra.mxu0 0
          %1249 = vmatprep.subr.bf16.mxu0 0
          %1250 = vmatpush1.bf16.msra.mxu0 0
          %1251 = vmatprep.subr.bf16.mxu0 0
          %1252 = vmatpush1.bf16.msra.mxu0 0
          %1253 = vmatprep.subr.bf16.mxu0 0
          %1254 = vmatpush1.bf16.msra.mxu0 0
          %1255 = vmatprep.subr.bf16.mxu0 0
          %1256 = vmatpush1.bf16.msra.mxu0 0
          %1257 = vmatprep.subr.bf16.mxu0 0
          %1258 = vmatpush1.bf16.msra.mxu0 0
          %1259 = vmatprep.mubr.bf16.mxu0 0
          %1260 = vmatmul.mubr.bf16.gmra.mrb[0].mxu0 %v1037
          %v1261 = vpop.f32.mrb[0].mxu0
          %v1262 = vadd.f32 %v1221, %v1261
          %v1263 = vpop.f32.mrb[0].mxu0
          %v1264 = vpop.f32.mrb[0].mxu0
          %v1265 = vadd.f32 %v1224, %v1264
          %v1266 = vpop.f32.mrb[0].mxu0
          %1267 = vdwg.mxu0
          %v1268 = vtanh.pop %v1262
          %v1269 = vtanh.pop %v1265
          %v1270 = vmul.f32 %v1262, 0.5
          %v1271 = vmul.f32 %v1265, 0.5
          %v1272 = vtanh.pop %v1270
          %v1273 = vtanh.pop %v1271
          %v1274 = vmul.f32 %v1272, 0.5
          %v1275 = vmul.f32 %v1273, 0.5
          %v1276 = vadd.f32 %v1274, 0.5
          %v1277 = vadd.f32 %v1275, 0.5
          %v1278 = vmul.f32 %v1268, %v1276
          %v1279 = vmul.f32 %v1269, %v1277
          %s1280 = sadd.s32 %s312, 3
          %v1281 = vpack.c.bf16 %v1279, %v1278
          %1282 = vst [vmem:[#allocation2 + $0x8] sm:$0xff] %v1281
          %v1283 = vld [vmem:[#allocation2] sm:$0x1]
          %v1284 = vsel %vm322, 0, %v1283
          %1285 = vst [vmem:[#allocation2] sm:$0x1] %v1284
          %v1287 = vshrl.u32 %v1281, 16
          %v1289 = vrot.slane %v1287, 7
          %v1290 = vshll.u32 %v1281, 16
          %v1292 = vor.u32 %v1289, %v1290
          %v1294 = vld [vmem:[#allocation2] sm:$0xff]
          %v1295 = vsel %vm336, %v1292, %v1294
          %1296 = vst [vmem:[#allocation2] sm:$0xff] %v1295
          %v1297 = vrot.slane %v1290, 1
          %v1298 = vor.u32 %v1287, %v1297
          %v1300 = vld [vmem:[#allocation2 + $0x10] sm:$0xff]
          %v1301 = vsel %vm344, %v1298, %v1300
          %1302 = vst [vmem:[#allocation2 + $0x10] sm:$0xff] %v1301
          %v1303 = vld [vmem:[#allocation2 + $0x10] sm:$0x80]
          %v1304 = vsel %vm350, 0, %v1303
          %1305 = vst [vmem:[#allocation2 + $0x10] sm:$0x80] %v1304
          %s1306 = smul.u32 %s1280, 48
          %s1307 = smul.addr %s1306, 4
          %s1308 = scalar_lea.vmem [#allocation6], %s1307
          %v1309 = vld [vmem:[%s1308] sm:$0xf]
          %v1310 = vld [vmem:[%s1308 + $0x4] sm:$0xf]
          %v1311 = vld [vmem:[%s1308 + $0x8] sm:$0xf]
          %v1312 = vld [vmem:[%s1308 + $0xc] sm:$0xf]
          %v1313 = vld [vmem:[%s1308 + $0x10] sm:$0xf]
          %v1314 = vld [vmem:[%s1308 + $0x14] sm:$0xf]
          %v1315 = vld [vmem:[%s1308 + $0x18] sm:$0xf]
          %v1316 = vld [vmem:[%s1308 + $0x1c] sm:$0xf]
          %v1317 = vld [vmem:[%s1308 + $0x20] sm:$0xf]
          %v1318 = vld [vmem:[%s1308 + $0x24] sm:$0xf]
          %v1319 = vld [vmem:[%s1308 + $0x28] sm:$0xf]
          %v1320 = vld [vmem:[%s1308 + $0x2c] sm:$0xf]
          %v1321 = vld [vmem:[%s1308 + $0x30] sm:$0xf]
          %v1322 = vld [vmem:[%s1308 + $0x34] sm:$0xf]
          %v1323 = vld [vmem:[%s1308 + $0x38] sm:$0xf]
          %v1324 = vld [vmem:[%s1308 + $0x3c] sm:$0xf]
          %v1325 = vld [vmem:[%s1308 + $0x40] sm:$0xf]
          %v1326 = vld [vmem:[%s1308 + $0x44] sm:$0xf]
          %v1327 = vld [vmem:[%s1308 + $0x48] sm:$0xf]
          %v1328 = vld [vmem:[%s1308 + $0x4c] sm:$0xf]
          %v1329 = vld [vmem:[%s1308 + $0x50] sm:$0xf]
          %v1330 = vld [vmem:[%s1308 + $0x54] sm:$0xf]
          %v1331 = vld [vmem:[%s1308 + $0x58] sm:$0xf]
          %v1332 = vld [vmem:[%s1308 + $0x5c] sm:$0xf]
          %v1333 = vld [vmem:[%s1308 + $0x60] sm:$0xf]
          %v1334 = vld [vmem:[%s1308 + $0x64] sm:$0xf]
          %v1335 = vld [vmem:[%s1308 + $0x68] sm:$0xf]
          %v1336 = vld [vmem:[%s1308 + $0x6c] sm:$0xf]
          %v1337 = vld [vmem:[%s1308 + $0x70] sm:$0xf]
          %v1338 = vld [vmem:[%s1308 + $0x74] sm:$0xf]
          %v1339 = vld [vmem:[%s1308 + $0x78] sm:$0xf]
          %v1340 = vld [vmem:[%s1308 + $0x7c] sm:$0xf]
          %v1341 = vld [vmem:[%s1308 + $0x80] sm:$0xf]
          %v1342 = vld [vmem:[%s1308 + $0x84] sm:$0xf]
          %v1343 = vld [vmem:[%s1308 + $0x88] sm:$0xf]
          %v1344 = vld [vmem:[%s1308 + $0x8c] sm:$0xf]
          %v1345 = vld [vmem:[%s1308 + $0x90] sm:$0xf]
          %v1346 = vld [vmem:[%s1308 + $0x94] sm:$0xf]
          %v1347 = vld [vmem:[%s1308 + $0x98] sm:$0xf]
          %v1348 = vld [vmem:[%s1308 + $0x9c] sm:$0xf]
          %v1349 = vld [vmem:[%s1308 + $0xa0] sm:$0xf]
          %v1350 = vld [vmem:[%s1308 + $0xa4] sm:$0xf]
          %v1351 = vld [vmem:[%s1308 + $0xa8] sm:$0xf]
          %v1352 = vld [vmem:[%s1308 + $0xac] sm:$0xf]
          %v1353 = vld [vmem:[%s1308 + $0xb0] sm:$0xf]
          %v1354 = vld [vmem:[%s1308 + $0xb4] sm:$0xf]
          %v1355 = vld [vmem:[%s1308 + $0xb8] sm:$0xf]
          %v1356 = vld [vmem:[%s1308 + $0xbc] sm:$0xf]
          %s1357 = scalar_lea.vmem [#allocation8], %s1280
          %v1358 = vld [vmem:[%s1357] sm:$0x1]
          %v1359 = vld [vmem:[#allocation2] sm:$0xff]
          %v1360 = vld [vmem:[#allocation2 + $0x8] sm:$0xff]
          %v1361 = vld [vmem:[#allocation2 + $0x10] sm:$0xff]
          %v1362 = vlaneseq
          %v1363 = vshrl.u32 %v1362, 7
          %v1364 = vsub.s32 0, %v1363
          %v1365 = vrot.slane %v1358, %v1364
          %v1414 = vunpack.c.l.b16 %v1309
          %v1415 = vunpack.c.l.b16 %v1310
          %v1416 = vunpack.c.l.b16 %v1311
          %v1417 = vunpack.c.l.b16 %v1312
          %v1418 = vunpack.c.l.b16 %v1313
          %v1419 = vunpack.c.l.b16 %v1314
          %v1420 = vunpack.c.l.b16 %v1315
          %v1421 = vunpack.c.l.b16 %v1316
          %v1422 = vunpack.c.l.b16 %v1317
          %v1423 = vunpack.c.l.b16 %v1318
          %v1424 = vunpack.c.l.b16 %v1319
          %v1425 = vunpack.c.l.b16 %v1320
          %v1426 = vunpack.c.l.b16 %v1321
          %v1427 = vunpack.c.l.b16 %v1322
          %v1428 = vunpack.c.l.b16 %v1323
          %v1429 = vunpack.c.l.b16 %v1324
          %v1430 = vunpack.c.l.b16 %v1325
          %v1431 = vunpack.c.l.b16 %v1326
          %v1432 = vunpack.c.l.b16 %v1327
          %v1433 = vunpack.c.l.b16 %v1328
          %v1434 = vunpack.c.l.b16 %v1329
          %v1435 = vunpack.c.l.b16 %v1330
          %v1436 = vunpack.c.l.b16 %v1331
          %v1437 = vunpack.c.l.b16 %v1332
          %v1438 = vunpack.c.l.b16 %v1333
          %v1439 = vunpack.c.l.b16 %v1334
          %v1440 = vunpack.c.l.b16 %v1335
          %v1441 = vunpack.c.l.b16 %v1336
          %v1442 = vunpack.c.l.b16 %v1337
          %v1443 = vunpack.c.l.b16 %v1338
          %v1444 = vunpack.c.l.b16 %v1339
          %v1445 = vunpack.c.l.b16 %v1340
          %v1446 = vunpack.c.l.b16 %v1341
          %v1447 = vunpack.c.l.b16 %v1342
          %v1448 = vunpack.c.l.b16 %v1343
          %v1449 = vunpack.c.l.b16 %v1344
          %v1450 = vunpack.c.l.b16 %v1345
          %v1451 = vunpack.c.l.b16 %v1346
          %v1452 = vunpack.c.l.b16 %v1347
          %v1453 = vunpack.c.l.b16 %v1348
          %v1454 = vunpack.c.l.b16 %v1349
          %v1455 = vunpack.c.l.b16 %v1350
          %v1456 = vunpack.c.l.b16 %v1351
          %v1457 = vunpack.c.l.b16 %v1352
          %v1458 = vunpack.c.l.b16 %v1353
          %v1459 = vunpack.c.l.b16 %v1354
          %v1460 = vunpack.c.l.b16 %v1355
          %v1461 = vunpack.c.l.b16 %v1356
          %v1462 = vpack.c.b16 %v1415, %v1414
          %v1463 = vpack.c.b16 %v1417, %v1416
          %v1464 = vpack.c.b16 %v1419, %v1418
          %v1465 = vpack.c.b16 %v1421, %v1420
          %v1466 = vpack.c.b16 %v1423, %v1422
          %v1467 = vpack.c.b16 %v1425, %v1424
          %v1468 = vpack.c.b16 %v1427, %v1426
          %v1469 = vpack.c.b16 %v1429, %v1428
          %v1470 = vpack.c.b16 %v1431, %v1430
          %v1471 = vpack.c.b16 %v1433, %v1432
          %v1472 = vpack.c.b16 %v1435, %v1434
          %v1473 = vpack.c.b16 %v1437, %v1436
          %v1474 = vpack.c.b16 %v1439, %v1438
          %v1475 = vpack.c.b16 %v1441, %v1440
          %v1476 = vpack.c.b16 %v1443, %v1442
          %v1477 = vpack.c.b16 %v1445, %v1444
          %v1478 = vpack.c.b16 %v1447, %v1446
          %v1479 = vpack.c.b16 %v1449, %v1448
          %v1480 = vpack.c.b16 %v1451, %v1450
          %v1481 = vpack.c.b16 %v1453, %v1452
          %v1482 = vpack.c.b16 %v1455, %v1454
          %v1483 = vpack.c.b16 %v1457, %v1456
          %v1484 = vpack.c.b16 %v1459, %v1458
          %v1485 = vpack.c.b16 %v1461, %v1460
          %1510 = vmatprep.subr.bf16.mxu0 0
          %1511 = vmatpush1.bf16.msra.mxu0 %v1462
          %1512 = vmatprep.subr.bf16.mxu0 0
          %1513 = vmatpush1.bf16.msra.mxu0 %v1463
          %1514 = vmatprep.subr.bf16.mxu0 0
          %1515 = vmatpush1.bf16.msra.mxu0 %v1464
          %1516 = vmatprep.subr.bf16.mxu0 0
          %1517 = vmatpush1.bf16.msra.mxu0 %v1465
          %1518 = vmatprep.subr.bf16.mxu0 0
          %1519 = vmatpush1.bf16.msra.mxu0 %v1466
          %1520 = vmatprep.subr.bf16.mxu0 0
          %1521 = vmatpush1.bf16.msra.mxu0 %v1467
          %1522 = vmatprep.subr.bf16.mxu0 0
          %1523 = vmatpush1.bf16.msra.mxu0 %v1468
          %1524 = vmatprep.subr.bf16.mxu0 0
          %1525 = vmatpush1.bf16.msra.mxu0 %v1469
          %1526 = vmatprep.subr.bf16.mxu0 0
          %1527 = vmatpush1.bf16.msra.mxu0 %v1470
          %1528 = vmatprep.subr.bf16.mxu0 0
          %1529 = vmatpush1.bf16.msra.mxu0 %v1471
          %1530 = vmatprep.subr.bf16.mxu0 0
          %1531 = vmatpush1.bf16.msra.mxu0 %v1472
          %1532 = vmatprep.subr.bf16.mxu0 0
          %1533 = vmatpush1.bf16.msra.mxu0 %v1473
          %1534 = vmatprep.subr.bf16.mxu0 0
          %1535 = vmatpush1.bf16.msra.mxu0 %v1474
          %1536 = vmatprep.subr.bf16.mxu0 0
          %1537 = vmatpush1.bf16.msra.mxu0 %v1475
          %1538 = vmatprep.subr.bf16.mxu0 0
          %1539 = vmatpush1.bf16.msra.mxu0 %v1476
          %1540 = vmatprep.subr.bf16.mxu0 0
          %1541 = vmatpush1.bf16.msra.mxu0 %v1477
          %1542 = vmatprep.mubr.bf16.mxu0 %v1360
          %1543 = vmatmul.mubr.bf16.gmra.mrb[0].mxu0 %v1359
          %v1544 = vpop.f32.mrb[0].mxu0
          %v1545 = vadd.f32 %v1365, %v1544
          %v1546 = vpop.f32.mrb[0].mxu0
          %v1547 = vpop.f32.mrb[0].mxu0
          %v1548 = vadd.f32 %v1365, %v1547
          %v1549 = vpop.f32.mrb[0].mxu0
          %1550 = vdwg.mxu0
          %1551 = vmatprep.subr.bf16.mxu0 0
          %1552 = vmatpush1.bf16.msra.mxu0 %v1478
          %1553 = vmatprep.subr.bf16.mxu0 0
          %1554 = vmatpush1.bf16.msra.mxu0 %v1479
          %1555 = vmatprep.subr.bf16.mxu0 0
          %1556 = vmatpush1.bf16.msra.mxu0 %v1480
          %1557 = vmatprep.subr.bf16.mxu0 0
          %1558 = vmatpush1.bf16.msra.mxu0 %v1481
          %1559 = vmatprep.subr.bf16.mxu0 0
          %1560 = vmatpush1.bf16.msra.mxu0 %v1482
          %1561 = vmatprep.subr.bf16.mxu0 0
          %1562 = vmatpush1.bf16.msra.mxu0 %v1483
          %1563 = vmatprep.subr.bf16.mxu0 0
          %1564 = vmatpush1.bf16.msra.mxu0 %v1484
          %1565 = vmatprep.subr.bf16.mxu0 0
          %1566 = vmatpush1.bf16.msra.mxu0 %v1485
          %1567 = vmatprep.subr.bf16.mxu0 0
          %1568 = vmatpush1.bf16.msra.mxu0 0
          %1569 = vmatprep.subr.bf16.mxu0 0
          %1570 = vmatpush1.bf16.msra.mxu0 0
          %1571 = vmatprep.subr.bf16.mxu0 0
          %1572 = vmatpush1.bf16.msra.mxu0 0
          %1573 = vmatprep.subr.bf16.mxu0 0
          %1574 = vmatpush1.bf16.msra.mxu0 0
          %1575 = vmatprep.subr.bf16.mxu0 0
          %1576 = vmatpush1.bf16.msra.mxu0 0
          %1577 = vmatprep.subr.bf16.mxu0 0
          %1578 = vmatpush1.bf16.msra.mxu0 0
          %1579 = vmatprep.subr.bf16.mxu0 0
          %1580 = vmatpush1.bf16.msra.mxu0 0
          %1581 = vmatprep.subr.bf16.mxu0 0
          %1582 = vmatpush1.bf16.msra.mxu0 0
          %1583 = vmatprep.mubr.bf16.mxu0 0
          %1584 = vmatmul.mubr.bf16.gmra.mrb[0].mxu0 %v1361
          %v1585 = vpop.f32.mrb[0].mxu0
          %v1586 = vadd.f32 %v1545, %v1585
          %v1587 = vpop.f32.mrb[0].mxu0
          %v1588 = vpop.f32.mrb[0].mxu0
          %v1589 = vadd.f32 %v1548, %v1588
          %v1590 = vpop.f32.mrb[0].mxu0
          %1591 = vdwg.mxu0
          %v1592 = vtanh.pop %v1586
          %v1593 = vtanh.pop %v1589
          %v1594 = vadd.f32 %v966, %v1592
          %v1595 = vadd.f32 %v967, %v1593
          %v1596 = vadd.f32 %v968, %v1592
          %v1597 = vadd.f32 %v969, %v1593
          %s1598 = sadd.s32 %s312, 4
          %v1599 = vpack.c.bf16 %v1597, %v1596
          %1600 = vst [vmem:[#allocation2 + $0x8] sm:$0xff] %v1599
          %1601 = vst [vmem:[#allocation2] sm:$0x3] 0
          %v1603 = vrot.slane %v1599, 6
          %1605 = vst [vmem:[#allocation2] sm:$0xfc] %v1603
          %v1606 = vrot.slane %v1599, 2
          %1608 = vst [vmem:[#allocation2 + $0x10] sm:$0x3f] %v1606
          %1609 = vst [vmem:[#allocation2 + $0x10] sm:$0xc0] 0
          %s1610 = smul.u32 %s1598, 48
          %s1611 = smul.addr %s1610, 4
          %s1612 = scalar_lea.vmem [#allocation6], %s1611
          %v1613 = vld [vmem:[%s1612] sm:$0xf]
          %v1614 = vld [vmem:[%s1612 + $0x4] sm:$0xf]
          %v1615 = vld [vmem:[%s1612 + $0x8] sm:$0xf]
          %v1616 = vld [vmem:[%s1612 + $0xc] sm:$0xf]
          %v1617 = vld [vmem:[%s1612 + $0x10] sm:$0xf]
          %v1618 = vld [vmem:[%s1612 + $0x14] sm:$0xf]
          %v1619 = vld [vmem:[%s1612 + $0x18] sm:$0xf]
          %v1620 = vld [vmem:[%s1612 + $0x1c] sm:$0xf]
          %v1621 = vld [vmem:[%s1612 + $0x20] sm:$0xf]
          %v1622 = vld [vmem:[%s1612 + $0x24] sm:$0xf]
          %v1623 = vld [vmem:[%s1612 + $0x28] sm:$0xf]
          %v1624 = vld [vmem:[%s1612 + $0x2c] sm:$0xf]
          %v1625 = vld [vmem:[%s1612 + $0x30] sm:$0xf]
          %v1626 = vld [vmem:[%s1612 + $0x34] sm:$0xf]
          %v1627 = vld [vmem:[%s1612 + $0x38] sm:$0xf]
          %v1628 = vld [vmem:[%s1612 + $0x3c] sm:$0xf]
          %v1629 = vld [vmem:[%s1612 + $0x40] sm:$0xf]
          %v1630 = vld [vmem:[%s1612 + $0x44] sm:$0xf]
          %v1631 = vld [vmem:[%s1612 + $0x48] sm:$0xf]
          %v1632 = vld [vmem:[%s1612 + $0x4c] sm:$0xf]
          %v1633 = vld [vmem:[%s1612 + $0x50] sm:$0xf]
          %v1634 = vld [vmem:[%s1612 + $0x54] sm:$0xf]
          %v1635 = vld [vmem:[%s1612 + $0x58] sm:$0xf]
          %v1636 = vld [vmem:[%s1612 + $0x5c] sm:$0xf]
          %v1637 = vld [vmem:[%s1612 + $0x60] sm:$0xf]
          %v1638 = vld [vmem:[%s1612 + $0x64] sm:$0xf]
          %v1639 = vld [vmem:[%s1612 + $0x68] sm:$0xf]
          %v1640 = vld [vmem:[%s1612 + $0x6c] sm:$0xf]
          %v1641 = vld [vmem:[%s1612 + $0x70] sm:$0xf]
          %v1642 = vld [vmem:[%s1612 + $0x74] sm:$0xf]
          %v1643 = vld [vmem:[%s1612 + $0x78] sm:$0xf]
          %v1644 = vld [vmem:[%s1612 + $0x7c] sm:$0xf]
          %v1645 = vld [vmem:[%s1612 + $0x80] sm:$0xf]
          %v1646 = vld [vmem:[%s1612 + $0x84] sm:$0xf]
          %v1647 = vld [vmem:[%s1612 + $0x88] sm:$0xf]
          %v1648 = vld [vmem:[%s1612 + $0x8c] sm:$0xf]
          %v1649 = vld [vmem:[%s1612 + $0x90] sm:$0xf]
          %v1650 = vld [vmem:[%s1612 + $0x94] sm:$0xf]
          %v1651 = vld [vmem:[%s1612 + $0x98] sm:$0xf]
          %v1652 = vld [vmem:[%s1612 + $0x9c] sm:$0xf]
          %v1653 = vld [vmem:[%s1612 + $0xa0] sm:$0xf]
          %v1654 = vld [vmem:[%s1612 + $0xa4] sm:$0xf]
          %v1655 = vld [vmem:[%s1612 + $0xa8] sm:$0xf]
          %v1656 = vld [vmem:[%s1612 + $0xac] sm:$0xf]
          %v1657 = vld [vmem:[%s1612 + $0xb0] sm:$0xf]
          %v1658 = vld [vmem:[%s1612 + $0xb4] sm:$0xf]
          %v1659 = vld [vmem:[%s1612 + $0xb8] sm:$0xf]
          %v1660 = vld [vmem:[%s1612 + $0xbc] sm:$0xf]
          %s1661 = scalar_lea.vmem [#allocation8], %s1598
          %v1662 = vld [vmem:[%s1661] sm:$0x1]
          %v1663 = vld [vmem:[#allocation2] sm:$0xff]
          %v1664 = vld [vmem:[#allocation2 + $0x8] sm:$0xff]
          %v1665 = vld [vmem:[#allocation2 + $0x10] sm:$0xff]
          %v1666 = vlaneseq
          %v1667 = vshrl.u32 %v1666, 7
          %v1668 = vsub.s32 0, %v1667
          %v1669 = vrot.slane %v1662, %v1668
          %v1718 = vunpack.c.l.b16 %v1613
          %v1719 = vunpack.c.l.b16 %v1614
          %v1720 = vunpack.c.l.b16 %v1615
          %v1721 = vunpack.c.l.b16 %v1616
          %v1722 = vunpack.c.l.b16 %v1617
          %v1723 = vunpack.c.l.b16 %v1618
          %v1724 = vunpack.c.l.b16 %v1619
          %v1725 = vunpack.c.l.b16 %v1620
          %v1726 = vunpack.c.l.b16 %v1621
          %v1727 = vunpack.c.l.b16 %v1622
          %v1728 = vunpack.c.l.b16 %v1623
          %v1729 = vunpack.c.l.b16 %v1624
          %v1730 = vunpack.c.l.b16 %v1625
          %v1731 = vunpack.c.l.b16 %v1626
          %v1732 = vunpack.c.l.b16 %v1627
          %v1733 = vunpack.c.l.b16 %v1628
          %v1734 = vunpack.c.l.b16 %v1629
          %v1735 = vunpack.c.l.b16 %v1630
          %v1736 = vunpack.c.l.b16 %v1631
          %v1737 = vunpack.c.l.b16 %v1632
          %v1738 = vunpack.c.l.b16 %v1633
          %v1739 = vunpack.c.l.b16 %v1634
          %v1740 = vunpack.c.l.b16 %v1635
          %v1741 = vunpack.c.l.b16 %v1636
          %v1742 = vunpack.c.l.b16 %v1637
          %v1743 = vunpack.c.l.b16 %v1638
          %v1744 = vunpack.c.l.b16 %v1639
          %v1745 = vunpack.c.l.b16 %v1640
          %v1746 = vunpack.c.l.b16 %v1641
          %v1747 = vunpack.c.l.b16 %v1642
          %v1748 = vunpack.c.l.b16 %v1643
          %v1749 = vunpack.c.l.b16 %v1644
          %v1750 = vunpack.c.l.b16 %v1645
          %v1751 = vunpack.c.l.b16 %v1646
          %v1752 = vunpack.c.l.b16 %v1647
          %v1753 = vunpack.c.l.b16 %v1648
          %v1754 = vunpack.c.l.b16 %v1649
          %v1755 = vunpack.c.l.b16 %v1650
          %v1756 = vunpack.c.l.b16 %v1651
          %v1757 = vunpack.c.l.b16 %v1652
          %v1758 = vunpack.c.l.b16 %v1653
          %v1759 = vunpack.c.l.b16 %v1654
          %v1760 = vunpack.c.l.b16 %v1655
          %v1761 = vunpack.c.l.b16 %v1656
          %v1762 = vunpack.c.l.b16 %v1657
          %v1763 = vunpack.c.l.b16 %v1658
          %v1764 = vunpack.c.l.b16 %v1659
          %v1765 = vunpack.c.l.b16 %v1660
          %v1766 = vpack.c.b16 %v1719, %v1718
          %v1767 = vpack.c.b16 %v1721, %v1720
          %v1768 = vpack.c.b16 %v1723, %v1722
          %v1769 = vpack.c.b16 %v1725, %v1724
          %v1770 = vpack.c.b16 %v1727, %v1726
          %v1771 = vpack.c.b16 %v1729, %v1728
          %v1772 = vpack.c.b16 %v1731, %v1730
          %v1773 = vpack.c.b16 %v1733, %v1732
          %v1774 = vpack.c.b16 %v1735, %v1734
          %v1775 = vpack.c.b16 %v1737, %v1736
          %v1776 = vpack.c.b16 %v1739, %v1738
          %v1777 = vpack.c.b16 %v1741, %v1740
          %v1778 = vpack.c.b16 %v1743, %v1742
          %v1779 = vpack.c.b16 %v1745, %v1744
          %v1780 = vpack.c.b16 %v1747, %v1746
          %v1781 = vpack.c.b16 %v1749, %v1748
          %v1782 = vpack.c.b16 %v1751, %v1750
          %v1783 = vpack.c.b16 %v1753, %v1752
          %v1784 = vpack.c.b16 %v1755, %v1754
          %v1785 = vpack.c.b16 %v1757, %v1756
          %v1786 = vpack.c.b16 %v1759, %v1758
          %v1787 = vpack.c.b16 %v1761, %v1760
          %v1788 = vpack.c.b16 %v1763, %v1762
          %v1789 = vpack.c.b16 %v1765, %v1764
          %1814 = vmatprep.subr.bf16.mxu0 0
          %1815 = vmatpush1.bf16.msra.mxu0 %v1766
          %1816 = vmatprep.subr.bf16.mxu0 0
          %1817 = vmatpush1.bf16.msra.mxu0 %v1767
          %1818 = vmatprep.subr.bf16.mxu0 0
          %1819 = vmatpush1.bf16.msra.mxu0 %v1768
          %1820 = vmatprep.subr.bf16.mxu0 0
          %1821 = vmatpush1.bf16.msra.mxu0 %v1769
          %1822 = vmatprep.subr.bf16.mxu0 0
          %1823 = vmatpush1.bf16.msra.mxu0 %v1770
          %1824 = vmatprep.subr.bf16.mxu0 0
          %1825 = vmatpush1.bf16.msra.mxu0 %v1771
          %1826 = vmatprep.subr.bf16.mxu0 0
          %1827 = vmatpush1.bf16.msra.mxu0 %v1772
          %1828 = vmatprep.subr.bf16.mxu0 0
          %1829 = vmatpush1.bf16.msra.mxu0 %v1773
          %1830 = vmatprep.subr.bf16.mxu0 0
          %1831 = vmatpush1.bf16.msra.mxu0 %v1774
          %1832 = vmatprep.subr.bf16.mxu0 0
          %1833 = vmatpush1.bf16.msra.mxu0 %v1775
          %1834 = vmatprep.subr.bf16.mxu0 0
          %1835 = vmatpush1.bf16.msra.mxu0 %v1776
          %1836 = vmatprep.subr.bf16.mxu0 0
          %1837 = vmatpush1.bf16.msra.mxu0 %v1777
          %1838 = vmatprep.subr.bf16.mxu0 0
          %1839 = vmatpush1.bf16.msra.mxu0 %v1778
          %1840 = vmatprep.subr.bf16.mxu0 0
          %1841 = vmatpush1.bf16.msra.mxu0 %v1779
          %1842 = vmatprep.subr.bf16.mxu0 0
          %1843 = vmatpush1.bf16.msra.mxu0 %v1780
          %1844 = vmatprep.subr.bf16.mxu0 0
          %1845 = vmatpush1.bf16.msra.mxu0 %v1781
          %1846 = vmatprep.mubr.bf16.mxu0 %v1664
          %1847 = vmatmul.mubr.bf16.gmra.mrb[0].mxu0 %v1663
          %v1848 = vpop.f32.mrb[0].mxu0
          %v1849 = vadd.f32 %v1669, %v1848
          %v1850 = vpop.f32.mrb[0].mxu0
          %v1851 = vpop.f32.mrb[0].mxu0
          %v1852 = vadd.f32 %v1669, %v1851
          %v1853 = vpop.f32.mrb[0].mxu0
          %1854 = vdwg.mxu0
          %1855 = vmatprep.subr.bf16.mxu0 0
          %1856 = vmatpush1.bf16.msra.mxu0 %v1782
          %1857 = vmatprep.subr.bf16.mxu0 0
          %1858 = vmatpush1.bf16.msra.mxu0 %v1783
          %1859 = vmatprep.subr.bf16.mxu0 0
          %1860 = vmatpush1.bf16.msra.mxu0 %v1784
          %1861 = vmatprep.subr.bf16.mxu0 0
          %1862 = vmatpush1.bf16.msra.mxu0 %v1785
          %1863 = vmatprep.subr.bf16.mxu0 0
          %1864 = vmatpush1.bf16.msra.mxu0 %v1786
          %1865 = vmatprep.subr.bf16.mxu0 0
          %1866 = vmatpush1.bf16.msra.mxu0 %v1787
          %1867 = vmatprep.subr.bf16.mxu0 0
          %1868 = vmatpush1.bf16.msra.mxu0 %v1788
          %1869 = vmatprep.subr.bf16.mxu0 0
          %1870 = vmatpush1.bf16.msra.mxu0 %v1789
          %1871 = vmatprep.subr.bf16.mxu0 0
          %1872 = vmatpush1.bf16.msra.mxu0 0
          %1873 = vmatprep.subr.bf16.mxu0 0
          %1874 = vmatpush1.bf16.msra.mxu0 0
          %1875 = vmatprep.subr.bf16.mxu0 0
          %1876 = vmatpush1.bf16.msra.mxu0 0
          %1877 = vmatprep.subr.bf16.mxu0 0
          %1878 = vmatpush1.bf16.msra.mxu0 0
          %1879 = vmatprep.subr.bf16.mxu0 0
          %1880 = vmatpush1.bf16.msra.mxu0 0
          %1881 = vmatprep.subr.bf16.mxu0 0
          %1882 = vmatpush1.bf16.msra.mxu0 0
          %1883 = vmatprep.subr.bf16.mxu0 0
          %1884 = vmatpush1.bf16.msra.mxu0 0
          %1885 = vmatprep.subr.bf16.mxu0 0
          %1886 = vmatpush1.bf16.msra.mxu0 0
          %1887 = vmatprep.mubr.bf16.mxu0 0
          %1888 = vmatmul.mubr.bf16.gmra.mrb[0].mxu0 %v1665
          %v1889 = vpop.f32.mrb[0].mxu0
          %v1890 = vadd.f32 %v1849, %v1889
          %v1891 = vpop.f32.mrb[0].mxu0
          %v1892 = vpop.f32.mrb[0].mxu0
          %v1893 = vadd.f32 %v1852, %v1892
          %v1894 = vpop.f32.mrb[0].mxu0
          %1895 = vdwg.mxu0
          %v1896 = vtanh.pop %v1890
          %v1897 = vtanh.pop %v1893
          %v1898 = vmul.f32 %v1890, 0.5
          %v1899 = vmul.f32 %v1893, 0.5
          %v1900 = vtanh.pop %v1898
          %v1901 = vtanh.pop %v1899
          %v1902 = vmul.f32 %v1900, 0.5
          %v1903 = vmul.f32 %v1901, 0.5
          %v1904 = vadd.f32 %v1902, 0.5
          %v1905 = vadd.f32 %v1903, 0.5
          %v1906 = vmul.f32 %v1896, %v1904
          %v1907 = vmul.f32 %v1897, %v1905
          %s1908 = sadd.s32 %s312, 5
          %v1909 = vpack.c.bf16 %v1907, %v1906
          %1910 = vst [vmem:[#allocation2 + $0x8] sm:$0xff] %v1909
          %v1911 = vld [vmem:[#allocation2] sm:$0x1]
          %v1912 = vsel %vm322, 0, %v1911
          %1913 = vst [vmem:[#allocation2] sm:$0x1] %v1912
          %v1915 = vshrl.u32 %v1909, 16
          %v1917 = vrot.slane %v1915, 7
          %v1918 = vshll.u32 %v1909, 16
          %v1920 = vor.u32 %v1917, %v1918
          %v1922 = vld [vmem:[#allocation2] sm:$0xff]
          %v1923 = vsel %vm336, %v1920, %v1922
          %1924 = vst [vmem:[#allocation2] sm:$0xff] %v1923
          %v1925 = vrot.slane %v1918, 1
          %v1926 = vor.u32 %v1915, %v1925
          %v1928 = vld [vmem:[#allocation2 + $0x10] sm:$0xff]
          %v1929 = vsel %vm344, %v1926, %v1928
          %1930 = vst [vmem:[#allocation2 + $0x10] sm:$0xff] %v1929
          %v1931 = vld [vmem:[#allocation2 + $0x10] sm:$0x80]
          %v1932 = vsel %vm350, 0, %v1931
          %1933 = vst [vmem:[#allocation2 + $0x10] sm:$0x80] %v1932
          %s1934 = smul.u32 %s1908, 48
          %s1935 = smul.addr %s1934, 4
          %s1936 = scalar_lea.vmem [#allocation6], %s1935
          %v1937 = vld [vmem:[%s1936] sm:$0xf]
          %v1938 = vld [vmem:[%s1936 + $0x4] sm:$0xf]
          %v1939 = vld [vmem:[%s1936 + $0x8] sm:$0xf]
          %v1940 = vld [vmem:[%s1936 + $0xc] sm:$0xf]
          %v1941 = vld [vmem:[%s1936 + $0x10] sm:$0xf]
          %v1942 = vld [vmem:[%s1936 + $0x14] sm:$0xf]
          %v1943 = vld [vmem:[%s1936 + $0x18] sm:$0xf]
          %v1944 = vld [vmem:[%s1936 + $0x1c] sm:$0xf]
          %v1945 = vld [vmem:[%s1936 + $0x20] sm:$0xf]
          %v1946 = vld [vmem:[%s1936 + $0x24] sm:$0xf]
          %v1947 = vld [vmem:[%s1936 + $0x28] sm:$0xf]
          %v1948 = vld [vmem:[%s1936 + $0x2c] sm:$0xf]
          %v1949 = vld [vmem:[%s1936 + $0x30] sm:$0xf]
          %v1950 = vld [vmem:[%s1936 + $0x34] sm:$0xf]
          %v1951 = vld [vmem:[%s1936 + $0x38] sm:$0xf]
          %v1952 = vld [vmem:[%s1936 + $0x3c] sm:$0xf]
          %v1953 = vld [vmem:[%s1936 + $0x40] sm:$0xf]
          %v1954 = vld [vmem:[%s1936 + $0x44] sm:$0xf]
          %v1955 = vld [vmem:[%s1936 + $0x48] sm:$0xf]
          %v1956 = vld [vmem:[%s1936 + $0x4c] sm:$0xf]
          %v1957 = vld [vmem:[%s1936 + $0x50] sm:$0xf]
          %v1958 = vld [vmem:[%s1936 + $0x54] sm:$0xf]
          %v1959 = vld [vmem:[%s1936 + $0x58] sm:$0xf]
          %v1960 = vld [vmem:[%s1936 + $0x5c] sm:$0xf]
          %v1961 = vld [vmem:[%s1936 + $0x60] sm:$0xf]
          %v1962 = vld [vmem:[%s1936 + $0x64] sm:$0xf]
          %v1963 = vld [vmem:[%s1936 + $0x68] sm:$0xf]
          %v1964 = vld [vmem:[%s1936 + $0x6c] sm:$0xf]
          %v1965 = vld [vmem:[%s1936 + $0x70] sm:$0xf]
          %v1966 = vld [vmem:[%s1936 + $0x74] sm:$0xf]
          %v1967 = vld [vmem:[%s1936 + $0x78] sm:$0xf]
          %v1968 = vld [vmem:[%s1936 + $0x7c] sm:$0xf]
          %v1969 = vld [vmem:[%s1936 + $0x80] sm:$0xf]
          %v1970 = vld [vmem:[%s1936 + $0x84] sm:$0xf]
          %v1971 = vld [vmem:[%s1936 + $0x88] sm:$0xf]
          %v1972 = vld [vmem:[%s1936 + $0x8c] sm:$0xf]
          %v1973 = vld [vmem:[%s1936 + $0x90] sm:$0xf]
          %v1974 = vld [vmem:[%s1936 + $0x94] sm:$0xf]
          %v1975 = vld [vmem:[%s1936 + $0x98] sm:$0xf]
          %v1976 = vld [vmem:[%s1936 + $0x9c] sm:$0xf]
          %v1977 = vld [vmem:[%s1936 + $0xa0] sm:$0xf]
          %v1978 = vld [vmem:[%s1936 + $0xa4] sm:$0xf]
          %v1979 = vld [vmem:[%s1936 + $0xa8] sm:$0xf]
          %v1980 = vld [vmem:[%s1936 + $0xac] sm:$0xf]
          %v1981 = vld [vmem:[%s1936 + $0xb0] sm:$0xf]
          %v1982 = vld [vmem:[%s1936 + $0xb4] sm:$0xf]
          %v1983 = vld [vmem:[%s1936 + $0xb8] sm:$0xf]
          %v1984 = vld [vmem:[%s1936 + $0xbc] sm:$0xf]
          %s1985 = scalar_lea.vmem [#allocation8], %s1908
          %v1986 = vld [vmem:[%s1985] sm:$0x1]
          %v1987 = vld [vmem:[#allocation2] sm:$0xff]
          %v1988 = vld [vmem:[#allocation2 + $0x8] sm:$0xff]
          %v1989 = vld [vmem:[#allocation2 + $0x10] sm:$0xff]
          %v1990 = vlaneseq
          %v1991 = vshrl.u32 %v1990, 7
          %v1992 = vsub.s32 0, %v1991
          %v1993 = vrot.slane %v1986, %v1992
          %v2042 = vunpack.c.l.b16 %v1937
          %v2043 = vunpack.c.l.b16 %v1938
          %v2044 = vunpack.c.l.b16 %v1939
          %v2045 = vunpack.c.l.b16 %v1940
          %v2046 = vunpack.c.l.b16 %v1941
          %v2047 = vunpack.c.l.b16 %v1942
          %v2048 = vunpack.c.l.b16 %v1943
          %v2049 = vunpack.c.l.b16 %v1944
          %v2050 = vunpack.c.l.b16 %v1945
          %v2051 = vunpack.c.l.b16 %v1946
          %v2052 = vunpack.c.l.b16 %v1947
          %v2053 = vunpack.c.l.b16 %v1948
          %v2054 = vunpack.c.l.b16 %v1949
          %v2055 = vunpack.c.l.b16 %v1950
          %v2056 = vunpack.c.l.b16 %v1951
          %v2057 = vunpack.c.l.b16 %v1952
          %v2058 = vunpack.c.l.b16 %v1953
          %v2059 = vunpack.c.l.b16 %v1954
          %v2060 = vunpack.c.l.b16 %v1955
          %v2061 = vunpack.c.l.b16 %v1956
          %v2062 = vunpack.c.l.b16 %v1957
          %v2063 = vunpack.c.l.b16 %v1958
          %v2064 = vunpack.c.l.b16 %v1959
          %v2065 = vunpack.c.l.b16 %v1960
          %v2066 = vunpack.c.l.b16 %v1961
          %v2067 = vunpack.c.l.b16 %v1962
          %v2068 = vunpack.c.l.b16 %v1963
          %v2069 = vunpack.c.l.b16 %v1964
          %v2070 = vunpack.c.l.b16 %v1965
          %v2071 = vunpack.c.l.b16 %v1966
          %v2072 = vunpack.c.l.b16 %v1967
          %v2073 = vunpack.c.l.b16 %v1968
          %v2074 = vunpack.c.l.b16 %v1969
          %v2075 = vunpack.c.l.b16 %v1970
          %v2076 = vunpack.c.l.b16 %v1971
          %v2077 = vunpack.c.l.b16 %v1972
          %v2078 = vunpack.c.l.b16 %v1973
          %v2079 = vunpack.c.l.b16 %v1974
          %v2080 = vunpack.c.l.b16 %v1975
          %v2081 = vunpack.c.l.b16 %v1976
          %v2082 = vunpack.c.l.b16 %v1977
          %v2083 = vunpack.c.l.b16 %v1978
          %v2084 = vunpack.c.l.b16 %v1979
          %v2085 = vunpack.c.l.b16 %v1980
          %v2086 = vunpack.c.l.b16 %v1981
          %v2087 = vunpack.c.l.b16 %v1982
          %v2088 = vunpack.c.l.b16 %v1983
          %v2089 = vunpack.c.l.b16 %v1984
          %v2090 = vpack.c.b16 %v2043, %v2042
          %v2091 = vpack.c.b16 %v2045, %v2044
          %v2092 = vpack.c.b16 %v2047, %v2046
          %v2093 = vpack.c.b16 %v2049, %v2048
          %v2094 = vpack.c.b16 %v2051, %v2050
          %v2095 = vpack.c.b16 %v2053, %v2052
          %v2096 = vpack.c.b16 %v2055, %v2054
          %v2097 = vpack.c.b16 %v2057, %v2056
          %v2098 = vpack.c.b16 %v2059, %v2058
          %v2099 = vpack.c.b16 %v2061, %v2060
          %v2100 = vpack.c.b16 %v2063, %v2062
          %v2101 = vpack.c.b16 %v2065, %v2064
          %v2102 = vpack.c.b16 %v2067, %v2066
          %v2103 = vpack.c.b16 %v2069, %v2068
          %v2104 = vpack.c.b16 %v2071, %v2070
          %v2105 = vpack.c.b16 %v2073, %v2072
          %v2106 = vpack.c.b16 %v2075, %v2074
          %v2107 = vpack.c.b16 %v2077, %v2076
          %v2108 = vpack.c.b16 %v2079, %v2078
          %v2109 = vpack.c.b16 %v2081, %v2080
          %v2110 = vpack.c.b16 %v2083, %v2082
          %v2111 = vpack.c.b16 %v2085, %v2084
          %v2112 = vpack.c.b16 %v2087, %v2086
          %v2113 = vpack.c.b16 %v2089, %v2088
          %2138 = vmatprep.subr.bf16.mxu0 0
          %2139 = vmatpush1.bf16.msra.mxu0 %v2090
          %2140 = vmatprep.subr.bf16.mxu0 0
          %2141 = vmatpush1.bf16.msra.mxu0 %v2091
          %2142 = vmatprep.subr.bf16.mxu0 0
          %2143 = vmatpush1.bf16.msra.mxu0 %v2092
          %2144 = vmatprep.subr.bf16.mxu0 0
          %2145 = vmatpush1.bf16.msra.mxu0 %v2093
          %2146 = vmatprep.subr.bf16.mxu0 0
          %2147 = vmatpush1.bf16.msra.mxu0 %v2094
          %2148 = vmatprep.subr.bf16.mxu0 0
          %2149 = vmatpush1.bf16.msra.mxu0 %v2095
          %2150 = vmatprep.subr.bf16.mxu0 0
          %2151 = vmatpush1.bf16.msra.mxu0 %v2096
          %2152 = vmatprep.subr.bf16.mxu0 0
          %2153 = vmatpush1.bf16.msra.mxu0 %v2097
          %2154 = vmatprep.subr.bf16.mxu0 0
          %2155 = vmatpush1.bf16.msra.mxu0 %v2098
          %2156 = vmatprep.subr.bf16.mxu0 0
          %2157 = vmatpush1.bf16.msra.mxu0 %v2099
          %2158 = vmatprep.subr.bf16.mxu0 0
          %2159 = vmatpush1.bf16.msra.mxu0 %v2100
          %2160 = vmatprep.subr.bf16.mxu0 0
          %2161 = vmatpush1.bf16.msra.mxu0 %v2101
          %2162 = vmatprep.subr.bf16.mxu0 0
          %2163 = vmatpush1.bf16.msra.mxu0 %v2102
          %2164 = vmatprep.subr.bf16.mxu0 0
          %2165 = vmatpush1.bf16.msra.mxu0 %v2103
          %2166 = vmatprep.subr.bf16.mxu0 0
          %2167 = vmatpush1.bf16.msra.mxu0 %v2104
          %2168 = vmatprep.subr.bf16.mxu0 0
          %2169 = vmatpush1.bf16.msra.mxu0 %v2105
          %2170 = vmatprep.mubr.bf16.mxu0 %v1988
          %2171 = vmatmul.mubr.bf16.gmra.mrb[0].mxu0 %v1987
          %v2172 = vpop.f32.mrb[0].mxu0
          %v2173 = vadd.f32 %v1993, %v2172
          %v2174 = vpop.f32.mrb[0].mxu0
          %v2175 = vpop.f32.mrb[0].mxu0
          %v2176 = vadd.f32 %v1993, %v2175
          %v2177 = vpop.f32.mrb[0].mxu0
          %2178 = vdwg.mxu0
          %2179 = vmatprep.subr.bf16.mxu0 0
          %2180 = vmatpush1.bf16.msra.mxu0 %v2106
          %2181 = vmatprep.subr.bf16.mxu0 0
          %2182 = vmatpush1.bf16.msra.mxu0 %v2107
          %2183 = vmatprep.subr.bf16.mxu0 0
          %2184 = vmatpush1.bf16.msra.mxu0 %v2108
          %2185 = vmatprep.subr.bf16.mxu0 0
          %2186 = vmatpush1.bf16.msra.mxu0 %v2109
          %2187 = vmatprep.subr.bf16.mxu0 0
          %2188 = vmatpush1.bf16.msra.mxu0 %v2110
          %2189 = vmatprep.subr.bf16.mxu0 0
          %2190 = vmatpush1.bf16.msra.mxu0 %v2111
          %2191 = vmatprep.subr.bf16.mxu0 0
          %2192 = vmatpush1.bf16.msra.mxu0 %v2112
          %2193 = vmatprep.subr.bf16.mxu0 0
          %2194 = vmatpush1.bf16.msra.mxu0 %v2113
          %2195 = vmatprep.subr.bf16.mxu0 0
          %2196 = vmatpush1.bf16.msra.mxu0 0
          %2197 = vmatprep.subr.bf16.mxu0 0
          %2198 = vmatpush1.bf16.msra.mxu0 0
          %2199 = vmatprep.subr.bf16.mxu0 0
          %2200 = vmatpush1.bf16.msra.mxu0 0
          %2201 = vmatprep.subr.bf16.mxu0 0
          %2202 = vmatpush1.bf16.msra.mxu0 0
          %2203 = vmatprep.subr.bf16.mxu0 0
          %2204 = vmatpush1.bf16.msra.mxu0 0
          %2205 = vmatprep.subr.bf16.mxu0 0
          %2206 = vmatpush1.bf16.msra.mxu0 0
          %2207 = vmatprep.subr.bf16.mxu0 0
          %2208 = vmatpush1.bf16.msra.mxu0 0
          %2209 = vmatprep.subr.bf16.mxu0 0
          %2210 = vmatpush1.bf16.msra.mxu0 0
          %2211 = vmatprep.mubr.bf16.mxu0 0
          %2212 = vmatmul.mubr.bf16.gmra.mrb[0].mxu0 %v1989
          %v2213 = vpop.f32.mrb[0].mxu0
          %v2214 = vadd.f32 %v2173, %v2213
          %v2215 = vpop.f32.mrb[0].mxu0
          %v2216 = vpop.f32.mrb[0].mxu0
          %v2217 = vadd.f32 %v2176, %v2216
          %v2218 = vpop.f32.mrb[0].mxu0
          %2219 = vdwg.mxu0
          %v2220 = vtanh.pop %v2214
          %v2221 = vtanh.pop %v2217
          %v2222 = vadd.f32 %v1594, %v2220
          %v2223 = vadd.f32 %v1595, %v2221
          %v2224 = vadd.f32 %v310, %v2222
          %v2225 = vadd.f32 %v311, %v2223
        $region65: #{tpu_custom_call.1} parent=39 // loop_footer
          %s309 = sadd.s32 1, %s305
        $region66: #{tpu_custom_call.1} parent=39 // loop_footer_branch
          %304 = sbr.rel target = $region62
        $region67: #{tpu_custom_call.1} parent=39 // loop_exit
          _
        %v2226 = vpack.c.bf16 %v311, %v310
        %2227 = vst [vmem:[#allocation2 + $0x8] sm:$0xff] %v2226
        %vm2228 = vcmask 1040384
        %vm2229 = vsmask.f32 256
        %vm2230 = vmand %vm2228, %vm2229
        %v2231 = vld [vmem:[#allocation2] sm:$0x1]
        %v2232 = vsel %vm2230, 0, %v2231
        %2233 = vst [vmem:[#allocation2] sm:$0x1] %v2232
        %v2235 = vshrl.u32 %v2226, 16
        %v2237 = vrot.slane %v2235, 7
        %v2238 = vshll.u32 %v2226, 16
        %v2240 = vor.u32 %v2237, %v2238
        %vm2242 = vcmask 1047552
        %vm2243 = vsmask.f32 7938
        %vm2244 = vmand %vm2242, %vm2243
        %v2245 = vld [vmem:[#allocation2] sm:$0xff]
        %v2246 = vsel %vm2244, %v2240, %v2245
        %2247 = vst [vmem:[#allocation2] sm:$0xff] %v2246
        %v2248 = vrot.slane %v2238, 1
        %v2249 = vor.u32 %v2235, %v2248
        %vm2251 = vsmask.f32 7424
        %vm2252 = vmand %vm2242, %vm2251
        %v2253 = vld [vmem:[#allocation2 + $0x10] sm:$0xff]
        %v2254 = vsel %vm2252, %v2249, %v2253
        %2255 = vst [vmem:[#allocation2 + $0x10] sm:$0xff] %v2254
        %vm2256 = vcmask 1047559
        %vm2257 = vsmask.f32 7966
        %vm2258 = vmand %vm2256, %vm2257
        %v2259 = vld [vmem:[#allocation2 + $0x10] sm:$0x80]
        %v2260 = vsel %vm2258, 0, %v2259
        %2261 = vst [vmem:[#allocation2 + $0x10] sm:$0x80] %v2260
        %s2262 = scalar_lea.vmem [#allocation6], 2304
        %v2263 = vld [vmem:[%s2262] sm:$0xf]
        %v2264 = vld [vmem:[%s2262 + $0x4] sm:$0xf]
        %v2265 = vld [vmem:[%s2262 + $0x8] sm:$0xf]
        %v2266 = vld [vmem:[%s2262 + $0xc] sm:$0xf]
        %v2267 = vld [vmem:[%s2262 + $0x10] sm:$0xf]
        %v2268 = vld [vmem:[%s2262 + $0x14] sm:$0xf]
        %v2269 = vld [vmem:[%s2262 + $0x18] sm:$0xf]
        %v2270 = vld [vmem:[%s2262 + $0x1c] sm:$0xf]
        %v2271 = vld [vmem:[%s2262 + $0x20] sm:$0xf]
        %v2272 = vld [vmem:[%s2262 + $0x24] sm:$0xf]
        %v2273 = vld [vmem:[%s2262 + $0x28] sm:$0xf]
        %v2274 = vld [vmem:[%s2262 + $0x2c] sm:$0xf]
        %v2275 = vld [vmem:[%s2262 + $0x30] sm:$0xf]
        %v2276 = vld [vmem:[%s2262 + $0x34] sm:$0xf]
        %v2277 = vld [vmem:[%s2262 + $0x38] sm:$0xf]
        %v2278 = vld [vmem:[%s2262 + $0x3c] sm:$0xf]
        %v2279 = vld [vmem:[%s2262 + $0x40] sm:$0xf]
        %v2280 = vld [vmem:[%s2262 + $0x44] sm:$0xf]
        %v2281 = vld [vmem:[%s2262 + $0x48] sm:$0xf]
        %v2282 = vld [vmem:[%s2262 + $0x4c] sm:$0xf]
        %v2283 = vld [vmem:[%s2262 + $0x50] sm:$0xf]
        %v2284 = vld [vmem:[%s2262 + $0x54] sm:$0xf]
        %v2285 = vld [vmem:[%s2262 + $0x58] sm:$0xf]
        %v2286 = vld [vmem:[%s2262 + $0x5c] sm:$0xf]
        %v2287 = vld [vmem:[%s2262 + $0x60] sm:$0xf]
        %v2288 = vld [vmem:[%s2262 + $0x64] sm:$0xf]
        %v2289 = vld [vmem:[%s2262 + $0x68] sm:$0xf]
        %v2290 = vld [vmem:[%s2262 + $0x6c] sm:$0xf]
        %v2291 = vld [vmem:[%s2262 + $0x70] sm:$0xf]
        %v2292 = vld [vmem:[%s2262 + $0x74] sm:$0xf]
        %v2293 = vld [vmem:[%s2262 + $0x78] sm:$0xf]
        %v2294 = vld [vmem:[%s2262 + $0x7c] sm:$0xf]
        %v2295 = vld [vmem:[%s2262 + $0x80] sm:$0xf]
        %v2296 = vld [vmem:[%s2262 + $0x84] sm:$0xf]
        %v2297 = vld [vmem:[%s2262 + $0x88] sm:$0xf]
        %v2298 = vld [vmem:[%s2262 + $0x8c] sm:$0xf]
        %v2299 = vld [vmem:[%s2262 + $0x90] sm:$0xf]
        %v2300 = vld [vmem:[%s2262 + $0x94] sm:$0xf]
        %v2301 = vld [vmem:[%s2262 + $0x98] sm:$0xf]
        %v2302 = vld [vmem:[%s2262 + $0x9c] sm:$0xf]
        %v2303 = vld [vmem:[%s2262 + $0xa0] sm:$0xf]
        %v2304 = vld [vmem:[%s2262 + $0xa4] sm:$0xf]
        %v2305 = vld [vmem:[%s2262 + $0xa8] sm:$0xf]
        %v2306 = vld [vmem:[%s2262 + $0xac] sm:$0xf]
        %v2307 = vld [vmem:[%s2262 + $0xb0] sm:$0xf]
        %v2308 = vld [vmem:[%s2262 + $0xb4] sm:$0xf]
        %v2309 = vld [vmem:[%s2262 + $0xb8] sm:$0xf]
        %v2310 = vld [vmem:[%s2262 + $0xbc] sm:$0xf]
        %v2311 = vld [vmem:[#allocation8 + $0xc] sm:$0x1]
        %v2312 = vld [vmem:[#allocation2] sm:$0xff]
        %v2313 = vld [vmem:[#allocation2 + $0x8] sm:$0xff]
        %v2314 = vld [vmem:[#allocation2 + $0x10] sm:$0xff]
        %v2315 = vlaneseq
        %v2316 = vshrl.u32 %v2315, 7
        %v2317 = vsub.s32 0, %v2316
        %v2318 = vrot.slane %v2311, %v2317
        %v2367 = vunpack.c.l.b16 %v2263
        %v2368 = vunpack.c.l.b16 %v2264
        %v2369 = vunpack.c.l.b16 %v2265
        %v2370 = vunpack.c.l.b16 %v2266
        %v2371 = vunpack.c.l.b16 %v2267
        %v2372 = vunpack.c.l.b16 %v2268
        %v2373 = vunpack.c.l.b16 %v2269
        %v2374 = vunpack.c.l.b16 %v2270
        %v2375 = vunpack.c.l.b16 %v2271
        %v2376 = vunpack.c.l.b16 %v2272
        %v2377 = vunpack.c.l.b16 %v2273
        %v2378 = vunpack.c.l.b16 %v2274
        %v2379 = vunpack.c.l.b16 %v2275
        %v2380 = vunpack.c.l.b16 %v2276
        %v2381 = vunpack.c.l.b16 %v2277
        %v2382 = vunpack.c.l.b16 %v2278
        %v2383 = vunpack.c.l.b16 %v2279
        %v2384 = vunpack.c.l.b16 %v2280
        %v2385 = vunpack.c.l.b16 %v2281
        %v2386 = vunpack.c.l.b16 %v2282
        %v2387 = vunpack.c.l.b16 %v2283
        %v2388 = vunpack.c.l.b16 %v2284
        %v2389 = vunpack.c.l.b16 %v2285
        %v2390 = vunpack.c.l.b16 %v2286
        %v2391 = vunpack.c.l.b16 %v2287
        %v2392 = vunpack.c.l.b16 %v2288
        %v2393 = vunpack.c.l.b16 %v2289
        %v2394 = vunpack.c.l.b16 %v2290
        %v2395 = vunpack.c.l.b16 %v2291
        %v2396 = vunpack.c.l.b16 %v2292
        %v2397 = vunpack.c.l.b16 %v2293
        %v2398 = vunpack.c.l.b16 %v2294
        %v2399 = vunpack.c.l.b16 %v2295
        %v2400 = vunpack.c.l.b16 %v2296
        %v2401 = vunpack.c.l.b16 %v2297
        %v2402 = vunpack.c.l.b16 %v2298
        %v2403 = vunpack.c.l.b16 %v2299
        %v2404 = vunpack.c.l.b16 %v2300
        %v2405 = vunpack.c.l.b16 %v2301
        %v2406 = vunpack.c.l.b16 %v2302
        %v2407 = vunpack.c.l.b16 %v2303
        %v2408 = vunpack.c.l.b16 %v2304
        %v2409 = vunpack.c.l.b16 %v2305
        %v2410 = vunpack.c.l.b16 %v2306
        %v2411 = vunpack.c.l.b16 %v2307
        %v2412 = vunpack.c.l.b16 %v2308
        %v2413 = vunpack.c.l.b16 %v2309
        %v2414 = vunpack.c.l.b16 %v2310
        %v2415 = vpack.c.b16 %v2368, %v2367
        %v2416 = vpack.c.b16 %v2370, %v2369
        %v2417 = vpack.c.b16 %v2372, %v2371
        %v2418 = vpack.c.b16 %v2374, %v2373
        %v2419 = vpack.c.b16 %v2376, %v2375
        %v2420 = vpack.c.b16 %v2378, %v2377
        %v2421 = vpack.c.b16 %v2380, %v2379
        %v2422 = vpack.c.b16 %v2382, %v2381
        %v2423 = vpack.c.b16 %v2384, %v2383
        %v2424 = vpack.c.b16 %v2386, %v2385
        %v2425 = vpack.c.b16 %v2388, %v2387
        %v2426 = vpack.c.b16 %v2390, %v2389
        %v2427 = vpack.c.b16 %v2392, %v2391
        %v2428 = vpack.c.b16 %v2394, %v2393
        %v2429 = vpack.c.b16 %v2396, %v2395
        %v2430 = vpack.c.b16 %v2398, %v2397
        %v2431 = vpack.c.b16 %v2400, %v2399
        %v2432 = vpack.c.b16 %v2402, %v2401
        %v2433 = vpack.c.b16 %v2404, %v2403
        %v2434 = vpack.c.b16 %v2406, %v2405
        %v2435 = vpack.c.b16 %v2408, %v2407
        %v2436 = vpack.c.b16 %v2410, %v2409
        %v2437 = vpack.c.b16 %v2412, %v2411
        %v2438 = vpack.c.b16 %v2414, %v2413
        %2463 = vmatprep.subr.bf16.mxu0 0
        %2464 = vmatpush1.bf16.msra.mxu0 %v2415
        %2465 = vmatprep.subr.bf16.mxu0 0
        %2466 = vmatpush1.bf16.msra.mxu0 %v2416
        %2467 = vmatprep.subr.bf16.mxu0 0
        %2468 = vmatpush1.bf16.msra.mxu0 %v2417
        %2469 = vmatprep.subr.bf16.mxu0 0
        %2470 = vmatpush1.bf16.msra.mxu0 %v2418
        %2471 = vmatprep.subr.bf16.mxu0 0
        %2472 = vmatpush1.bf16.msra.mxu0 %v2419
        %2473 = vmatprep.subr.bf16.mxu0 0
        %2474 = vmatpush1.bf16.msra.mxu0 %v2420
        %2475 = vmatprep.subr.bf16.mxu0 0
        %2476 = vmatpush1.bf16.msra.mxu0 %v2421
        %2477 = vmatprep.subr.bf16.mxu0 0
        %2478 = vmatpush1.bf16.msra.mxu0 %v2422
        %2479 = vmatprep.subr.bf16.mxu0 0
        %2480 = vmatpush1.bf16.msra.mxu0 %v2423
        %2481 = vmatprep.subr.bf16.mxu0 0
        %2482 = vmatpush1.bf16.msra.mxu0 %v2424
        %2483 = vmatprep.subr.bf16.mxu0 0
        %2484 = vmatpush1.bf16.msra.mxu0 %v2425
        %2485 = vmatprep.subr.bf16.mxu0 0
        %2486 = vmatpush1.bf16.msra.mxu0 %v2426
        %2487 = vmatprep.subr.bf16.mxu0 0
        %2488 = vmatpush1.bf16.msra.mxu0 %v2427
        %2489 = vmatprep.subr.bf16.mxu0 0
        %2490 = vmatpush1.bf16.msra.mxu0 %v2428
        %2491 = vmatprep.subr.bf16.mxu0 0
        %2492 = vmatpush1.bf16.msra.mxu0 %v2429
        %2493 = vmatprep.subr.bf16.mxu0 0
        %2494 = vmatpush1.bf16.msra.mxu0 %v2430
        %2495 = vmatprep.mubr.bf16.mxu0 %v2313
        %2496 = vmatmul.mubr.bf16.gmra.mrb[0].mxu0 %v2312
        %v2497 = vpop.f32.mrb[0].mxu0
        %v2498 = vadd.f32 %v2318, %v2497
        %v2499 = vpop.f32.mrb[0].mxu0
        %v2500 = vpop.f32.mrb[0].mxu0
        %v2501 = vadd.f32 %v2318, %v2500
        %v2502 = vpop.f32.mrb[0].mxu0
        %2503 = vdwg.mxu0
        %2504 = vmatprep.subr.bf16.mxu0 0
        %2505 = vmatpush1.bf16.msra.mxu0 %v2431
        %2506 = vmatprep.subr.bf16.mxu0 0
        %2507 = vmatpush1.bf16.msra.mxu0 %v2432
        %2508 = vmatprep.subr.bf16.mxu0 0
        %2509 = vmatpush1.bf16.msra.mxu0 %v2433
        %2510 = vmatprep.subr.bf16.mxu0 0
        %2511 = vmatpush1.bf16.msra.mxu0 %v2434
        %2512 = vmatprep.subr.bf16.mxu0 0
        %2513 = vmatpush1.bf16.msra.mxu0 %v2435
        %2514 = vmatprep.subr.bf16.mxu0 0
        %2515 = vmatpush1.bf16.msra.mxu0 %v2436
        %2516 = vmatprep.subr.bf16.mxu0 0
        %2517 = vmatpush1.bf16.msra.mxu0 %v2437
        %2518 = vmatprep.subr.bf16.mxu0 0
        %2519 = vmatpush1.bf16.msra.mxu0 %v2438
        %2520 = vmatprep.subr.bf16.mxu0 0
        %2521 = vmatpush1.bf16.msra.mxu0 0
        %2522 = vmatprep.subr.bf16.mxu0 0
        %2523 = vmatpush1.bf16.msra.mxu0 0
        %2524 = vmatprep.subr.bf16.mxu0 0
        %2525 = vmatpush1.bf16.msra.mxu0 0
        %2526 = vmatprep.subr.bf16.mxu0 0
        %2527 = vmatpush1.bf16.msra.mxu0 0
        %2528 = vmatprep.subr.bf16.mxu0 0
        %2529 = vmatpush1.bf16.msra.mxu0 0
        %2530 = vmatprep.subr.bf16.mxu0 0
        %2531 = vmatpush1.bf16.msra.mxu0 0
        %2532 = vmatprep.subr.bf16.mxu0 0
        %2533 = vmatpush1.bf16.msra.mxu0 0
        %2534 = vmatprep.subr.bf16.mxu0 0
        %2535 = vmatpush1.bf16.msra.mxu0 0
        %2536 = vmatprep.mubr.bf16.mxu0 0
        %2537 = vmatmul.mubr.bf16.gmra.mrb[0].mxu0 %v2314
        %v2538 = vpop.f32.mrb[0].mxu0
        %v2539 = vadd.f32 %v2498, %v2538
        %v2540 = vpop.f32.mrb[0].mxu0
        %v2541 = vpop.f32.mrb[0].mxu0
        %v2542 = vadd.f32 %v2501, %v2541
        %v2543 = vpop.f32.mrb[0].mxu0
        %2544 = vdwg.mxu0
        %v2545 = vtanh.pop %v2539
        %v2546 = vtanh.pop %v2542
        %v2547 = vpack.c.bf16 %v2546, %v2545
        %v2548 = vld [vmem:[#allocation9] sm:$0xf]
        %v2549 = vld [vmem:[#allocation9 + $0x4] sm:$0xf]
        %v2550 = vld [vmem:[#allocation9 + $0x8] sm:$0xf]
        %v2551 = vld [vmem:[#allocation9 + $0xc] sm:$0xf]
        %v2552 = vld [vmem:[#allocation9 + $0x10] sm:$0xf]
        %v2553 = vld [vmem:[#allocation9 + $0x14] sm:$0xf]
        %v2554 = vld [vmem:[#allocation9 + $0x18] sm:$0xf]
        %v2555 = vld [vmem:[#allocation9 + $0x1c] sm:$0xf]
        %v2556 = vld [vmem:[#allocation9 + $0x20] sm:$0xf]
        %v2557 = vld [vmem:[#allocation9 + $0x24] sm:$0xf]
        %v2558 = vld [vmem:[#allocation9 + $0x28] sm:$0xf]
        %v2559 = vld [vmem:[#allocation9 + $0x2c] sm:$0xf]
        %v2560 = vld [vmem:[#allocation9 + $0x30] sm:$0xf]
        %v2561 = vld [vmem:[#allocation9 + $0x34] sm:$0xf]
        %v2562 = vld [vmem:[#allocation9 + $0x38] sm:$0xf]
        %v2563 = vld [vmem:[#allocation9 + $0x3c] sm:$0xf]
        %v2564 = vld [vmem:[#allocation11] sm:$0x1]
        %v2566 = vlaneseq
        %v2567 = vshrl.u32 %v2566, 7
        %v2568 = vsub.s32 0, %v2567
        %v2569 = vrot.slane %v2564, %v2568
        %v2587 = vunpack.c.l.b16 %v2548
        %v2588 = vunpack.c.l.b16 %v2549
        %v2589 = vunpack.c.l.b16 %v2550
        %v2590 = vunpack.c.l.b16 %v2551
        %v2591 = vunpack.c.l.b16 %v2552
        %v2592 = vunpack.c.l.b16 %v2553
        %v2593 = vunpack.c.l.b16 %v2554
        %v2594 = vunpack.c.l.b16 %v2555
        %v2595 = vunpack.c.l.b16 %v2556
        %v2596 = vunpack.c.l.b16 %v2557
        %v2597 = vunpack.c.l.b16 %v2558
        %v2598 = vunpack.c.l.b16 %v2559
        %v2599 = vunpack.c.l.b16 %v2560
        %v2600 = vunpack.c.l.b16 %v2561
        %v2601 = vunpack.c.l.b16 %v2562
        %v2602 = vunpack.c.l.b16 %v2563
        %v2603 = vpack.c.b16 %v2588, %v2587
        %v2604 = vpack.c.b16 %v2590, %v2589
        %v2605 = vpack.c.b16 %v2592, %v2591
        %v2606 = vpack.c.b16 %v2594, %v2593
        %v2607 = vpack.c.b16 %v2596, %v2595
        %v2608 = vpack.c.b16 %v2598, %v2597
        %v2609 = vpack.c.b16 %v2600, %v2599
        %v2610 = vpack.c.b16 %v2602, %v2601
        %2619 = vmatprep.subr.bf16.mxu0 0
        %2620 = vmatpush1.bf16.msra.mxu0 %v2603
        %2621 = vmatprep.subr.bf16.mxu0 0
        %2622 = vmatpush1.bf16.msra.mxu0 %v2604
        %2623 = vmatprep.subr.bf16.mxu0 0
        %2624 = vmatpush1.bf16.msra.mxu0 %v2605
        %2625 = vmatprep.subr.bf16.mxu0 0
        %2626 = vmatpush1.bf16.msra.mxu0 %v2606
        %2627 = vmatprep.subr.bf16.mxu0 0
        %2628 = vmatpush1.bf16.msra.mxu0 %v2607
        %2629 = vmatprep.subr.bf16.mxu0 0
        %2630 = vmatpush1.bf16.msra.mxu0 %v2608
        %2631 = vmatprep.subr.bf16.mxu0 0
        %2632 = vmatpush1.bf16.msra.mxu0 %v2609
        %2633 = vmatprep.subr.bf16.mxu0 0
        %2634 = vmatpush1.bf16.msra.mxu0 %v2610
        %2635 = vmatprep.subr.bf16.mxu0 0
        %2636 = vmatpush1.bf16.msra.mxu0 0
        %2637 = vmatprep.subr.bf16.mxu0 0
        %2638 = vmatpush1.bf16.msra.mxu0 0
        %2639 = vmatprep.subr.bf16.mxu0 0
        %2640 = vmatpush1.bf16.msra.mxu0 0
        %2641 = vmatprep.subr.bf16.mxu0 0
        %2642 = vmatpush1.bf16.msra.mxu0 0
        %2643 = vmatprep.subr.bf16.mxu0 0
        %2644 = vmatpush1.bf16.msra.mxu0 0
        %2645 = vmatprep.subr.bf16.mxu0 0
        %2646 = vmatpush1.bf16.msra.mxu0 0
        %2647 = vmatprep.subr.bf16.mxu0 0
        %2648 = vmatpush1.bf16.msra.mxu0 0
        %2649 = vmatprep.subr.bf16.mxu0 0
        %2650 = vmatpush1.bf16.msra.mxu0 0
        %2651 = vmatprep.mubr.bf16.mxu0 0
        %2652 = vmatmul.mubr.bf16.gmra.mrb[0].mxu0 %v2547
        %v2653 = vpop.f32.mrb[0].mxu0
        %v2654 = vadd.f32 %v2569, %v2653
        %v2655 = vpop.f32.mrb[0].mxu0
        %v2656 = vpop.f32.mrb[0].mxu0
        %v2657 = vadd.f32 %v2569, %v2656
        %v2658 = vpop.f32.mrb[0].mxu0
        %2659 = vdwg.mxu0
        %2660 = vst [vmem:[%s298] sm:$0xff] %v2654
        %2661 = vst [vmem:[%s298 + $0x8] sm:$0xff] %v2657
        %s2662 = sand.u32 %s142, 1
        %s2663 = scalar_lea.sflag [#allocation5], %s2662
        %s2664 = sand.u32 %s142, 1
        %s2665 = smul.addr %s2664, 16
        %s2666 = scalar_lea.vmem [#allocation12], %s2665
        // Predicated region
        $region68: #{tpu_custom_call.1} parent=39 // pred_check
          %p2667 = pneg %p152
        $region69: #{tpu_custom_call.1} parent=39 // pred_check_branch
          %2669 = sbr.rel (%p2667) target = $region71
        $region70: #{tpu_custom_call.1} parent=39 // pred_region
          %s2671 = ssub.s32 256, 256
          %2672 = vsyncadd %s2663, %s2671
          %s2673 = smul.addr %s24, 2
          %s2674 = smul.addr %s2673, 128
          %s2675 = scalar_lea.hbm %s5, %s2674
          %s2676 = sshll.u32 %s2666, 4
          %s2677 = int_to_ptr.vmem [resolvable:$true] %s2676
          %2682 = dma.vmem_to_hbm [thread:$0]  %s2677, 256, %s2675, %s2663, 128, 128, 8
        $region71: #{tpu_custom_call.1} parent=39 // pred_fallthru
          _
      $region40: #{tpu_custom_call.1} parent=5 // pred_fallthru
        _
      %p2683 = scmp.le.s32.totalorder 2, %s19
      // Predicated region
      $region72: #{tpu_custom_call.1} parent=5 // pred_check
        %p2684 = pneg %p2683
      $region73: #{tpu_custom_call.1} parent=5 // pred_check_branch
        %2686 = sbr.rel (%p2684) target = $region75
      $region74: #{tpu_custom_call.1} parent=5 // pred_region
        %s2687 = ssub.s32 %s19, 2
        // Predicated region
        $region76: #{tpu_custom_call.1} parent=74 // pred_check
          %p2688 = pneg %p158
        $region77: #{tpu_custom_call.1} parent=74 // pred_check_branch
          %2690 = sbr.rel (%p2688) target = $region79
        $region78: #{tpu_custom_call.1} parent=74 // pred_region
          %s2691 = sand.u32 %s143, 1
          %s2692 = scalar_lea.sflag [#allocation5], %s2691
          %s2693 = sand.u32 %s143, 1
          %s2694 = smul.addr %s2693, 16
          %s2695 = scalar_lea.vmem [#allocation12], %s2694
          %2696 = dma.done %s2692, 256
        $region79: #{tpu_custom_call.1} parent=74 // pred_fallthru
          _
      $region75: #{tpu_custom_call.1} parent=5 // pred_fallthru
        _
    $region6: #{tpu_custom_call.1} parent=1 // loop_footer
      %s23 = sadd.s32 1, %s19
    $region7: #{tpu_custom_call.1} parent=1 // loop_footer_branch
      %18 = sbr.rel target = $region3
    $region8: #{tpu_custom_call.1} parent=1 // loop_exit
      _
    %2697 = vsyncpa [#allocation4], 1
    %s2698 = scalar_lea.sflag [#allocation4], 1
    %2699 = vsyncpa %s2698, 1
    %2700 = vsyncpa [#allocation7], 1
    %2701 = vsyncpa [#allocation10], 1
    %2702 = vsyncpa [#allocation5], 1
    %s2703 = scalar_lea.sflag [#allocation5], 1
    %2704 = vsyncpa %s2703, 1

// kernel: tpu_custom_call.1
$region0: #{tpu_custom_call.1}
  #allocation0 [shape = 'u32[]', space=smem, size = 0x4, offset = 0x4, fixed_abs, tag = 'smem constant byte address 0x4 - core index']
  #allocation1 [shape = 'u32[144,128]{1,0:T(1,128)}', space=vmem, size = 0x12000, scoped, tag = 'internal scratch']
  #allocation2 [shape = 'bf16[1,16,384]{2,1,0:T(16,128)(2,1)}', space=vmem, size = 0x3000, scoped, tag = 'scratch operand']
  %s0 = inlined_call_operand.hbm [shape: bf16[2,16,128], index: 0, kind: input, shape index: {}]
  %s1 = inlined_call_operand.hbm [shape: bf16[13,384,128], index: 1, kind: input, shape index: {}]
  %s2 = inlined_call_operand.hbm [shape: f32[13,128], index: 2, kind: input, shape index: {}]
  %s3 = inlined_call_operand.hbm [shape: bf16[128,128], index: 3, kind: input, shape index: {}]
  %s4 = inlined_call_operand.hbm [shape: f32[1,128], index: 4, kind: input, shape index: {}]
  %s5 = inlined_call_operand.hbm [shape: f32[2,16,128], index: 5, kind: output, shape index: {}]
  %s6 = sld [smem:[#allocation0]]
  $region80: #{tpu_custom_call.1} parent=0
    _
  %s8 = ssub.s32 1, %s6
  %s9 = scalar_select 0, %s8, %s6
  $region1: #{tpu_custom_call.1} parent=0
    #allocation3 [shape = 'u8[8192]{0}', space=vmem, size = 0x2000, scoped, tag = 'input window, operand 0']
    #allocation4 [shape = 's32[2]{0}', space=sflag, size = 0x8, scoped, tag = 'scoped memory for tpu_custom_call.1']
    #allocation5 [shape = 's32[2]{0}', space=sflag, size = 0x8, scoped, tag = 'scoped memory for tpu_custom_call.1']
    #allocation6 [shape = 'u8[1277952]{0}', space=vmem, size = 0x138000, scoped, tag = 'input window, operand 1, single buffered']
    #allocation7 [shape = 's32[1]{0}', space=sflag, size = 0x4, scoped, tag = 'scoped memory for tpu_custom_call.1']
    #allocation8 [shape = 'u8[8192]{0}', space=vmem, size = 0x2000, scoped, tag = 'input window, operand 2, single buffered']
    #allocation9 [shape = 'u8[32768]{0}', space=vmem, size = 0x8000, scoped, tag = 'input window, operand 3, single buffered']
    #allocation10 [shape = 's32[1]{0}', space=sflag, size = 0x4, scoped, tag = 'scoped memory for tpu_custom_call.1']
    #allocation11 [shape = 'u8[512]{0}', space=vmem, size = 0x400, scoped, tag = 'input window, operand 4, single buffered']
    #allocation12 [shape = 'u8[16384]{0}', space=vmem, size = 0x4000, scoped, tag = 'output window, operand 0']
    %10 = vsyncpa [#allocation4], 0
    %s11 = scalar_lea.sflag [#allocation4], 1
    %12 = vsyncpa %s11, 0
    %13 = vsyncpa [#allocation7], 0
    %14 = vsyncpa [#allocation10], 0
    %15 = vsyncpa [#allocation5], 0
    %s16 = scalar_lea.sflag [#allocation5], 1
    %17 = vsyncpa %s16, 0
    loop: start=0, step=1, limit=4
    $region2: #{tpu_custom_call.1} parent=1 // loop_pre_header
      _
    $region3: #{tpu_custom_call.1} parent=1 // loop_header
      %s19 = sphi 0, %s23
      %p20 = scmp.ge.s32.totalorder %s19, 4
      %s29 = sphi 0, %s31
      %s32 = sphi 0, %s29
      %s33 = sphi 0, %s32
      %s49 = sphi 0, %s33
      %s53 = sphi 0, %s53
      %s55 = sphi 0, %s53
      %s56 = sphi 0, %s55
      %s70 = sphi 0, %s56
      %s74 = sphi 0, %s74
      %s76 = sphi 0, %s74
      %s77 = sphi 0, %s76
      %s91 = sphi 0, %s77
      %s95 = sphi 0, %s95
      %s97 = sphi 0, %s95
      %s98 = sphi 0, %s97
      %s112 = sphi 0, %s98
      %s116 = sphi 0, %s116
      %s118 = sphi 0, %s116
      %s119 = sphi 0, %s118
      %s133 = sphi 0, %s119
      %s139 = sphi 0, %s141
      %s142 = sphi 0, %s139
      %s143 = sphi 0, %s142
      %s159 = sphi 0, %s143
    $region4: #{tpu_custom_call.1} parent=1 // loop_header_branch
      %22 = sbr.rel (%p20) target = $region8
    $region5: #{tpu_custom_call.1} parent=1 // loop_body
      %s24 = ssub.s32 %s19, 1
      %s25 = ssub.s32 %s19, 2
      %s26 = sadd.s32 %s19, 1
      %s27 = ssub.s32 %s19, %s26
      %p28 = scmp.eq.s32.totalorder %s27, 0
      %s30 = sadd.s32 %s29, 1
      %s31 = scalar_select %p28, %s29, %s30
      %p34 = pneg %p28
      %p35 = scmp.eq.s32.totalorder %s19, 1
      %p36 = por %p34, %p35
      %p37 = scmp.ne.s32.totalorder %s29, %s32
      %p38 = scmp.eq.s32.totalorder %s19, 0
      %p39 = por %p37, %p38
      %p40 = scmp.ne.s32.totalorder %s29, %s32
      %p41 = scmp.eq.s32.totalorder %s24, 1
      %p42 = por %p40, %p41
      %p43 = scmp.ne.s32.totalorder %s32, %s33
      %p44 = scmp.eq.s32.totalorder %s24, 0
      %p45 = por %p43, %p44
      %p46 = scmp.ne.s32.totalorder %s32, %s33
      %p47 = scmp.eq.s32.totalorder %s25, 1
      %p48 = por %p46, %p47
      %p50 = scmp.ne.s32.totalorder %s33, %s49
      %p51 = scmp.eq.s32.totalorder %s25, 0
      %p52 = por %p50, %p51
      %s54 = sadd.s32 %s53, 1
      %p57 = scmp.eq.s32.totalorder %s19, 1
      %p58 = scmp.ne.s32.totalorder %s53, %s55
      %p59 = scmp.eq.s32.totalorder %s19, 0
      %p60 = por %p58, %p59
      %p61 = scmp.ne.s32.totalorder %s53, %s55
      %p62 = scmp.eq.s32.totalorder %s24, 1
      %p63 = por %p61, %p62
      %p64 = scmp.ne.s32.totalorder %s55, %s56
      %p65 = scmp.eq.s32.totalorder %s24, 0
      %p66 = por %p64, %p65
      %p67 = scmp.ne.s32.totalorder %s55, %s56
      %p68 = scmp.eq.s32.totalorder %s25, 1
      %p69 = por %p67, %p68
      %p71 = scmp.ne.s32.totalorder %s56, %s70
      %p72 = scmp.eq.s32.totalorder %s25, 0
      %p73 = por %p71, %p72
      %s75 = sadd.s32 %s74, 1
      %p78 = scmp.eq.s32.totalorder %s19, 1
      %p79 = scmp.ne.s32.totalorder %s74, %s76
      %p80 = scmp.eq.s32.totalorder %s19, 0
      %p81 = por %p79, %p80
      %p82 = scmp.ne.s32.totalorder %s74, %s76
      %p83 = scmp.eq.s32.totalorder %s24, 1
      %p84 = por %p82, %p83
      %p85 = scmp.ne.s32.totalorder %s76, %s77
      %p86 = scmp.eq.s32.totalorder %s24, 0
      %p87 = por %p85, %p86
      %p88 = scmp.ne.s32.totalorder %s76, %s77
      %p89 = scmp.eq.s32.totalorder %s25, 1
      %p90 = por %p88, %p89
      %p92 = scmp.ne.s32.totalorder %s77, %s91
      %p93 = scmp.eq.s32.totalorder %s25, 0
      %p94 = por %p92, %p93
      %s96 = sadd.s32 %s95, 1
      %p99 = scmp.eq.s32.totalorder %s19, 1
      %p100 = scmp.ne.s32.totalorder %s95, %s97
      %p101 = scmp.eq.s32.totalorder %s19, 0
      %p102 = por %p100, %p101
      %p103 = scmp.ne.s32.totalorder %s95, %s97
      %p104 = scmp.eq.s32.totalorder %s24, 1
      %p105 = por %p103, %p104
      %p106 = scmp.ne.s32.totalorder %s97, %s98
      %p107 = scmp.eq.s32.totalorder %s24, 0
      %p108 = por %p106, %p107
      %p109 = scmp.ne.s32.totalorder %s97, %s98
      %p110 = scmp.eq.s32.totalorder %s25, 1
      %p111 = por %p109, %p110
      %p113 = scmp.ne.s32.totalorder %s98, %s112
      %p114 = scmp.eq.s32.totalorder %s25, 0
      %p115 = por %p113, %p114
      %s117 = sadd.s32 %s116, 1
      %p120 = scmp.eq.s32.totalorder %s19, 1
      %p121 = scmp.ne.s32.totalorder %s116, %s118
      %p122 = scmp.eq.s32.totalorder %s19, 0
      %p123 = por %p121, %p122
      %p124 = scmp.ne.s32.totalorder %s116, %s118
      %p125 = scmp.eq.s32.totalorder %s24, 1
      %p126 = por %p124, %p125
      %p127 = scmp.ne.s32.totalorder %s118, %s119
      %p128 = scmp.eq.s32.totalorder %s24, 0
      %p129 = por %p127, %p128
      %p130 = scmp.ne.s32.totalorder %s118, %s119
      %p131 = scmp.eq.s32.totalorder %s25, 1
      %p132 = por %p130, %p131
      %p134 = scmp.ne.s32.totalorder %s119, %s133
      %p135 = scmp.eq.s32.totalorder %s25, 0
      %p136 = por %p134, %p135
      %s137 = ssub.s32 %s19, %s26
      %p138 = scmp.eq.s32.totalorder %s137, 0
      %s140 = sadd.s32 %s139, 1
      %s141 = scalar_select %p138, %s139, %s140
      %p144 = pneg %p138
      %p145 = scmp.eq.s32.totalorder %s19, 1
      %p146 = por %p144, %p145
      %p147 = scmp.ne.s32.totalorder %s139, %s142
      %p148 = scmp.eq.s32.totalorder %s19, 0
      %p149 = por %p147, %p148
      %p150 = scmp.ne.s32.totalorder %s139, %s142
      %p151 = scmp.eq.s32.totalorder %s24, 1
      %p152 = por %p150, %p151
      %p153 = scmp.ne.s32.totalorder %s142, %s143
      %p154 = scmp.eq.s32.totalorder %s24, 0
      %p155 = por %p153, %p154
      %p156 = scmp.ne.s32.totalorder %s142, %s143
      %p157 = scmp.eq.s32.totalorder %s25, 1
      %p158 = por %p156, %p157
      %p160 = scmp.ne.s32.totalorder %s143, %s159
      %p161 = scmp.eq.s32.totalorder %s25, 0
      %p162 = por %p160, %p161
      %p163 = scmp.le.s32.totalorder 1, %s19
      %p164 = scmp.lt.s32.totalorder %s19, 3
      %p165 = pnand %p163, %p164
      %p166 = pneg %p165
      // Predicated region
      $region9: #{tpu_custom_call.1} parent=5 // pred_check
        _
      $region10: #{tpu_custom_call.1} parent=5 // pred_check_branch
        %168 = sbr.rel (%p165) target = $region12
      $region11: #{tpu_custom_call.1} parent=5 // pred_region
        %s169 = ssub.s32 %s19, 1
        // Predicated region
        $region13: #{tpu_custom_call.1} parent=11 // pred_check
          %p170 = pneg %p66
        $region14: #{tpu_custom_call.1} parent=11 // pred_check_branch
          %172 = sbr.rel (%p170) target = $region16
        $region15: #{tpu_custom_call.1} parent=11 // pred_region
          %s174 = ssub.s32 39936, 39936
          %175 = vsyncadd [#allocation7], %s174
          %s176 = sshll.u32 [#allocation6], 4
          %s177 = int_to_ptr.vmem [resolvable:$true] %s176
          %182 = dma.hbm_to_vmem [thread:$0]  %s1, 39936, %s177, [#allocation7], 64, 64, 4
        $region16: #{tpu_custom_call.1} parent=11 // pred_fallthru
          _
        // Predicated region
        $region17: #{tpu_custom_call.1} parent=11 // pred_check
          %p183 = pneg %p87
        $region18: #{tpu_custom_call.1} parent=11 // pred_check_branch
          %185 = sbr.rel (%p183) target = $region20
        $region19: #{tpu_custom_call.1} parent=11 // pred_region
          %s187 = ssub.s32 256, 256
          %188 = vsyncadd [#allocation7], %s187
          %s189 = sshll.u32 [#allocation8], 4
          %s190 = int_to_ptr.vmem [resolvable:$true] %s189
          %195 = dma.hbm_to_vmem [thread:$0]  %s2, 256, %s190, [#allocation7], 128, 128, 8
        $region20: #{tpu_custom_call.1} parent=11 // pred_fallthru
          _
        // Predicated region
        $region21: #{tpu_custom_call.1} parent=11 // pred_check
          %p196 = pneg %p108
        $region22: #{tpu_custom_call.1} parent=11 // pred_check_branch
          %198 = sbr.rel (%p196) target = $region24
        $region23: #{tpu_custom_call.1} parent=11 // pred_region
          %s200 = ssub.s32 1024, 1024
          %201 = vsyncadd [#allocation10], %s200
          %s202 = sshll.u32 [#allocation9], 4
          %s203 = int_to_ptr.vmem [resolvable:$true] %s202
          %208 = dma.hbm_to_vmem [thread:$0]  %s3, 1024, %s203, [#allocation10], 64, 64, 4
        $region24: #{tpu_custom_call.1} parent=11 // pred_fallthru
          _
        // Predicated region
        $region25: #{tpu_custom_call.1} parent=11 // pred_check
          %p209 = pneg %p129
        $region26: #{tpu_custom_call.1} parent=11 // pred_check_branch
          %211 = sbr.rel (%p209) target = $region28
        $region27: #{tpu_custom_call.1} parent=11 // pred_region
          %s213 = ssub.s32 16, 16
          %214 = vsyncadd [#allocation10], %s213
          %s216 = sshll.u32 [#allocation11], 4
          %s217 = int_to_ptr.vmem [resolvable:$true] %s216
          %219 = dma.hbm_to_vmem [thread:$0]  %s4, 16, %s217, [#allocation10]
        $region28: #{tpu_custom_call.1} parent=11 // pred_fallthru
          _
      $region12: #{tpu_custom_call.1} parent=5 // pred_fallthru
        _
      %p220 = scmp.lt.s32.totalorder %s19, 2
      // Predicated region
      $region29: #{tpu_custom_call.1} parent=5 // pred_check
        %p221 = pneg %p220
      $region30: #{tpu_custom_call.1} parent=5 // pred_check_branch
        %223 = sbr.rel (%p221) target = $region32
      $region31: #{tpu_custom_call.1} parent=5 // pred_region
        // Predicated region
        $region33: #{tpu_custom_call.1} parent=31 // pred_check
          %p224 = pneg %p39
        $region34: #{tpu_custom_call.1} parent=31 // pred_check_branch
          %226 = sbr.rel (%p224) target = $region36
        $region35: #{tpu_custom_call.1} parent=31 // pred_region
          %s227 = sand.u32 %s29, 1
          %s228 = scalar_lea.sflag [#allocation4], %s227
          %s229 = sand.u32 %s29, 1
          %s230 = smul.addr %s229, 8
          %s231 = scalar_lea.vmem [#allocation3], %s230
          %s233 = ssub.s32 128, 128
          %234 = vsyncadd %s228, %s233
          %s235 = smul.addr %s19, 2
          %s236 = smul.addr %s235, 64
          %s237 = scalar_lea.hbm %s0, %s236
          %s238 = sshll.u32 %s231, 4
          %s239 = int_to_ptr.vmem [resolvable:$true] %s238
          %244 = dma.hbm_to_vmem [thread:$0]  %s237, 128, %s239, %s228, 64, 64, 4
        $region36: #{tpu_custom_call.1} parent=31 // pred_fallthru
          _
      $region32: #{tpu_custom_call.1} parent=5 // pred_fallthru
        _
      %p245 = scmp.le.s32.totalorder 1, %s19
      %p246 = scmp.lt.s32.totalorder %s19, 3
      %p247 = pnand %p245, %p246
      %p248 = pneg %p247
      // Predicated region
      $region37: #{tpu_custom_call.1} parent=5 // pred_check
        _
      $region38: #{tpu_custom_call.1} parent=5 // pred_check_branch
        %250 = sbr.rel (%p247) target = $region40
      $region39: #{tpu_custom_call.1} parent=5 // pred_region
        %s251 = ssub.s32 %s19, 1
        %s252 = sand.u32 %s32, 1
        %s253 = scalar_lea.sflag [#allocation4], %s252
        %s254 = sand.u32 %s32, 1
        %s255 = smul.addr %s254, 8
        %s256 = scalar_lea.vmem [#allocation3], %s255
        // Predicated region
        $region41: #{tpu_custom_call.1} parent=39 // pred_check
          %p257 = pneg %p45
        $region42: #{tpu_custom_call.1} parent=39 // pred_check_branch
          %259 = sbr.rel (%p257) target = $region44
        $region43: #{tpu_custom_call.1} parent=39 // pred_region
          %260 = dma.done %s253, 128
        $region44: #{tpu_custom_call.1} parent=39 // pred_fallthru
          _
        // Predicated region
        $region45: #{tpu_custom_call.1} parent=39 // pred_check
          %p261 = pneg %p66
        $region46: #{tpu_custom_call.1} parent=39 // pred_check_branch
          %263 = sbr.rel (%p261) target = $region48
        $region47: #{tpu_custom_call.1} parent=39 // pred_region
          %264 = dma.done [#allocation7], 39936
        $region48: #{tpu_custom_call.1} parent=39 // pred_fallthru
          _
        // Predicated region
        $region49: #{tpu_custom_call.1} parent=39 // pred_check
          %p265 = pneg %p87
        $region50: #{tpu_custom_call.1} parent=39 // pred_check_branch
          %267 = sbr.rel (%p265) target = $region52
        $region51: #{tpu_custom_call.1} parent=39 // pred_region
          %268 = dma.done [#allocation7], 256
        $region52: #{tpu_custom_call.1} parent=39 // pred_fallthru
          _
        // Predicated region
        $region53: #{tpu_custom_call.1} parent=39 // pred_check
          %p269 = pneg %p108
        $region54: #{tpu_custom_call.1} parent=39 // pred_check_branch
          %271 = sbr.rel (%p269) target = $region56
        $region55: #{tpu_custom_call.1} parent=39 // pred_region
          %272 = dma.done [#allocation10], 1024
        $region56: #{tpu_custom_call.1} parent=39 // pred_fallthru
          _
        // Predicated region
        $region57: #{tpu_custom_call.1} parent=39 // pred_check
          %p273 = pneg %p129
        $region58: #{tpu_custom_call.1} parent=39 // pred_check_branch
          %275 = sbr.rel (%p273) target = $region60
        $region59: #{tpu_custom_call.1} parent=39 // pred_region
          %276 = dma.done [#allocation10], 16
        $region60: #{tpu_custom_call.1} parent=39 // pred_fallthru
          _
        %s277 = sand.u32 %s32, 1
        %s278 = scalar_lea.sflag [#allocation4], %s277
        %s279 = sand.u32 %s32, 1
        %s280 = smul.addr %s279, 8
        %s281 = scalar_lea.vmem [#allocation3], %s280
        %p282 = pneg %p45
        %p283 = pneg %p42
        %p284 = pneg %p66
        %p285 = pneg %p63
        %p286 = pneg %p87
        %p287 = pneg %p84
        %p288 = pneg %p108
        %p289 = pneg %p105
        %p290 = pneg %p129
        %p291 = pneg %p126
        %p292 = pneg %p155
        %p293 = pneg %p152
        %s294 = sand.u32 %s142, 1
        %s295 = scalar_lea.sflag [#allocation5], %s294
        %s296 = sand.u32 %s142, 1
        %s297 = smul.addr %s296, 16
        %s298 = scalar_lea.vmem [#allocation12], %s297
        %v300 = vld [vmem:[%s256] sm:$0xf]
        %v301 = vld [vmem:[%s256 + $0x4] sm:$0xf]
        %v302 = vunpack.c.l.bf16 %v300
        %v303 = vunpack.c.l.bf16 %v301
        loop: start=0, step=1, limit=2
        $region61: #{tpu_custom_call.1} parent=39 // loop_pre_header
          _
        $region62: #{tpu_custom_call.1} parent=39 // loop_header
          %s305 = sphi 0, %s309
          %p306 = scmp.ge.s32.totalorder %s305, 2
          %v310 = vphi 0.0, %v2224
          %v311 = vphi 0.0, %v2225
        $region63: #{tpu_custom_call.1} parent=39 // loop_header_branch
          %308 = sbr.rel (%p306) target = $region67
        $region64: #{tpu_custom_call.1} parent=39 // loop_body
          %s312 = smul.u32 %s305, 6
          %v315 = vunpack.c.l.b16 %v300
          %v316 = vunpack.c.l.b16 %v301
          %v317 = vpack.c.b16 %v316, %v315
          %319 = vst [vmem:[#allocation2 + $0x8] sm:$0xff] %v317
          %vm320 = vcmask 1040384
          %vm321 = vsmask.f32 256
          %vm322 = vmand %vm320, %vm321
          %v323 = vld [vmem:[#allocation2] sm:$0x1]
          %v324 = vsel %vm322, 0, %v323
          %325 = vst [vmem:[#allocation2] sm:$0x1] %v324
          %v327 = vshrl.u32 %v317, 16
          %v329 = vrot.slane %v327, 7
          %v330 = vshll.u32 %v317, 16
          %v332 = vor.u32 %v329, %v330
          %vm334 = vcmask 1047552
          %vm335 = vsmask.f32 7938
          %vm336 = vmand %vm334, %vm335
          %v337 = vld [vmem:[#allocation2] sm:$0xff]
          %v338 = vsel %vm336, %v332, %v337
          %339 = vst [vmem:[#allocation2] sm:$0xff] %v338
          %v340 = vrot.slane %v330, 1
          %v341 = vor.u32 %v327, %v340
          %vm343 = vsmask.f32 7424
          %vm344 = vmand %vm334, %vm343
          %v345 = vld [vmem:[#allocation2 + $0x10] sm:$0xff]
          %v346 = vsel %vm344, %v341, %v345
          %347 = vst [vmem:[#allocation2 + $0x10] sm:$0xff] %v346
          %vm348 = vcmask 1047559
          %vm349 = vsmask.f32 7966
          %vm350 = vmand %vm348, %vm349
          %v351 = vld [vmem:[#allocation2 + $0x10] sm:$0x80]
          %v352 = vsel %vm350, 0, %v351
          %353 = vst [vmem:[#allocation2 + $0x10] sm:$0x80] %v352
          %s354 = smul.u32 %s312, 48
          %s355 = smul.addr %s354, 4
          %s356 = scalar_lea.vmem [#allocation6], %s355
          %v357 = vld [vmem:[%s356] sm:$0xf]
          %v358 = vld [vmem:[%s356 + $0x4] sm:$0xf]
          %v359 = vld [vmem:[%s356 + $0x8] sm:$0xf]
          %v360 = vld [vmem:[%s356 + $0xc] sm:$0xf]
          %v361 = vld [vmem:[%s356 + $0x10] sm:$0xf]
          %v362 = vld [vmem:[%s356 + $0x14] sm:$0xf]
          %v363 = vld [vmem:[%s356 + $0x18] sm:$0xf]
          %v364 = vld [vmem:[%s356 + $0x1c] sm:$0xf]
          %v365 = vld [vmem:[%s356 + $0x20] sm:$0xf]
          %v366 = vld [vmem:[%s356 + $0x24] sm:$0xf]
          %v367 = vld [vmem:[%s356 + $0x28] sm:$0xf]
          %v368 = vld [vmem:[%s356 + $0x2c] sm:$0xf]
          %v369 = vld [vmem:[%s356 + $0x30] sm:$0xf]
          %v370 = vld [vmem:[%s356 + $0x34] sm:$0xf]
          %v371 = vld [vmem:[%s356 + $0x38] sm:$0xf]
          %v372 = vld [vmem:[%s356 + $0x3c] sm:$0xf]
          %v373 = vld [vmem:[%s356 + $0x40] sm:$0xf]
          %v374 = vld [vmem:[%s356 + $0x44] sm:$0xf]
          %v375 = vld [vmem:[%s356 + $0x48] sm:$0xf]
          %v376 = vld [vmem:[%s356 + $0x4c] sm:$0xf]
          %v377 = vld [vmem:[%s356 + $0x50] sm:$0xf]
          %v378 = vld [vmem:[%s356 + $0x54] sm:$0xf]
          %v379 = vld [vmem:[%s356 + $0x58] sm:$0xf]
          %v380 = vld [vmem:[%s356 + $0x5c] sm:$0xf]
          %v381 = vld [vmem:[%s356 + $0x60] sm:$0xf]
          %v382 = vld [vmem:[%s356 + $0x64] sm:$0xf]
          %v383 = vld [vmem:[%s356 + $0x68] sm:$0xf]
          %v384 = vld [vmem:[%s356 + $0x6c] sm:$0xf]
          %v385 = vld [vmem:[%s356 + $0x70] sm:$0xf]
          %v386 = vld [vmem:[%s356 + $0x74] sm:$0xf]
          %v387 = vld [vmem:[%s356 + $0x78] sm:$0xf]
          %v388 = vld [vmem:[%s356 + $0x7c] sm:$0xf]
          %v389 = vld [vmem:[%s356 + $0x80] sm:$0xf]
          %v390 = vld [vmem:[%s356 + $0x84] sm:$0xf]
          %v391 = vld [vmem:[%s356 + $0x88] sm:$0xf]
          %v392 = vld [vmem:[%s356 + $0x8c] sm:$0xf]
          %v393 = vld [vmem:[%s356 + $0x90] sm:$0xf]
          %v394 = vld [vmem:[%s356 + $0x94] sm:$0xf]
          %v395 = vld [vmem:[%s356 + $0x98] sm:$0xf]
          %v396 = vld [vmem:[%s356 + $0x9c] sm:$0xf]
          %v397 = vld [vmem:[%s356 + $0xa0] sm:$0xf]
          %v398 = vld [vmem:[%s356 + $0xa4] sm:$0xf]
          %v399 = vld [vmem:[%s356 + $0xa8] sm:$0xf]
          %v400 = vld [vmem:[%s356 + $0xac] sm:$0xf]
          %v401 = vld [vmem:[%s356 + $0xb0] sm:$0xf]
          %v402 = vld [vmem:[%s356 + $0xb4] sm:$0xf]
          %v403 = vld [vmem:[%s356 + $0xb8] sm:$0xf]
          %v404 = vld [vmem:[%s356 + $0xbc] sm:$0xf]
          %s405 = scalar_lea.vmem [#allocation8], %s312
          %v406 = vld [vmem:[%s405] sm:$0x1]
          %v407 = vld [vmem:[#allocation2] sm:$0xff]
          %v408 = vld [vmem:[#allocation2 + $0x8] sm:$0xff]
          %v409 = vld [vmem:[#allocation2 + $0x10] sm:$0xff]
          %v410 = vlaneseq
          %v411 = vshrl.u32 %v410, 7
          %v412 = vsub.s32 0, %v411
          %v413 = vrot.slane %v406, %v412
          %v462 = vunpack.c.l.b16 %v357
          %v463 = vunpack.c.l.b16 %v358
          %v464 = vunpack.c.l.b16 %v359
          %v465 = vunpack.c.l.b16 %v360
          %v466 = vunpack.c.l.b16 %v361
          %v467 = vunpack.c.l.b16 %v362
          %v468 = vunpack.c.l.b16 %v363
          %v469 = vunpack.c.l.b16 %v364
          %v470 = vunpack.c.l.b16 %v365
          %v471 = vunpack.c.l.b16 %v366
          %v472 = vunpack.c.l.b16 %v367
          %v473 = vunpack.c.l.b16 %v368
          %v474 = vunpack.c.l.b16 %v369
          %v475 = vunpack.c.l.b16 %v370
          %v476 = vunpack.c.l.b16 %v371
          %v477 = vunpack.c.l.b16 %v372
          %v478 = vunpack.c.l.b16 %v373
          %v479 = vunpack.c.l.b16 %v374
          %v480 = vunpack.c.l.b16 %v375
          %v481 = vunpack.c.l.b16 %v376
          %v482 = vunpack.c.l.b16 %v377
          %v483 = vunpack.c.l.b16 %v378
          %v484 = vunpack.c.l.b16 %v379
          %v485 = vunpack.c.l.b16 %v380
          %v486 = vunpack.c.l.b16 %v381
          %v487 = vunpack.c.l.b16 %v382
          %v488 = vunpack.c.l.b16 %v383
          %v489 = vunpack.c.l.b16 %v384
          %v490 = vunpack.c.l.b16 %v385
          %v491 = vunpack.c.l.b16 %v386
          %v492 = vunpack.c.l.b16 %v387
          %v493 = vunpack.c.l.b16 %v388
          %v494 = vunpack.c.l.b16 %v389
          %v495 = vunpack.c.l.b16 %v390
          %v496 = vunpack.c.l.b16 %v391
          %v497 = vunpack.c.l.b16 %v392
          %v498 = vunpack.c.l.b16 %v393
          %v499 = vunpack.c.l.b16 %v394
          %v500 = vunpack.c.l.b16 %v395
          %v501 = vunpack.c.l.b16 %v396
          %v502 = vunpack.c.l.b16 %v397
          %v503 = vunpack.c.l.b16 %v398
          %v504 = vunpack.c.l.b16 %v399
          %v505 = vunpack.c.l.b16 %v400
          %v506 = vunpack.c.l.b16 %v401
          %v507 = vunpack.c.l.b16 %v402
          %v508 = vunpack.c.l.b16 %v403
          %v509 = vunpack.c.l.b16 %v404
          %v510 = vpack.c.b16 %v463, %v462
          %v511 = vpack.c.b16 %v465, %v464
          %v512 = vpack.c.b16 %v467, %v466
          %v513 = vpack.c.b16 %v469, %v468
          %v514 = vpack.c.b16 %v471, %v470
          %v515 = vpack.c.b16 %v473, %v472
          %v516 = vpack.c.b16 %v475, %v474
          %v517 = vpack.c.b16 %v477, %v476
          %v518 = vpack.c.b16 %v479, %v478
          %v519 = vpack.c.b16 %v481, %v480
          %v520 = vpack.c.b16 %v483, %v482
          %v521 = vpack.c.b16 %v485, %v484
          %v522 = vpack.c.b16 %v487, %v486
          %v523 = vpack.c.b16 %v489, %v488
          %v524 = vpack.c.b16 %v491, %v490
          %v525 = vpack.c.b16 %v493, %v492
          %v526 = vpack.c.b16 %v495, %v494
          %v527 = vpack.c.b16 %v497, %v496
          %v528 = vpack.c.b16 %v499, %v498
          %v529 = vpack.c.b16 %v501, %v500
          %v530 = vpack.c.b16 %v503, %v502
          %v531 = vpack.c.b16 %v505, %v504
          %v532 = vpack.c.b16 %v507, %v506
          %v533 = vpack.c.b16 %v509, %v508
          %558 = vmatprep.subr.bf16.mxu0 0
          %559 = vmatpush1.bf16.msra.mxu0 %v510
          %560 = vmatprep.subr.bf16.mxu0 0
          %561 = vmatpush1.bf16.msra.mxu0 %v511
          %562 = vmatprep.subr.bf16.mxu0 0
          %563 = vmatpush1.bf16.msra.mxu0 %v512
          %564 = vmatprep.subr.bf16.mxu0 0
          %565 = vmatpush1.bf16.msra.mxu0 %v513
          %566 = vmatprep.subr.bf16.mxu0 0
          %567 = vmatpush1.bf16.msra.mxu0 %v514
          %568 = vmatprep.subr.bf16.mxu0 0
          %569 = vmatpush1.bf16.msra.mxu0 %v515
          %570 = vmatprep.subr.bf16.mxu0 0
          %571 = vmatpush1.bf16.msra.mxu0 %v516
          %572 = vmatprep.subr.bf16.mxu0 0
          %573 = vmatpush1.bf16.msra.mxu0 %v517
          %574 = vmatprep.subr.bf16.mxu0 0
          %575 = vmatpush1.bf16.msra.mxu0 %v518
          %576 = vmatprep.subr.bf16.mxu0 0
          %577 = vmatpush1.bf16.msra.mxu0 %v519
          %578 = vmatprep.subr.bf16.mxu0 0
          %579 = vmatpush1.bf16.msra.mxu0 %v520
          %580 = vmatprep.subr.bf16.mxu0 0
          %581 = vmatpush1.bf16.msra.mxu0 %v521
          %582 = vmatprep.subr.bf16.mxu0 0
          %583 = vmatpush1.bf16.msra.mxu0 %v522
          %584 = vmatprep.subr.bf16.mxu0 0
          %585 = vmatpush1.bf16.msra.mxu0 %v523
          %586 = vmatprep.subr.bf16.mxu0 0
          %587 = vmatpush1.bf16.msra.mxu0 %v524
          %588 = vmatprep.subr.bf16.mxu0 0
          %589 = vmatpush1.bf16.msra.mxu0 %v525
          %590 = vmatprep.mubr.bf16.mxu0 %v408
          %591 = vmatmul.mubr.bf16.gmra.mrb[0].mxu0 %v407
          %v592 = vpop.f32.mrb[0].mxu0
          %v593 = vadd.f32 %v413, %v592
          %v594 = vpop.f32.mrb[0].mxu0
          %v595 = vpop.f32.mrb[0].mxu0
          %v596 = vadd.f32 %v413, %v595
          %v597 = vpop.f32.mrb[0].mxu0
          %598 = vdwg.mxu0
          %599 = vmatprep.subr.bf16.mxu0 0
          %600 = vmatpush1.bf16.msra.mxu0 %v526
          %601 = vmatprep.subr.bf16.mxu0 0
          %602 = vmatpush1.bf16.msra.mxu0 %v527
          %603 = vmatprep.subr.bf16.mxu0 0
          %604 = vmatpush1.bf16.msra.mxu0 %v528
          %605 = vmatprep.subr.bf16.mxu0 0
          %606 = vmatpush1.bf16.msra.mxu0 %v529
          %607 = vmatprep.subr.bf16.mxu0 0
          %608 = vmatpush1.bf16.msra.mxu0 %v530
          %609 = vmatprep.subr.bf16.mxu0 0
          %610 = vmatpush1.bf16.msra.mxu0 %v531
          %611 = vmatprep.subr.bf16.mxu0 0
          %612 = vmatpush1.bf16.msra.mxu0 %v532
          %613 = vmatprep.subr.bf16.mxu0 0
          %614 = vmatpush1.bf16.msra.mxu0 %v533
          %615 = vmatprep.subr.bf16.mxu0 0
          %616 = vmatpush1.bf16.msra.mxu0 0
          %617 = vmatprep.subr.bf16.mxu0 0
          %618 = vmatpush1.bf16.msra.mxu0 0
          %619 = vmatprep.subr.bf16.mxu0 0
          %620 = vmatpush1.bf16.msra.mxu0 0
          %621 = vmatprep.subr.bf16.mxu0 0
          %622 = vmatpush1.bf16.msra.mxu0 0
          %623 = vmatprep.subr.bf16.mxu0 0
          %624 = vmatpush1.bf16.msra.mxu0 0
          %625 = vmatprep.subr.bf16.mxu0 0
          %626 = vmatpush1.bf16.msra.mxu0 0
          %627 = vmatprep.subr.bf16.mxu0 0
          %628 = vmatpush1.bf16.msra.mxu0 0
          %629 = vmatprep.subr.bf16.mxu0 0
          %630 = vmatpush1.bf16.msra.mxu0 0
          %631 = vmatprep.mubr.bf16.mxu0 0
          %632 = vmatmul.mubr.bf16.gmra.mrb[0].mxu0 %v409
          %v633 = vpop.f32.mrb[0].mxu0
          %v634 = vadd.f32 %v593, %v633
          %v635 = vpop.f32.mrb[0].mxu0
          %v636 = vpop.f32.mrb[0].mxu0
          %v637 = vadd.f32 %v596, %v636
          %v638 = vpop.f32.mrb[0].mxu0
          %639 = vdwg.mxu0
          %v640 = vtanh.pop %v634
          %v641 = vtanh.pop %v637
          %v642 = vmul.f32 %v634, 0.5
          %v643 = vmul.f32 %v637, 0.5
          %v644 = vtanh.pop %v642
          %v645 = vtanh.pop %v643
          %v646 = vmul.f32 %v644, 0.5
          %v647 = vmul.f32 %v645, 0.5
          %v648 = vadd.f32 %v646, 0.5
          %v649 = vadd.f32 %v647, 0.5
          %v650 = vmul.f32 %v640, %v648
          %v651 = vmul.f32 %v641, %v649
          %s652 = sadd.s32 %s312, 1
          %v653 = vpack.c.bf16 %v651, %v650
          %654 = vst [vmem:[#allocation2 + $0x8] sm:$0xff] %v653
          %v655 = vld [vmem:[#allocation2] sm:$0x1]
          %v656 = vsel %vm322, 0, %v655
          %657 = vst [vmem:[#allocation2] sm:$0x1] %v656
          %v659 = vshrl.u32 %v653, 16
          %v661 = vrot.slane %v659, 7
          %v662 = vshll.u32 %v653, 16
          %v664 = vor.u32 %v661, %v662
          %v666 = vld [vmem:[#allocation2] sm:$0xff]
          %v667 = vsel %vm336, %v664, %v666
          %668 = vst [vmem:[#allocation2] sm:$0xff] %v667
          %v669 = vrot.slane %v662, 1
          %v670 = vor.u32 %v659, %v669
          %v672 = vld [vmem:[#allocation2 + $0x10] sm:$0xff]
          %v673 = vsel %vm344, %v670, %v672
          %674 = vst [vmem:[#allocation2 + $0x10] sm:$0xff] %v673
          %v675 = vld [vmem:[#allocation2 + $0x10] sm:$0x80]
          %v676 = vsel %vm350, 0, %v675
          %677 = vst [vmem:[#allocation2 + $0x10] sm:$0x80] %v676
          %s678 = smul.u32 %s652, 48
          %s679 = smul.addr %s678, 4
          %s680 = scalar_lea.vmem [#allocation6], %s679
          %v681 = vld [vmem:[%s680] sm:$0xf]
          %v682 = vld [vmem:[%s680 + $0x4] sm:$0xf]
          %v683 = vld [vmem:[%s680 + $0x8] sm:$0xf]
          %v684 = vld [vmem:[%s680 + $0xc] sm:$0xf]
          %v685 = vld [vmem:[%s680 + $0x10] sm:$0xf]
          %v686 = vld [vmem:[%s680 + $0x14] sm:$0xf]
          %v687 = vld [vmem:[%s680 + $0x18] sm:$0xf]
          %v688 = vld [vmem:[%s680 + $0x1c] sm:$0xf]
          %v689 = vld [vmem:[%s680 + $0x20] sm:$0xf]
          %v690 = vld [vmem:[%s680 + $0x24] sm:$0xf]
          %v691 = vld [vmem:[%s680 + $0x28] sm:$0xf]
          %v692 = vld [vmem:[%s680 + $0x2c] sm:$0xf]
          %v693 = vld [vmem:[%s680 + $0x30] sm:$0xf]
          %v694 = vld [vmem:[%s680 + $0x34] sm:$0xf]
          %v695 = vld [vmem:[%s680 + $0x38] sm:$0xf]
          %v696 = vld [vmem:[%s680 + $0x3c] sm:$0xf]
          %v697 = vld [vmem:[%s680 + $0x40] sm:$0xf]
          %v698 = vld [vmem:[%s680 + $0x44] sm:$0xf]
          %v699 = vld [vmem:[%s680 + $0x48] sm:$0xf]
          %v700 = vld [vmem:[%s680 + $0x4c] sm:$0xf]
          %v701 = vld [vmem:[%s680 + $0x50] sm:$0xf]
          %v702 = vld [vmem:[%s680 + $0x54] sm:$0xf]
          %v703 = vld [vmem:[%s680 + $0x58] sm:$0xf]
          %v704 = vld [vmem:[%s680 + $0x5c] sm:$0xf]
          %v705 = vld [vmem:[%s680 + $0x60] sm:$0xf]
          %v706 = vld [vmem:[%s680 + $0x64] sm:$0xf]
          %v707 = vld [vmem:[%s680 + $0x68] sm:$0xf]
          %v708 = vld [vmem:[%s680 + $0x6c] sm:$0xf]
          %v709 = vld [vmem:[%s680 + $0x70] sm:$0xf]
          %v710 = vld [vmem:[%s680 + $0x74] sm:$0xf]
          %v711 = vld [vmem:[%s680 + $0x78] sm:$0xf]
          %v712 = vld [vmem:[%s680 + $0x7c] sm:$0xf]
          %v713 = vld [vmem:[%s680 + $0x80] sm:$0xf]
          %v714 = vld [vmem:[%s680 + $0x84] sm:$0xf]
          %v715 = vld [vmem:[%s680 + $0x88] sm:$0xf]
          %v716 = vld [vmem:[%s680 + $0x8c] sm:$0xf]
          %v717 = vld [vmem:[%s680 + $0x90] sm:$0xf]
          %v718 = vld [vmem:[%s680 + $0x94] sm:$0xf]
          %v719 = vld [vmem:[%s680 + $0x98] sm:$0xf]
          %v720 = vld [vmem:[%s680 + $0x9c] sm:$0xf]
          %v721 = vld [vmem:[%s680 + $0xa0] sm:$0xf]
          %v722 = vld [vmem:[%s680 + $0xa4] sm:$0xf]
          %v723 = vld [vmem:[%s680 + $0xa8] sm:$0xf]
          %v724 = vld [vmem:[%s680 + $0xac] sm:$0xf]
          %v725 = vld [vmem:[%s680 + $0xb0] sm:$0xf]
          %v726 = vld [vmem:[%s680 + $0xb4] sm:$0xf]
          %v727 = vld [vmem:[%s680 + $0xb8] sm:$0xf]
          %v728 = vld [vmem:[%s680 + $0xbc] sm:$0xf]
          %s729 = scalar_lea.vmem [#allocation8], %s652
          %v730 = vld [vmem:[%s729] sm:$0x1]
          %v731 = vld [vmem:[#allocation2] sm:$0xff]
          %v732 = vld [vmem:[#allocation2 + $0x8] sm:$0xff]
          %v733 = vld [vmem:[#allocation2 + $0x10] sm:$0xff]
          %v734 = vlaneseq
          %v735 = vshrl.u32 %v734, 7
          %v736 = vsub.s32 0, %v735
          %v737 = vrot.slane %v730, %v736
          %v786 = vunpack.c.l.b16 %v681
          %v787 = vunpack.c.l.b16 %v682
          %v788 = vunpack.c.l.b16 %v683
          %v789 = vunpack.c.l.b16 %v684
          %v790 = vunpack.c.l.b16 %v685
          %v791 = vunpack.c.l.b16 %v686
          %v792 = vunpack.c.l.b16 %v687
          %v793 = vunpack.c.l.b16 %v688
          %v794 = vunpack.c.l.b16 %v689
          %v795 = vunpack.c.l.b16 %v690
          %v796 = vunpack.c.l.b16 %v691
          %v797 = vunpack.c.l.b16 %v692
          %v798 = vunpack.c.l.b16 %v693
          %v799 = vunpack.c.l.b16 %v694
          %v800 = vunpack.c.l.b16 %v695
          %v801 = vunpack.c.l.b16 %v696
          %v802 = vunpack.c.l.b16 %v697
          %v803 = vunpack.c.l.b16 %v698
          %v804 = vunpack.c.l.b16 %v699
          %v805 = vunpack.c.l.b16 %v700
          %v806 = vunpack.c.l.b16 %v701
          %v807 = vunpack.c.l.b16 %v702
          %v808 = vunpack.c.l.b16 %v703
          %v809 = vunpack.c.l.b16 %v704
          %v810 = vunpack.c.l.b16 %v705
          %v811 = vunpack.c.l.b16 %v706
          %v812 = vunpack.c.l.b16 %v707
          %v813 = vunpack.c.l.b16 %v708
          %v814 = vunpack.c.l.b16 %v709
          %v815 = vunpack.c.l.b16 %v710
          %v816 = vunpack.c.l.b16 %v711
          %v817 = vunpack.c.l.b16 %v712
          %v818 = vunpack.c.l.b16 %v713
          %v819 = vunpack.c.l.b16 %v714
          %v820 = vunpack.c.l.b16 %v715
          %v821 = vunpack.c.l.b16 %v716
          %v822 = vunpack.c.l.b16 %v717
          %v823 = vunpack.c.l.b16 %v718
          %v824 = vunpack.c.l.b16 %v719
          %v825 = vunpack.c.l.b16 %v720
          %v826 = vunpack.c.l.b16 %v721
          %v827 = vunpack.c.l.b16 %v722
          %v828 = vunpack.c.l.b16 %v723
          %v829 = vunpack.c.l.b16 %v724
          %v830 = vunpack.c.l.b16 %v725
          %v831 = vunpack.c.l.b16 %v726
          %v832 = vunpack.c.l.b16 %v727
          %v833 = vunpack.c.l.b16 %v728
          %v834 = vpack.c.b16 %v787, %v786
          %v835 = vpack.c.b16 %v789, %v788
          %v836 = vpack.c.b16 %v791, %v790
          %v837 = vpack.c.b16 %v793, %v792
          %v838 = vpack.c.b16 %v795, %v794
          %v839 = vpack.c.b16 %v797, %v796
          %v840 = vpack.c.b16 %v799, %v798
          %v841 = vpack.c.b16 %v801, %v800
          %v842 = vpack.c.b16 %v803, %v802
          %v843 = vpack.c.b16 %v805, %v804
          %v844 = vpack.c.b16 %v807, %v806
          %v845 = vpack.c.b16 %v809, %v808
          %v846 = vpack.c.b16 %v811, %v810
          %v847 = vpack.c.b16 %v813, %v812
          %v848 = vpack.c.b16 %v815, %v814
          %v849 = vpack.c.b16 %v817, %v816
          %v850 = vpack.c.b16 %v819, %v818
          %v851 = vpack.c.b16 %v821, %v820
          %v852 = vpack.c.b16 %v823, %v822
          %v853 = vpack.c.b16 %v825, %v824
          %v854 = vpack.c.b16 %v827, %v826
          %v855 = vpack.c.b16 %v829, %v828
          %v856 = vpack.c.b16 %v831, %v830
          %v857 = vpack.c.b16 %v833, %v832
          %882 = vmatprep.subr.bf16.mxu0 0
          %883 = vmatpush1.bf16.msra.mxu0 %v834
          %884 = vmatprep.subr.bf16.mxu0 0
          %885 = vmatpush1.bf16.msra.mxu0 %v835
          %886 = vmatprep.subr.bf16.mxu0 0
          %887 = vmatpush1.bf16.msra.mxu0 %v836
          %888 = vmatprep.subr.bf16.mxu0 0
          %889 = vmatpush1.bf16.msra.mxu0 %v837
          %890 = vmatprep.subr.bf16.mxu0 0
          %891 = vmatpush1.bf16.msra.mxu0 %v838
          %892 = vmatprep.subr.bf16.mxu0 0
          %893 = vmatpush1.bf16.msra.mxu0 %v839
          %894 = vmatprep.subr.bf16.mxu0 0
          %895 = vmatpush1.bf16.msra.mxu0 %v840
          %896 = vmatprep.subr.bf16.mxu0 0
          %897 = vmatpush1.bf16.msra.mxu0 %v841
          %898 = vmatprep.subr.bf16.mxu0 0
          %899 = vmatpush1.bf16.msra.mxu0 %v842
          %900 = vmatprep.subr.bf16.mxu0 0
          %901 = vmatpush1.bf16.msra.mxu0 %v843
          %902 = vmatprep.subr.bf16.mxu0 0
          %903 = vmatpush1.bf16.msra.mxu0 %v844
          %904 = vmatprep.subr.bf16.mxu0 0
          %905 = vmatpush1.bf16.msra.mxu0 %v845
          %906 = vmatprep.subr.bf16.mxu0 0
          %907 = vmatpush1.bf16.msra.mxu0 %v846
          %908 = vmatprep.subr.bf16.mxu0 0
          %909 = vmatpush1.bf16.msra.mxu0 %v847
          %910 = vmatprep.subr.bf16.mxu0 0
          %911 = vmatpush1.bf16.msra.mxu0 %v848
          %912 = vmatprep.subr.bf16.mxu0 0
          %913 = vmatpush1.bf16.msra.mxu0 %v849
          %914 = vmatprep.mubr.bf16.mxu0 %v732
          %915 = vmatmul.mubr.bf16.gmra.mrb[0].mxu0 %v731
          %v916 = vpop.f32.mrb[0].mxu0
          %v917 = vadd.f32 %v737, %v916
          %v918 = vpop.f32.mrb[0].mxu0
          %v919 = vpop.f32.mrb[0].mxu0
          %v920 = vadd.f32 %v737, %v919
          %v921 = vpop.f32.mrb[0].mxu0
          %922 = vdwg.mxu0
          %923 = vmatprep.subr.bf16.mxu0 0
          %924 = vmatpush1.bf16.msra.mxu0 %v850
          %925 = vmatprep.subr.bf16.mxu0 0
          %926 = vmatpush1.bf16.msra.mxu0 %v851
          %927 = vmatprep.subr.bf16.mxu0 0
          %928 = vmatpush1.bf16.msra.mxu0 %v852
          %929 = vmatprep.subr.bf16.mxu0 0
          %930 = vmatpush1.bf16.msra.mxu0 %v853
          %931 = vmatprep.subr.bf16.mxu0 0
          %932 = vmatpush1.bf16.msra.mxu0 %v854
          %933 = vmatprep.subr.bf16.mxu0 0
          %934 = vmatpush1.bf16.msra.mxu0 %v855
          %935 = vmatprep.subr.bf16.mxu0 0
          %936 = vmatpush1.bf16.msra.mxu0 %v856
          %937 = vmatprep.subr.bf16.mxu0 0
          %938 = vmatpush1.bf16.msra.mxu0 %v857
          %939 = vmatprep.subr.bf16.mxu0 0
          %940 = vmatpush1.bf16.msra.mxu0 0
          %941 = vmatprep.subr.bf16.mxu0 0
          %942 = vmatpush1.bf16.msra.mxu0 0
          %943 = vmatprep.subr.bf16.mxu0 0
          %944 = vmatpush1.bf16.msra.mxu0 0
          %945 = vmatprep.subr.bf16.mxu0 0
          %946 = vmatpush1.bf16.msra.mxu0 0
          %947 = vmatprep.subr.bf16.mxu0 0
          %948 = vmatpush1.bf16.msra.mxu0 0
          %949 = vmatprep.subr.bf16.mxu0 0
          %950 = vmatpush1.bf16.msra.mxu0 0
          %951 = vmatprep.subr.bf16.mxu0 0
          %952 = vmatpush1.bf16.msra.mxu0 0
          %953 = vmatprep.subr.bf16.mxu0 0
          %954 = vmatpush1.bf16.msra.mxu0 0
          %955 = vmatprep.mubr.bf16.mxu0 0
          %956 = vmatmul.mubr.bf16.gmra.mrb[0].mxu0 %v733
          %v957 = vpop.f32.mrb[0].mxu0
          %v958 = vadd.f32 %v917, %v957
          %v959 = vpop.f32.mrb[0].mxu0
          %v960 = vpop.f32.mrb[0].mxu0
          %v961 = vadd.f32 %v920, %v960
          %v962 = vpop.f32.mrb[0].mxu0
          %963 = vdwg.mxu0
          %v964 = vtanh.pop %v958
          %v965 = vtanh.pop %v961
          %v966 = vadd.f32 %v964, 0.0
          %v967 = vadd.f32 %v965, 0.0
          %v968 = vadd.f32 %v302, %v964
          %v969 = vadd.f32 %v303, %v965
          %s970 = sadd.s32 %s312, 2
          %v971 = vpack.c.bf16 %v969, %v968
          %972 = vst [vmem:[#allocation2 + $0x8] sm:$0xff] %v971
          %973 = vst [vmem:[#allocation2] sm:$0x1] 0
          %v975 = vrot.slane %v971, 7
          %977 = vst [vmem:[#allocation2] sm:$0xfe] %v975
          %v978 = vrot.slane %v971, 1
          %980 = vst [vmem:[#allocation2 + $0x10] sm:$0x7f] %v978
          %981 = vst [vmem:[#allocation2 + $0x10] sm:$0x80] 0
          %s982 = smul.u32 %s970, 48
          %s983 = smul.addr %s982, 4
          %s984 = scalar_lea.vmem [#allocation6], %s983
          %v985 = vld [vmem:[%s984] sm:$0xf]
          %v986 = vld [vmem:[%s984 + $0x4] sm:$0xf]
          %v987 = vld [vmem:[%s984 + $0x8] sm:$0xf]
          %v988 = vld [vmem:[%s984 + $0xc] sm:$0xf]
          %v989 = vld [vmem:[%s984 + $0x10] sm:$0xf]
          %v990 = vld [vmem:[%s984 + $0x14] sm:$0xf]
          %v991 = vld [vmem:[%s984 + $0x18] sm:$0xf]
          %v992 = vld [vmem:[%s984 + $0x1c] sm:$0xf]
          %v993 = vld [vmem:[%s984 + $0x20] sm:$0xf]
          %v994 = vld [vmem:[%s984 + $0x24] sm:$0xf]
          %v995 = vld [vmem:[%s984 + $0x28] sm:$0xf]
          %v996 = vld [vmem:[%s984 + $0x2c] sm:$0xf]
          %v997 = vld [vmem:[%s984 + $0x30] sm:$0xf]
          %v998 = vld [vmem:[%s984 + $0x34] sm:$0xf]
          %v999 = vld [vmem:[%s984 + $0x38] sm:$0xf]
          %v1000 = vld [vmem:[%s984 + $0x3c] sm:$0xf]
          %v1001 = vld [vmem:[%s984 + $0x40] sm:$0xf]
          %v1002 = vld [vmem:[%s984 + $0x44] sm:$0xf]
          %v1003 = vld [vmem:[%s984 + $0x48] sm:$0xf]
          %v1004 = vld [vmem:[%s984 + $0x4c] sm:$0xf]
          %v1005 = vld [vmem:[%s984 + $0x50] sm:$0xf]
          %v1006 = vld [vmem:[%s984 + $0x54] sm:$0xf]
          %v1007 = vld [vmem:[%s984 + $0x58] sm:$0xf]
          %v1008 = vld [vmem:[%s984 + $0x5c] sm:$0xf]
          %v1009 = vld [vmem:[%s984 + $0x60] sm:$0xf]
          %v1010 = vld [vmem:[%s984 + $0x64] sm:$0xf]
          %v1011 = vld [vmem:[%s984 + $0x68] sm:$0xf]
          %v1012 = vld [vmem:[%s984 + $0x6c] sm:$0xf]
          %v1013 = vld [vmem:[%s984 + $0x70] sm:$0xf]
          %v1014 = vld [vmem:[%s984 + $0x74] sm:$0xf]
          %v1015 = vld [vmem:[%s984 + $0x78] sm:$0xf]
          %v1016 = vld [vmem:[%s984 + $0x7c] sm:$0xf]
          %v1017 = vld [vmem:[%s984 + $0x80] sm:$0xf]
          %v1018 = vld [vmem:[%s984 + $0x84] sm:$0xf]
          %v1019 = vld [vmem:[%s984 + $0x88] sm:$0xf]
          %v1020 = vld [vmem:[%s984 + $0x8c] sm:$0xf]
          %v1021 = vld [vmem:[%s984 + $0x90] sm:$0xf]
          %v1022 = vld [vmem:[%s984 + $0x94] sm:$0xf]
          %v1023 = vld [vmem:[%s984 + $0x98] sm:$0xf]
          %v1024 = vld [vmem:[%s984 + $0x9c] sm:$0xf]
          %v1025 = vld [vmem:[%s984 + $0xa0] sm:$0xf]
          %v1026 = vld [vmem:[%s984 + $0xa4] sm:$0xf]
          %v1027 = vld [vmem:[%s984 + $0xa8] sm:$0xf]
          %v1028 = vld [vmem:[%s984 + $0xac] sm:$0xf]
          %v1029 = vld [vmem:[%s984 + $0xb0] sm:$0xf]
          %v1030 = vld [vmem:[%s984 + $0xb4] sm:$0xf]
          %v1031 = vld [vmem:[%s984 + $0xb8] sm:$0xf]
          %v1032 = vld [vmem:[%s984 + $0xbc] sm:$0xf]
          %s1033 = scalar_lea.vmem [#allocation8], %s970
          %v1034 = vld [vmem:[%s1033] sm:$0x1]
          %v1035 = vld [vmem:[#allocation2] sm:$0xff]
          %v1036 = vld [vmem:[#allocation2 + $0x8] sm:$0xff]
          %v1037 = vld [vmem:[#allocation2 + $0x10] sm:$0xff]
          %v1038 = vlaneseq
          %v1039 = vshrl.u32 %v1038, 7
          %v1040 = vsub.s32 0, %v1039
          %v1041 = vrot.slane %v1034, %v1040
          %v1090 = vunpack.c.l.b16 %v985
          %v1091 = vunpack.c.l.b16 %v986
          %v1092 = vunpack.c.l.b16 %v987
          %v1093 = vunpack.c.l.b16 %v988
          %v1094 = vunpack.c.l.b16 %v989
          %v1095 = vunpack.c.l.b16 %v990
          %v1096 = vunpack.c.l.b16 %v991
          %v1097 = vunpack.c.l.b16 %v992
          %v1098 = vunpack.c.l.b16 %v993
          %v1099 = vunpack.c.l.b16 %v994
          %v1100 = vunpack.c.l.b16 %v995
          %v1101 = vunpack.c.l.b16 %v996
          %v1102 = vunpack.c.l.b16 %v997
          %v1103 = vunpack.c.l.b16 %v998
          %v1104 = vunpack.c.l.b16 %v999
          %v1105 = vunpack.c.l.b16 %v1000
          %v1106 = vunpack.c.l.b16 %v1001
          %v1107 = vunpack.c.l.b16 %v1002
          %v1108 = vunpack.c.l.b16 %v1003
          %v1109 = vunpack.c.l.b16 %v1004
          %v1110 = vunpack.c.l.b16 %v1005
          %v1111 = vunpack.c.l.b16 %v1006
          %v1112 = vunpack.c.l.b16 %v1007
          %v1113 = vunpack.c.l.b16 %v1008
          %v1114 = vunpack.c.l.b16 %v1009
          %v1115 = vunpack.c.l.b16 %v1010
          %v1116 = vunpack.c.l.b16 %v1011
          %v1117 = vunpack.c.l.b16 %v1012
          %v1118 = vunpack.c.l.b16 %v1013
          %v1119 = vunpack.c.l.b16 %v1014
          %v1120 = vunpack.c.l.b16 %v1015
          %v1121 = vunpack.c.l.b16 %v1016
          %v1122 = vunpack.c.l.b16 %v1017
          %v1123 = vunpack.c.l.b16 %v1018
          %v1124 = vunpack.c.l.b16 %v1019
          %v1125 = vunpack.c.l.b16 %v1020
          %v1126 = vunpack.c.l.b16 %v1021
          %v1127 = vunpack.c.l.b16 %v1022
          %v1128 = vunpack.c.l.b16 %v1023
          %v1129 = vunpack.c.l.b16 %v1024
          %v1130 = vunpack.c.l.b16 %v1025
          %v1131 = vunpack.c.l.b16 %v1026
          %v1132 = vunpack.c.l.b16 %v1027
          %v1133 = vunpack.c.l.b16 %v1028
          %v1134 = vunpack.c.l.b16 %v1029
          %v1135 = vunpack.c.l.b16 %v1030
          %v1136 = vunpack.c.l.b16 %v1031
          %v1137 = vunpack.c.l.b16 %v1032
          %v1138 = vpack.c.b16 %v1091, %v1090
          %v1139 = vpack.c.b16 %v1093, %v1092
          %v1140 = vpack.c.b16 %v1095, %v1094
          %v1141 = vpack.c.b16 %v1097, %v1096
          %v1142 = vpack.c.b16 %v1099, %v1098
          %v1143 = vpack.c.b16 %v1101, %v1100
          %v1144 = vpack.c.b16 %v1103, %v1102
          %v1145 = vpack.c.b16 %v1105, %v1104
          %v1146 = vpack.c.b16 %v1107, %v1106
          %v1147 = vpack.c.b16 %v1109, %v1108
          %v1148 = vpack.c.b16 %v1111, %v1110
          %v1149 = vpack.c.b16 %v1113, %v1112
          %v1150 = vpack.c.b16 %v1115, %v1114
          %v1151 = vpack.c.b16 %v1117, %v1116
          %v1152 = vpack.c.b16 %v1119, %v1118
          %v1153 = vpack.c.b16 %v1121, %v1120
          %v1154 = vpack.c.b16 %v1123, %v1122
          %v1155 = vpack.c.b16 %v1125, %v1124
          %v1156 = vpack.c.b16 %v1127, %v1126
          %v1157 = vpack.c.b16 %v1129, %v1128
          %v1158 = vpack.c.b16 %v1131, %v1130
          %v1159 = vpack.c.b16 %v1133, %v1132
          %v1160 = vpack.c.b16 %v1135, %v1134
          %v1161 = vpack.c.b16 %v1137, %v1136
          %1186 = vmatprep.subr.bf16.mxu0 0
          %1187 = vmatpush1.bf16.msra.mxu0 %v1138
          %1188 = vmatprep.subr.bf16.mxu0 0
          %1189 = vmatpush1.bf16.msra.mxu0 %v1139
          %1190 = vmatprep.subr.bf16.mxu0 0
          %1191 = vmatpush1.bf16.msra.mxu0 %v1140
          %1192 = vmatprep.subr.bf16.mxu0 0
          %1193 = vmatpush1.bf16.msra.mxu0 %v1141
          %1194 = vmatprep.subr.bf16.mxu0 0
          %1195 = vmatpush1.bf16.msra.mxu0 %v1142
          %1196 = vmatprep.subr.bf16.mxu0 0
          %1197 = vmatpush1.bf16.msra.mxu0 %v1143
          %1198 = vmatprep.subr.bf16.mxu0 0
          %1199 = vmatpush1.bf16.msra.mxu0 %v1144
          %1200 = vmatprep.subr.bf16.mxu0 0
          %1201 = vmatpush1.bf16.msra.mxu0 %v1145
          %1202 = vmatprep.subr.bf16.mxu0 0
          %1203 = vmatpush1.bf16.msra.mxu0 %v1146
          %1204 = vmatprep.subr.bf16.mxu0 0
          %1205 = vmatpush1.bf16.msra.mxu0 %v1147
          %1206 = vmatprep.subr.bf16.mxu0 0
          %1207 = vmatpush1.bf16.msra.mxu0 %v1148
          %1208 = vmatprep.subr.bf16.mxu0 0
          %1209 = vmatpush1.bf16.msra.mxu0 %v1149
          %1210 = vmatprep.subr.bf16.mxu0 0
          %1211 = vmatpush1.bf16.msra.mxu0 %v1150
          %1212 = vmatprep.subr.bf16.mxu0 0
          %1213 = vmatpush1.bf16.msra.mxu0 %v1151
          %1214 = vmatprep.subr.bf16.mxu0 0
          %1215 = vmatpush1.bf16.msra.mxu0 %v1152
          %1216 = vmatprep.subr.bf16.mxu0 0
          %1217 = vmatpush1.bf16.msra.mxu0 %v1153
          %1218 = vmatprep.mubr.bf16.mxu0 %v1036
          %1219 = vmatmul.mubr.bf16.gmra.mrb[0].mxu0 %v1035
          %v1220 = vpop.f32.mrb[0].mxu0
          %v1221 = vadd.f32 %v1041, %v1220
          %v1222 = vpop.f32.mrb[0].mxu0
          %v1223 = vpop.f32.mrb[0].mxu0
          %v1224 = vadd.f32 %v1041, %v1223
          %v1225 = vpop.f32.mrb[0].mxu0
          %1226 = vdwg.mxu0
          %1227 = vmatprep.subr.bf16.mxu0 0
          %1228 = vmatpush1.bf16.msra.mxu0 %v1154
          %1229 = vmatprep.subr.bf16.mxu0 0
          %1230 = vmatpush1.bf16.msra.mxu0 %v1155
          %1231 = vmatprep.subr.bf16.mxu0 0
          %1232 = vmatpush1.bf16.msra.mxu0 %v1156
          %1233 = vmatprep.subr.bf16.mxu0 0
          %1234 = vmatpush1.bf16.msra.mxu0 %v1157
          %1235 = vmatprep.subr.bf16.mxu0 0
          %1236 = vmatpush1.bf16.msra.mxu0 %v1158
          %1237 = vmatprep.subr.bf16.mxu0 0
          %1238 = vmatpush1.bf16.msra.mxu0 %v1159
          %1239 = vmatprep.subr.bf16.mxu0 0
          %1240 = vmatpush1.bf16.msra.mxu0 %v1160
          %1241 = vmatprep.subr.bf16.mxu0 0
          %1242 = vmatpush1.bf16.msra.mxu0 %v1161
          %1243 = vmatprep.subr.bf16.mxu0 0
          %1244 = vmatpush1.bf16.msra.mxu0 0
          %1245 = vmatprep.subr.bf16.mxu0 0
          %1246 = vmatpush1.bf16.msra.mxu0 0
          %1247 = vmatprep.subr.bf16.mxu0 0
          %1248 = vmatpush1.bf16.msra.mxu0 0
          %1249 = vmatprep.subr.bf16.mxu0 0
          %1250 = vmatpush1.bf16.msra.mxu0 0
          %1251 = vmatprep.subr.bf16.mxu0 0
          %1252 = vmatpush1.bf16.msra.mxu0 0
          %1253 = vmatprep.subr.bf16.mxu0 0
          %1254 = vmatpush1.bf16.msra.mxu0 0
          %1255 = vmatprep.subr.bf16.mxu0 0
          %1256 = vmatpush1.bf16.msra.mxu0 0
          %1257 = vmatprep.subr.bf16.mxu0 0
          %1258 = vmatpush1.bf16.msra.mxu0 0
          %1259 = vmatprep.mubr.bf16.mxu0 0
          %1260 = vmatmul.mubr.bf16.gmra.mrb[0].mxu0 %v1037
          %v1261 = vpop.f32.mrb[0].mxu0
          %v1262 = vadd.f32 %v1221, %v1261
          %v1263 = vpop.f32.mrb[0].mxu0
          %v1264 = vpop.f32.mrb[0].mxu0
          %v1265 = vadd.f32 %v1224, %v1264
          %v1266 = vpop.f32.mrb[0].mxu0
          %1267 = vdwg.mxu0
          %v1268 = vtanh.pop %v1262
          %v1269 = vtanh.pop %v1265
          %v1270 = vmul.f32 %v1262, 0.5
          %v1271 = vmul.f32 %v1265, 0.5
          %v1272 = vtanh.pop %v1270
          %v1273 = vtanh.pop %v1271
          %v1274 = vmul.f32 %v1272, 0.5
          %v1275 = vmul.f32 %v1273, 0.5
          %v1276 = vadd.f32 %v1274, 0.5
          %v1277 = vadd.f32 %v1275, 0.5
          %v1278 = vmul.f32 %v1268, %v1276
          %v1279 = vmul.f32 %v1269, %v1277
          %s1280 = sadd.s32 %s312, 3
          %v1281 = vpack.c.bf16 %v1279, %v1278
          %1282 = vst [vmem:[#allocation2 + $0x8] sm:$0xff] %v1281
          %v1283 = vld [vmem:[#allocation2] sm:$0x1]
          %v1284 = vsel %vm322, 0, %v1283
          %1285 = vst [vmem:[#allocation2] sm:$0x1] %v1284
          %v1287 = vshrl.u32 %v1281, 16
          %v1289 = vrot.slane %v1287, 7
          %v1290 = vshll.u32 %v1281, 16
          %v1292 = vor.u32 %v1289, %v1290
          %v1294 = vld [vmem:[#allocation2] sm:$0xff]
          %v1295 = vsel %vm336, %v1292, %v1294
          %1296 = vst [vmem:[#allocation2] sm:$0xff] %v1295
          %v1297 = vrot.slane %v1290, 1
          %v1298 = vor.u32 %v1287, %v1297
          %v1300 = vld [vmem:[#allocation2 + $0x10] sm:$0xff]
          %v1301 = vsel %vm344, %v1298, %v1300
          %1302 = vst [vmem:[#allocation2 + $0x10] sm:$0xff] %v1301
          %v1303 = vld [vmem:[#allocation2 + $0x10] sm:$0x80]
          %v1304 = vsel %vm350, 0, %v1303
          %1305 = vst [vmem:[#allocation2 + $0x10] sm:$0x80] %v1304
          %s1306 = smul.u32 %s1280, 48
          %s1307 = smul.addr %s1306, 4
          %s1308 = scalar_lea.vmem [#allocation6], %s1307
          %v1309 = vld [vmem:[%s1308] sm:$0xf]
          %v1310 = vld [vmem:[%s1308 + $0x4] sm:$0xf]
          %v1311 = vld [vmem:[%s1308 + $0x8] sm:$0xf]
          %v1312 = vld [vmem:[%s1308 + $0xc] sm:$0xf]
          %v1313 = vld [vmem:[%s1308 + $0x10] sm:$0xf]
          %v1314 = vld [vmem:[%s1308 + $0x14] sm:$0xf]
          %v1315 = vld [vmem:[%s1308 + $0x18] sm:$0xf]
          %v1316 = vld [vmem:[%s1308 + $0x1c] sm:$0xf]
          %v1317 = vld [vmem:[%s1308 + $0x20] sm:$0xf]
          %v1318 = vld [vmem:[%s1308 + $0x24] sm:$0xf]
          %v1319 = vld [vmem:[%s1308 + $0x28] sm:$0xf]
          %v1320 = vld [vmem:[%s1308 + $0x2c] sm:$0xf]
          %v1321 = vld [vmem:[%s1308 + $0x30] sm:$0xf]
          %v1322 = vld [vmem:[%s1308 + $0x34] sm:$0xf]
          %v1323 = vld [vmem:[%s1308 + $0x38] sm:$0xf]
          %v1324 = vld [vmem:[%s1308 + $0x3c] sm:$0xf]
          %v1325 = vld [vmem:[%s1308 + $0x40] sm:$0xf]
          %v1326 = vld [vmem:[%s1308 + $0x44] sm:$0xf]
          %v1327 = vld [vmem:[%s1308 + $0x48] sm:$0xf]
          %v1328 = vld [vmem:[%s1308 + $0x4c] sm:$0xf]
          %v1329 = vld [vmem:[%s1308 + $0x50] sm:$0xf]
          %v1330 = vld [vmem:[%s1308 + $0x54] sm:$0xf]
          %v1331 = vld [vmem:[%s1308 + $0x58] sm:$0xf]
          %v1332 = vld [vmem:[%s1308 + $0x5c] sm:$0xf]
          %v1333 = vld [vmem:[%s1308 + $0x60] sm:$0xf]
          %v1334 = vld [vmem:[%s1308 + $0x64] sm:$0xf]
          %v1335 = vld [vmem:[%s1308 + $0x68] sm:$0xf]
          %v1336 = vld [vmem:[%s1308 + $0x6c] sm:$0xf]
          %v1337 = vld [vmem:[%s1308 + $0x70] sm:$0xf]
          %v1338 = vld [vmem:[%s1308 + $0x74] sm:$0xf]
          %v1339 = vld [vmem:[%s1308 + $0x78] sm:$0xf]
          %v1340 = vld [vmem:[%s1308 + $0x7c] sm:$0xf]
          %v1341 = vld [vmem:[%s1308 + $0x80] sm:$0xf]
          %v1342 = vld [vmem:[%s1308 + $0x84] sm:$0xf]
          %v1343 = vld [vmem:[%s1308 + $0x88] sm:$0xf]
          %v1344 = vld [vmem:[%s1308 + $0x8c] sm:$0xf]
          %v1345 = vld [vmem:[%s1308 + $0x90] sm:$0xf]
          %v1346 = vld [vmem:[%s1308 + $0x94] sm:$0xf]
          %v1347 = vld [vmem:[%s1308 + $0x98] sm:$0xf]
          %v1348 = vld [vmem:[%s1308 + $0x9c] sm:$0xf]
          %v1349 = vld [vmem:[%s1308 + $0xa0] sm:$0xf]
          %v1350 = vld [vmem:[%s1308 + $0xa4] sm:$0xf]
          %v1351 = vld [vmem:[%s1308 + $0xa8] sm:$0xf]
          %v1352 = vld [vmem:[%s1308 + $0xac] sm:$0xf]
          %v1353 = vld [vmem:[%s1308 + $0xb0] sm:$0xf]
          %v1354 = vld [vmem:[%s1308 + $0xb4] sm:$0xf]
          %v1355 = vld [vmem:[%s1308 + $0xb8] sm:$0xf]
          %v1356 = vld [vmem:[%s1308 + $0xbc] sm:$0xf]
          %s1357 = scalar_lea.vmem [#allocation8], %s1280
          %v1358 = vld [vmem:[%s1357] sm:$0x1]
          %v1359 = vld [vmem:[#allocation2] sm:$0xff]
          %v1360 = vld [vmem:[#allocation2 + $0x8] sm:$0xff]
          %v1361 = vld [vmem:[#allocation2 + $0x10] sm:$0xff]
          %v1362 = vlaneseq
          %v1363 = vshrl.u32 %v1362, 7
          %v1364 = vsub.s32 0, %v1363
          %v1365 = vrot.slane %v1358, %v1364
          %v1414 = vunpack.c.l.b16 %v1309
          %v1415 = vunpack.c.l.b16 %v1310
          %v1416 = vunpack.c.l.b16 %v1311
          %v1417 = vunpack.c.l.b16 %v1312
          %v1418 = vunpack.c.l.b16 %v1313
          %v1419 = vunpack.c.l.b16 %v1314
          %v1420 = vunpack.c.l.b16 %v1315
          %v1421 = vunpack.c.l.b16 %v1316
          %v1422 = vunpack.c.l.b16 %v1317
          %v1423 = vunpack.c.l.b16 %v1318
          %v1424 = vunpack.c.l.b16 %v1319
          %v1425 = vunpack.c.l.b16 %v1320
          %v1426 = vunpack.c.l.b16 %v1321
          %v1427 = vunpack.c.l.b16 %v1322
          %v1428 = vunpack.c.l.b16 %v1323
          %v1429 = vunpack.c.l.b16 %v1324
          %v1430 = vunpack.c.l.b16 %v1325
          %v1431 = vunpack.c.l.b16 %v1326
          %v1432 = vunpack.c.l.b16 %v1327
          %v1433 = vunpack.c.l.b16 %v1328
          %v1434 = vunpack.c.l.b16 %v1329
          %v1435 = vunpack.c.l.b16 %v1330
          %v1436 = vunpack.c.l.b16 %v1331
          %v1437 = vunpack.c.l.b16 %v1332
          %v1438 = vunpack.c.l.b16 %v1333
          %v1439 = vunpack.c.l.b16 %v1334
          %v1440 = vunpack.c.l.b16 %v1335
          %v1441 = vunpack.c.l.b16 %v1336
          %v1442 = vunpack.c.l.b16 %v1337
          %v1443 = vunpack.c.l.b16 %v1338
          %v1444 = vunpack.c.l.b16 %v1339
          %v1445 = vunpack.c.l.b16 %v1340
          %v1446 = vunpack.c.l.b16 %v1341
          %v1447 = vunpack.c.l.b16 %v1342
          %v1448 = vunpack.c.l.b16 %v1343
          %v1449 = vunpack.c.l.b16 %v1344
          %v1450 = vunpack.c.l.b16 %v1345
          %v1451 = vunpack.c.l.b16 %v1346
          %v1452 = vunpack.c.l.b16 %v1347
          %v1453 = vunpack.c.l.b16 %v1348
          %v1454 = vunpack.c.l.b16 %v1349
          %v1455 = vunpack.c.l.b16 %v1350
          %v1456 = vunpack.c.l.b16 %v1351
          %v1457 = vunpack.c.l.b16 %v1352
          %v1458 = vunpack.c.l.b16 %v1353
          %v1459 = vunpack.c.l.b16 %v1354
          %v1460 = vunpack.c.l.b16 %v1355
          %v1461 = vunpack.c.l.b16 %v1356
          %v1462 = vpack.c.b16 %v1415, %v1414
          %v1463 = vpack.c.b16 %v1417, %v1416
          %v1464 = vpack.c.b16 %v1419, %v1418
          %v1465 = vpack.c.b16 %v1421, %v1420
          %v1466 = vpack.c.b16 %v1423, %v1422
          %v1467 = vpack.c.b16 %v1425, %v1424
          %v1468 = vpack.c.b16 %v1427, %v1426
          %v1469 = vpack.c.b16 %v1429, %v1428
          %v1470 = vpack.c.b16 %v1431, %v1430
          %v1471 = vpack.c.b16 %v1433, %v1432
          %v1472 = vpack.c.b16 %v1435, %v1434
          %v1473 = vpack.c.b16 %v1437, %v1436
          %v1474 = vpack.c.b16 %v1439, %v1438
          %v1475 = vpack.c.b16 %v1441, %v1440
          %v1476 = vpack.c.b16 %v1443, %v1442
          %v1477 = vpack.c.b16 %v1445, %v1444
          %v1478 = vpack.c.b16 %v1447, %v1446
          %v1479 = vpack.c.b16 %v1449, %v1448
          %v1480 = vpack.c.b16 %v1451, %v1450
          %v1481 = vpack.c.b16 %v1453, %v1452
          %v1482 = vpack.c.b16 %v1455, %v1454
          %v1483 = vpack.c.b16 %v1457, %v1456
          %v1484 = vpack.c.b16 %v1459, %v1458
          %v1485 = vpack.c.b16 %v1461, %v1460
          %1510 = vmatprep.subr.bf16.mxu0 0
          %1511 = vmatpush1.bf16.msra.mxu0 %v1462
          %1512 = vmatprep.subr.bf16.mxu0 0
          %1513 = vmatpush1.bf16.msra.mxu0 %v1463
          %1514 = vmatprep.subr.bf16.mxu0 0
          %1515 = vmatpush1.bf16.msra.mxu0 %v1464
          %1516 = vmatprep.subr.bf16.mxu0 0
          %1517 = vmatpush1.bf16.msra.mxu0 %v1465
          %1518 = vmatprep.subr.bf16.mxu0 0
          %1519 = vmatpush1.bf16.msra.mxu0 %v1466
          %1520 = vmatprep.subr.bf16.mxu0 0
          %1521 = vmatpush1.bf16.msra.mxu0 %v1467
          %1522 = vmatprep.subr.bf16.mxu0 0
          %1523 = vmatpush1.bf16.msra.mxu0 %v1468
          %1524 = vmatprep.subr.bf16.mxu0 0
          %1525 = vmatpush1.bf16.msra.mxu0 %v1469
          %1526 = vmatprep.subr.bf16.mxu0 0
          %1527 = vmatpush1.bf16.msra.mxu0 %v1470
          %1528 = vmatprep.subr.bf16.mxu0 0
          %1529 = vmatpush1.bf16.msra.mxu0 %v1471
          %1530 = vmatprep.subr.bf16.mxu0 0
          %1531 = vmatpush1.bf16.msra.mxu0 %v1472
          %1532 = vmatprep.subr.bf16.mxu0 0
          %1533 = vmatpush1.bf16.msra.mxu0 %v1473
          %1534 = vmatprep.subr.bf16.mxu0 0
          %1535 = vmatpush1.bf16.msra.mxu0 %v1474
          %1536 = vmatprep.subr.bf16.mxu0 0
          %1537 = vmatpush1.bf16.msra.mxu0 %v1475
          %1538 = vmatprep.subr.bf16.mxu0 0
          %1539 = vmatpush1.bf16.msra.mxu0 %v1476
          %1540 = vmatprep.subr.bf16.mxu0 0
          %1541 = vmatpush1.bf16.msra.mxu0 %v1477
          %1542 = vmatprep.mubr.bf16.mxu0 %v1360
          %1543 = vmatmul.mubr.bf16.gmra.mrb[0].mxu0 %v1359
          %v1544 = vpop.f32.mrb[0].mxu0
          %v1545 = vadd.f32 %v1365, %v1544
          %v1546 = vpop.f32.mrb[0].mxu0
          %v1547 = vpop.f32.mrb[0].mxu0
          %v1548 = vadd.f32 %v1365, %v1547
          %v1549 = vpop.f32.mrb[0].mxu0
          %1550 = vdwg.mxu0
          %1551 = vmatprep.subr.bf16.mxu0 0
          %1552 = vmatpush1.bf16.msra.mxu0 %v1478
          %1553 = vmatprep.subr.bf16.mxu0 0
          %1554 = vmatpush1.bf16.msra.mxu0 %v1479
          %1555 = vmatprep.subr.bf16.mxu0 0
          %1556 = vmatpush1.bf16.msra.mxu0 %v1480
          %1557 = vmatprep.subr.bf16.mxu0 0
          %1558 = vmatpush1.bf16.msra.mxu0 %v1481
          %1559 = vmatprep.subr.bf16.mxu0 0
          %1560 = vmatpush1.bf16.msra.mxu0 %v1482
          %1561 = vmatprep.subr.bf16.mxu0 0
          %1562 = vmatpush1.bf16.msra.mxu0 %v1483
          %1563 = vmatprep.subr.bf16.mxu0 0
          %1564 = vmatpush1.bf16.msra.mxu0 %v1484
          %1565 = vmatprep.subr.bf16.mxu0 0
          %1566 = vmatpush1.bf16.msra.mxu0 %v1485
          %1567 = vmatprep.subr.bf16.mxu0 0
          %1568 = vmatpush1.bf16.msra.mxu0 0
          %1569 = vmatprep.subr.bf16.mxu0 0
          %1570 = vmatpush1.bf16.msra.mxu0 0
          %1571 = vmatprep.subr.bf16.mxu0 0
          %1572 = vmatpush1.bf16.msra.mxu0 0
          %1573 = vmatprep.subr.bf16.mxu0 0
          %1574 = vmatpush1.bf16.msra.mxu0 0
          %1575 = vmatprep.subr.bf16.mxu0 0
          %1576 = vmatpush1.bf16.msra.mxu0 0
          %1577 = vmatprep.subr.bf16.mxu0 0
          %1578 = vmatpush1.bf16.msra.mxu0 0
          %1579 = vmatprep.subr.bf16.mxu0 0
          %1580 = vmatpush1.bf16.msra.mxu0 0
          %1581 = vmatprep.subr.bf16.mxu0 0
          %1582 = vmatpush1.bf16.msra.mxu0 0
          %1583 = vmatprep.mubr.bf16.mxu0 0
          %1584 = vmatmul.mubr.bf16.gmra.mrb[0].mxu0 %v1361
          %v1585 = vpop.f32.mrb[0].mxu0
          %v1586 = vadd.f32 %v1545, %v1585
          %v1587 = vpop.f32.mrb[0].mxu0
          %v1588 = vpop.f32.mrb[0].mxu0
          %v1589 = vadd.f32 %v1548, %v1588
          %v1590 = vpop.f32.mrb[0].mxu0
          %1591 = vdwg.mxu0
          %v1592 = vtanh.pop %v1586
          %v1593 = vtanh.pop %v1589
          %v1594 = vadd.f32 %v966, %v1592
          %v1595 = vadd.f32 %v967, %v1593
          %v1596 = vadd.f32 %v968, %v1592
          %v1597 = vadd.f32 %v969, %v1593
          %s1598 = sadd.s32 %s312, 4
          %v1599 = vpack.c.bf16 %v1597, %v1596
          %1600 = vst [vmem:[#allocation2 + $0x8] sm:$0xff] %v1599
          %1601 = vst [vmem:[#allocation2] sm:$0x3] 0
          %v1603 = vrot.slane %v1599, 6
          %1605 = vst [vmem:[#allocation2] sm:$0xfc] %v1603
          %v1606 = vrot.slane %v1599, 2
          %1608 = vst [vmem:[#allocation2 + $0x10] sm:$0x3f] %v1606
          %1609 = vst [vmem:[#allocation2 + $0x10] sm:$0xc0] 0
          %s1610 = smul.u32 %s1598, 48
          %s1611 = smul.addr %s1610, 4
          %s1612 = scalar_lea.vmem [#allocation6], %s1611
          %v1613 = vld [vmem:[%s1612] sm:$0xf]
          %v1614 = vld [vmem:[%s1612 + $0x4] sm:$0xf]
          %v1615 = vld [vmem:[%s1612 + $0x8] sm:$0xf]
          %v1616 = vld [vmem:[%s1612 + $0xc] sm:$0xf]
          %v1617 = vld [vmem:[%s1612 + $0x10] sm:$0xf]
          %v1618 = vld [vmem:[%s1612 + $0x14] sm:$0xf]
          %v1619 = vld [vmem:[%s1612 + $0x18] sm:$0xf]
          %v1620 = vld [vmem:[%s1612 + $0x1c] sm:$0xf]
          %v1621 = vld [vmem:[%s1612 + $0x20] sm:$0xf]
          %v1622 = vld [vmem:[%s1612 + $0x24] sm:$0xf]
          %v1623 = vld [vmem:[%s1612 + $0x28] sm:$0xf]
          %v1624 = vld [vmem:[%s1612 + $0x2c] sm:$0xf]
          %v1625 = vld [vmem:[%s1612 + $0x30] sm:$0xf]
          %v1626 = vld [vmem:[%s1612 + $0x34] sm:$0xf]
          %v1627 = vld [vmem:[%s1612 + $0x38] sm:$0xf]
          %v1628 = vld [vmem:[%s1612 + $0x3c] sm:$0xf]
          %v1629 = vld [vmem:[%s1612 + $0x40] sm:$0xf]
          %v1630 = vld [vmem:[%s1612 + $0x44] sm:$0xf]
          %v1631 = vld [vmem:[%s1612 + $0x48] sm:$0xf]
          %v1632 = vld [vmem:[%s1612 + $0x4c] sm:$0xf]
          %v1633 = vld [vmem:[%s1612 + $0x50] sm:$0xf]
          %v1634 = vld [vmem:[%s1612 + $0x54] sm:$0xf]
          %v1635 = vld [vmem:[%s1612 + $0x58] sm:$0xf]
          %v1636 = vld [vmem:[%s1612 + $0x5c] sm:$0xf]
          %v1637 = vld [vmem:[%s1612 + $0x60] sm:$0xf]
          %v1638 = vld [vmem:[%s1612 + $0x64] sm:$0xf]
          %v1639 = vld [vmem:[%s1612 + $0x68] sm:$0xf]
          %v1640 = vld [vmem:[%s1612 + $0x6c] sm:$0xf]
          %v1641 = vld [vmem:[%s1612 + $0x70] sm:$0xf]
          %v1642 = vld [vmem:[%s1612 + $0x74] sm:$0xf]
          %v1643 = vld [vmem:[%s1612 + $0x78] sm:$0xf]
          %v1644 = vld [vmem:[%s1612 + $0x7c] sm:$0xf]
          %v1645 = vld [vmem:[%s1612 + $0x80] sm:$0xf]
          %v1646 = vld [vmem:[%s1612 + $0x84] sm:$0xf]
          %v1647 = vld [vmem:[%s1612 + $0x88] sm:$0xf]
          %v1648 = vld [vmem:[%s1612 + $0x8c] sm:$0xf]
          %v1649 = vld [vmem:[%s1612 + $0x90] sm:$0xf]
          %v1650 = vld [vmem:[%s1612 + $0x94] sm:$0xf]
          %v1651 = vld [vmem:[%s1612 + $0x98] sm:$0xf]
          %v1652 = vld [vmem:[%s1612 + $0x9c] sm:$0xf]
          %v1653 = vld [vmem:[%s1612 + $0xa0] sm:$0xf]
          %v1654 = vld [vmem:[%s1612 + $0xa4] sm:$0xf]
          %v1655 = vld [vmem:[%s1612 + $0xa8] sm:$0xf]
          %v1656 = vld [vmem:[%s1612 + $0xac] sm:$0xf]
          %v1657 = vld [vmem:[%s1612 + $0xb0] sm:$0xf]
          %v1658 = vld [vmem:[%s1612 + $0xb4] sm:$0xf]
          %v1659 = vld [vmem:[%s1612 + $0xb8] sm:$0xf]
          %v1660 = vld [vmem:[%s1612 + $0xbc] sm:$0xf]
          %s1661 = scalar_lea.vmem [#allocation8], %s1598
          %v1662 = vld [vmem:[%s1661] sm:$0x1]
          %v1663 = vld [vmem:[#allocation2] sm:$0xff]
          %v1664 = vld [vmem:[#allocation2 + $0x8] sm:$0xff]
          %v1665 = vld [vmem:[#allocation2 + $0x10] sm:$0xff]
          %v1666 = vlaneseq
          %v1667 = vshrl.u32 %v1666, 7
          %v1668 = vsub.s32 0, %v1667
          %v1669 = vrot.slane %v1662, %v1668
          %v1718 = vunpack.c.l.b16 %v1613
          %v1719 = vunpack.c.l.b16 %v1614
          %v1720 = vunpack.c.l.b16 %v1615
          %v1721 = vunpack.c.l.b16 %v1616
          %v1722 = vunpack.c.l.b16 %v1617
          %v1723 = vunpack.c.l.b16 %v1618
          %v1724 = vunpack.c.l.b16 %v1619
          %v1725 = vunpack.c.l.b16 %v1620
          %v1726 = vunpack.c.l.b16 %v1621
          %v1727 = vunpack.c.l.b16 %v1622
          %v1728 = vunpack.c.l.b16 %v1623
          %v1729 = vunpack.c.l.b16 %v1624
          %v1730 = vunpack.c.l.b16 %v1625
          %v1731 = vunpack.c.l.b16 %v1626
          %v1732 = vunpack.c.l.b16 %v1627
          %v1733 = vunpack.c.l.b16 %v1628
          %v1734 = vunpack.c.l.b16 %v1629
          %v1735 = vunpack.c.l.b16 %v1630
          %v1736 = vunpack.c.l.b16 %v1631
          %v1737 = vunpack.c.l.b16 %v1632
          %v1738 = vunpack.c.l.b16 %v1633
          %v1739 = vunpack.c.l.b16 %v1634
          %v1740 = vunpack.c.l.b16 %v1635
          %v1741 = vunpack.c.l.b16 %v1636
          %v1742 = vunpack.c.l.b16 %v1637
          %v1743 = vunpack.c.l.b16 %v1638
          %v1744 = vunpack.c.l.b16 %v1639
          %v1745 = vunpack.c.l.b16 %v1640
          %v1746 = vunpack.c.l.b16 %v1641
          %v1747 = vunpack.c.l.b16 %v1642
          %v1748 = vunpack.c.l.b16 %v1643
          %v1749 = vunpack.c.l.b16 %v1644
          %v1750 = vunpack.c.l.b16 %v1645
          %v1751 = vunpack.c.l.b16 %v1646
          %v1752 = vunpack.c.l.b16 %v1647
          %v1753 = vunpack.c.l.b16 %v1648
          %v1754 = vunpack.c.l.b16 %v1649
          %v1755 = vunpack.c.l.b16 %v1650
          %v1756 = vunpack.c.l.b16 %v1651
          %v1757 = vunpack.c.l.b16 %v1652
          %v1758 = vunpack.c.l.b16 %v1653
          %v1759 = vunpack.c.l.b16 %v1654
          %v1760 = vunpack.c.l.b16 %v1655
          %v1761 = vunpack.c.l.b16 %v1656
          %v1762 = vunpack.c.l.b16 %v1657
          %v1763 = vunpack.c.l.b16 %v1658
          %v1764 = vunpack.c.l.b16 %v1659
          %v1765 = vunpack.c.l.b16 %v1660
          %v1766 = vpack.c.b16 %v1719, %v1718
          %v1767 = vpack.c.b16 %v1721, %v1720
          %v1768 = vpack.c.b16 %v1723, %v1722
          %v1769 = vpack.c.b16 %v1725, %v1724
          %v1770 = vpack.c.b16 %v1727, %v1726
          %v1771 = vpack.c.b16 %v1729, %v1728
          %v1772 = vpack.c.b16 %v1731, %v1730
          %v1773 = vpack.c.b16 %v1733, %v1732
          %v1774 = vpack.c.b16 %v1735, %v1734
          %v1775 = vpack.c.b16 %v1737, %v1736
          %v1776 = vpack.c.b16 %v1739, %v1738
          %v1777 = vpack.c.b16 %v1741, %v1740
          %v1778 = vpack.c.b16 %v1743, %v1742
          %v1779 = vpack.c.b16 %v1745, %v1744
          %v1780 = vpack.c.b16 %v1747, %v1746
          %v1781 = vpack.c.b16 %v1749, %v1748
          %v1782 = vpack.c.b16 %v1751, %v1750
          %v1783 = vpack.c.b16 %v1753, %v1752
          %v1784 = vpack.c.b16 %v1755, %v1754
          %v1785 = vpack.c.b16 %v1757, %v1756
          %v1786 = vpack.c.b16 %v1759, %v1758
          %v1787 = vpack.c.b16 %v1761, %v1760
          %v1788 = vpack.c.b16 %v1763, %v1762
          %v1789 = vpack.c.b16 %v1765, %v1764
          %1814 = vmatprep.subr.bf16.mxu0 0
          %1815 = vmatpush1.bf16.msra.mxu0 %v1766
          %1816 = vmatprep.subr.bf16.mxu0 0
          %1817 = vmatpush1.bf16.msra.mxu0 %v1767
          %1818 = vmatprep.subr.bf16.mxu0 0
          %1819 = vmatpush1.bf16.msra.mxu0 %v1768
          %1820 = vmatprep.subr.bf16.mxu0 0
          %1821 = vmatpush1.bf16.msra.mxu0 %v1769
          %1822 = vmatprep.subr.bf16.mxu0 0
          %1823 = vmatpush1.bf16.msra.mxu0 %v1770
          %1824 = vmatprep.subr.bf16.mxu0 0
          %1825 = vmatpush1.bf16.msra.mxu0 %v1771
          %1826 = vmatprep.subr.bf16.mxu0 0
          %1827 = vmatpush1.bf16.msra.mxu0 %v1772
          %1828 = vmatprep.subr.bf16.mxu0 0
          %1829 = vmatpush1.bf16.msra.mxu0 %v1773
          %1830 = vmatprep.subr.bf16.mxu0 0
          %1831 = vmatpush1.bf16.msra.mxu0 %v1774
          %1832 = vmatprep.subr.bf16.mxu0 0
          %1833 = vmatpush1.bf16.msra.mxu0 %v1775
          %1834 = vmatprep.subr.bf16.mxu0 0
          %1835 = vmatpush1.bf16.msra.mxu0 %v1776
          %1836 = vmatprep.subr.bf16.mxu0 0
          %1837 = vmatpush1.bf16.msra.mxu0 %v1777
          %1838 = vmatprep.subr.bf16.mxu0 0
          %1839 = vmatpush1.bf16.msra.mxu0 %v1778
          %1840 = vmatprep.subr.bf16.mxu0 0
          %1841 = vmatpush1.bf16.msra.mxu0 %v1779
          %1842 = vmatprep.subr.bf16.mxu0 0
          %1843 = vmatpush1.bf16.msra.mxu0 %v1780
          %1844 = vmatprep.subr.bf16.mxu0 0
          %1845 = vmatpush1.bf16.msra.mxu0 %v1781
          %1846 = vmatprep.mubr.bf16.mxu0 %v1664
          %1847 = vmatmul.mubr.bf16.gmra.mrb[0].mxu0 %v1663
          %v1848 = vpop.f32.mrb[0].mxu0
          %v1849 = vadd.f32 %v1669, %v1848
          %v1850 = vpop.f32.mrb[0].mxu0
          %v1851 = vpop.f32.mrb[0].mxu0
          %v1852 = vadd.f32 %v1669, %v1851
          %v1853 = vpop.f32.mrb[0].mxu0
          %1854 = vdwg.mxu0
          %1855 = vmatprep.subr.bf16.mxu0 0
          %1856 = vmatpush1.bf16.msra.mxu0 %v1782
          %1857 = vmatprep.subr.bf16.mxu0 0
          %1858 = vmatpush1.bf16.msra.mxu0 %v1783
          %1859 = vmatprep.subr.bf16.mxu0 0
          %1860 = vmatpush1.bf16.msra.mxu0 %v1784
          %1861 = vmatprep.subr.bf16.mxu0 0
          %1862 = vmatpush1.bf16.msra.mxu0 %v1785
          %1863 = vmatprep.subr.bf16.mxu0 0
          %1864 = vmatpush1.bf16.msra.mxu0 %v1786
          %1865 = vmatprep.subr.bf16.mxu0 0
          %1866 = vmatpush1.bf16.msra.mxu0 %v1787
          %1867 = vmatprep.subr.bf16.mxu0 0
          %1868 = vmatpush1.bf16.msra.mxu0 %v1788
          %1869 = vmatprep.subr.bf16.mxu0 0
          %1870 = vmatpush1.bf16.msra.mxu0 %v1789
          %1871 = vmatprep.subr.bf16.mxu0 0
          %1872 = vmatpush1.bf16.msra.mxu0 0
          %1873 = vmatprep.subr.bf16.mxu0 0
          %1874 = vmatpush1.bf16.msra.mxu0 0
          %1875 = vmatprep.subr.bf16.mxu0 0
          %1876 = vmatpush1.bf16.msra.mxu0 0
          %1877 = vmatprep.subr.bf16.mxu0 0
          %1878 = vmatpush1.bf16.msra.mxu0 0
          %1879 = vmatprep.subr.bf16.mxu0 0
          %1880 = vmatpush1.bf16.msra.mxu0 0
          %1881 = vmatprep.subr.bf16.mxu0 0
          %1882 = vmatpush1.bf16.msra.mxu0 0
          %1883 = vmatprep.subr.bf16.mxu0 0
          %1884 = vmatpush1.bf16.msra.mxu0 0
          %1885 = vmatprep.subr.bf16.mxu0 0
          %1886 = vmatpush1.bf16.msra.mxu0 0
          %1887 = vmatprep.mubr.bf16.mxu0 0
          %1888 = vmatmul.mubr.bf16.gmra.mrb[0].mxu0 %v1665
          %v1889 = vpop.f32.mrb[0].mxu0
          %v1890 = vadd.f32 %v1849, %v1889
          %v1891 = vpop.f32.mrb[0].mxu0
          %v1892 = vpop.f32.mrb[0].mxu0
          %v1893 = vadd.f32 %v1852, %v1892
          %v1894 = vpop.f32.mrb[0].mxu0
          %1895 = vdwg.mxu0
          %v1896 = vtanh.pop %v1890
          %v1897 = vtanh.pop %v1893
          %v1898 = vmul.f32 %v1890, 0.5
          %v1899 = vmul.f32 %v1893, 0.5
          %v1900 = vtanh.pop %v1898
          %v1901 = vtanh.pop %v1899
          %v1902 = vmul.f32 %v1900, 0.5
          %v1903 = vmul.f32 %v1901, 0.5
          %v1904 = vadd.f32 %v1902, 0.5
          %v1905 = vadd.f32 %v1903, 0.5
          %v1906 = vmul.f32 %v1896, %v1904
          %v1907 = vmul.f32 %v1897, %v1905
          %s1908 = sadd.s32 %s312, 5
          %v1909 = vpack.c.bf16 %v1907, %v1906
          %1910 = vst [vmem:[#allocation2 + $0x8] sm:$0xff] %v1909
          %v1911 = vld [vmem:[#allocation2] sm:$0x1]
          %v1912 = vsel %vm322, 0, %v1911
          %1913 = vst [vmem:[#allocation2] sm:$0x1] %v1912
          %v1915 = vshrl.u32 %v1909, 16
          %v1917 = vrot.slane %v1915, 7
          %v1918 = vshll.u32 %v1909, 16
          %v1920 = vor.u32 %v1917, %v1918
          %v1922 = vld [vmem:[#allocation2] sm:$0xff]
          %v1923 = vsel %vm336, %v1920, %v1922
          %1924 = vst [vmem:[#allocation2] sm:$0xff] %v1923
          %v1925 = vrot.slane %v1918, 1
          %v1926 = vor.u32 %v1915, %v1925
          %v1928 = vld [vmem:[#allocation2 + $0x10] sm:$0xff]
          %v1929 = vsel %vm344, %v1926, %v1928
          %1930 = vst [vmem:[#allocation2 + $0x10] sm:$0xff] %v1929
          %v1931 = vld [vmem:[#allocation2 + $0x10] sm:$0x80]
          %v1932 = vsel %vm350, 0, %v1931
          %1933 = vst [vmem:[#allocation2 + $0x10] sm:$0x80] %v1932
          %s1934 = smul.u32 %s1908, 48
          %s1935 = smul.addr %s1934, 4
          %s1936 = scalar_lea.vmem [#allocation6], %s1935
          %v1937 = vld [vmem:[%s1936] sm:$0xf]
          %v1938 = vld [vmem:[%s1936 + $0x4] sm:$0xf]
          %v1939 = vld [vmem:[%s1936 + $0x8] sm:$0xf]
          %v1940 = vld [vmem:[%s1936 + $0xc] sm:$0xf]
          %v1941 = vld [vmem:[%s1936 + $0x10] sm:$0xf]
          %v1942 = vld [vmem:[%s1936 + $0x14] sm:$0xf]
          %v1943 = vld [vmem:[%s1936 + $0x18] sm:$0xf]
          %v1944 = vld [vmem:[%s1936 + $0x1c] sm:$0xf]
          %v1945 = vld [vmem:[%s1936 + $0x20] sm:$0xf]
          %v1946 = vld [vmem:[%s1936 + $0x24] sm:$0xf]
          %v1947 = vld [vmem:[%s1936 + $0x28] sm:$0xf]
          %v1948 = vld [vmem:[%s1936 + $0x2c] sm:$0xf]
          %v1949 = vld [vmem:[%s1936 + $0x30] sm:$0xf]
          %v1950 = vld [vmem:[%s1936 + $0x34] sm:$0xf]
          %v1951 = vld [vmem:[%s1936 + $0x38] sm:$0xf]
          %v1952 = vld [vmem:[%s1936 + $0x3c] sm:$0xf]
          %v1953 = vld [vmem:[%s1936 + $0x40] sm:$0xf]
          %v1954 = vld [vmem:[%s1936 + $0x44] sm:$0xf]
          %v1955 = vld [vmem:[%s1936 + $0x48] sm:$0xf]
          %v1956 = vld [vmem:[%s1936 + $0x4c] sm:$0xf]
          %v1957 = vld [vmem:[%s1936 + $0x50] sm:$0xf]
          %v1958 = vld [vmem:[%s1936 + $0x54] sm:$0xf]
          %v1959 = vld [vmem:[%s1936 + $0x58] sm:$0xf]
          %v1960 = vld [vmem:[%s1936 + $0x5c] sm:$0xf]
          %v1961 = vld [vmem:[%s1936 + $0x60] sm:$0xf]
          %v1962 = vld [vmem:[%s1936 + $0x64] sm:$0xf]
          %v1963 = vld [vmem:[%s1936 + $0x68] sm:$0xf]
          %v1964 = vld [vmem:[%s1936 + $0x6c] sm:$0xf]
          %v1965 = vld [vmem:[%s1936 + $0x70] sm:$0xf]
          %v1966 = vld [vmem:[%s1936 + $0x74] sm:$0xf]
          %v1967 = vld [vmem:[%s1936 + $0x78] sm:$0xf]
          %v1968 = vld [vmem:[%s1936 + $0x7c] sm:$0xf]
          %v1969 = vld [vmem:[%s1936 + $0x80] sm:$0xf]
          %v1970 = vld [vmem:[%s1936 + $0x84] sm:$0xf]
          %v1971 = vld [vmem:[%s1936 + $0x88] sm:$0xf]
          %v1972 = vld [vmem:[%s1936 + $0x8c] sm:$0xf]
          %v1973 = vld [vmem:[%s1936 + $0x90] sm:$0xf]
          %v1974 = vld [vmem:[%s1936 + $0x94] sm:$0xf]
          %v1975 = vld [vmem:[%s1936 + $0x98] sm:$0xf]
          %v1976 = vld [vmem:[%s1936 + $0x9c] sm:$0xf]
          %v1977 = vld [vmem:[%s1936 + $0xa0] sm:$0xf]
          %v1978 = vld [vmem:[%s1936 + $0xa4] sm:$0xf]
          %v1979 = vld [vmem:[%s1936 + $0xa8] sm:$0xf]
          %v1980 = vld [vmem:[%s1936 + $0xac] sm:$0xf]
          %v1981 = vld [vmem:[%s1936 + $0xb0] sm:$0xf]
          %v1982 = vld [vmem:[%s1936 + $0xb4] sm:$0xf]
          %v1983 = vld [vmem:[%s1936 + $0xb8] sm:$0xf]
          %v1984 = vld [vmem:[%s1936 + $0xbc] sm:$0xf]
          %s1985 = scalar_lea.vmem [#allocation8], %s1908
          %v1986 = vld [vmem:[%s1985] sm:$0x1]
          %v1987 = vld [vmem:[#allocation2] sm:$0xff]
          %v1988 = vld [vmem:[#allocation2 + $0x8] sm:$0xff]
          %v1989 = vld [vmem:[#allocation2 + $0x10] sm:$0xff]
          %v1990 = vlaneseq
          %v1991 = vshrl.u32 %v1990, 7
          %v1992 = vsub.s32 0, %v1991
          %v1993 = vrot.slane %v1986, %v1992
          %v2042 = vunpack.c.l.b16 %v1937
          %v2043 = vunpack.c.l.b16 %v1938
          %v2044 = vunpack.c.l.b16 %v1939
          %v2045 = vunpack.c.l.b16 %v1940
          %v2046 = vunpack.c.l.b16 %v1941
          %v2047 = vunpack.c.l.b16 %v1942
          %v2048 = vunpack.c.l.b16 %v1943
          %v2049 = vunpack.c.l.b16 %v1944
          %v2050 = vunpack.c.l.b16 %v1945
          %v2051 = vunpack.c.l.b16 %v1946
          %v2052 = vunpack.c.l.b16 %v1947
          %v2053 = vunpack.c.l.b16 %v1948
          %v2054 = vunpack.c.l.b16 %v1949
          %v2055 = vunpack.c.l.b16 %v1950
          %v2056 = vunpack.c.l.b16 %v1951
          %v2057 = vunpack.c.l.b16 %v1952
          %v2058 = vunpack.c.l.b16 %v1953
          %v2059 = vunpack.c.l.b16 %v1954
          %v2060 = vunpack.c.l.b16 %v1955
          %v2061 = vunpack.c.l.b16 %v1956
          %v2062 = vunpack.c.l.b16 %v1957
          %v2063 = vunpack.c.l.b16 %v1958
          %v2064 = vunpack.c.l.b16 %v1959
          %v2065 = vunpack.c.l.b16 %v1960
          %v2066 = vunpack.c.l.b16 %v1961
          %v2067 = vunpack.c.l.b16 %v1962
          %v2068 = vunpack.c.l.b16 %v1963
          %v2069 = vunpack.c.l.b16 %v1964
          %v2070 = vunpack.c.l.b16 %v1965
          %v2071 = vunpack.c.l.b16 %v1966
          %v2072 = vunpack.c.l.b16 %v1967
          %v2073 = vunpack.c.l.b16 %v1968
          %v2074 = vunpack.c.l.b16 %v1969
          %v2075 = vunpack.c.l.b16 %v1970
          %v2076 = vunpack.c.l.b16 %v1971
          %v2077 = vunpack.c.l.b16 %v1972
          %v2078 = vunpack.c.l.b16 %v1973
          %v2079 = vunpack.c.l.b16 %v1974
          %v2080 = vunpack.c.l.b16 %v1975
          %v2081 = vunpack.c.l.b16 %v1976
          %v2082 = vunpack.c.l.b16 %v1977
          %v2083 = vunpack.c.l.b16 %v1978
          %v2084 = vunpack.c.l.b16 %v1979
          %v2085 = vunpack.c.l.b16 %v1980
          %v2086 = vunpack.c.l.b16 %v1981
          %v2087 = vunpack.c.l.b16 %v1982
          %v2088 = vunpack.c.l.b16 %v1983
          %v2089 = vunpack.c.l.b16 %v1984
          %v2090 = vpack.c.b16 %v2043, %v2042
          %v2091 = vpack.c.b16 %v2045, %v2044
          %v2092 = vpack.c.b16 %v2047, %v2046
          %v2093 = vpack.c.b16 %v2049, %v2048
          %v2094 = vpack.c.b16 %v2051, %v2050
          %v2095 = vpack.c.b16 %v2053, %v2052
          %v2096 = vpack.c.b16 %v2055, %v2054
          %v2097 = vpack.c.b16 %v2057, %v2056
          %v2098 = vpack.c.b16 %v2059, %v2058
          %v2099 = vpack.c.b16 %v2061, %v2060
          %v2100 = vpack.c.b16 %v2063, %v2062
          %v2101 = vpack.c.b16 %v2065, %v2064
          %v2102 = vpack.c.b16 %v2067, %v2066
          %v2103 = vpack.c.b16 %v2069, %v2068
          %v2104 = vpack.c.b16 %v2071, %v2070
          %v2105 = vpack.c.b16 %v2073, %v2072
          %v2106 = vpack.c.b16 %v2075, %v2074
          %v2107 = vpack.c.b16 %v2077, %v2076
          %v2108 = vpack.c.b16 %v2079, %v2078
          %v2109 = vpack.c.b16 %v2081, %v2080
          %v2110 = vpack.c.b16 %v2083, %v2082
          %v2111 = vpack.c.b16 %v2085, %v2084
          %v2112 = vpack.c.b16 %v2087, %v2086
          %v2113 = vpack.c.b16 %v2089, %v2088
          %2138 = vmatprep.subr.bf16.mxu0 0
          %2139 = vmatpush1.bf16.msra.mxu0 %v2090
          %2140 = vmatprep.subr.bf16.mxu0 0
          %2141 = vmatpush1.bf16.msra.mxu0 %v2091
          %2142 = vmatprep.subr.bf16.mxu0 0
          %2143 = vmatpush1.bf16.msra.mxu0 %v2092
          %2144 = vmatprep.subr.bf16.mxu0 0
          %2145 = vmatpush1.bf16.msra.mxu0 %v2093
          %2146 = vmatprep.subr.bf16.mxu0 0
          %2147 = vmatpush1.bf16.msra.mxu0 %v2094
          %2148 = vmatprep.subr.bf16.mxu0 0
          %2149 = vmatpush1.bf16.msra.mxu0 %v2095
          %2150 = vmatprep.subr.bf16.mxu0 0
          %2151 = vmatpush1.bf16.msra.mxu0 %v2096
          %2152 = vmatprep.subr.bf16.mxu0 0
          %2153 = vmatpush1.bf16.msra.mxu0 %v2097
          %2154 = vmatprep.subr.bf16.mxu0 0
          %2155 = vmatpush1.bf16.msra.mxu0 %v2098
          %2156 = vmatprep.subr.bf16.mxu0 0
          %2157 = vmatpush1.bf16.msra.mxu0 %v2099
          %2158 = vmatprep.subr.bf16.mxu0 0
          %2159 = vmatpush1.bf16.msra.mxu0 %v2100
          %2160 = vmatprep.subr.bf16.mxu0 0
          %2161 = vmatpush1.bf16.msra.mxu0 %v2101
          %2162 = vmatprep.subr.bf16.mxu0 0
          %2163 = vmatpush1.bf16.msra.mxu0 %v2102
          %2164 = vmatprep.subr.bf16.mxu0 0
          %2165 = vmatpush1.bf16.msra.mxu0 %v2103
          %2166 = vmatprep.subr.bf16.mxu0 0
          %2167 = vmatpush1.bf16.msra.mxu0 %v2104
          %2168 = vmatprep.subr.bf16.mxu0 0
          %2169 = vmatpush1.bf16.msra.mxu0 %v2105
          %2170 = vmatprep.mubr.bf16.mxu0 %v1988
          %2171 = vmatmul.mubr.bf16.gmra.mrb[0].mxu0 %v1987
          %v2172 = vpop.f32.mrb[0].mxu0
          %v2173 = vadd.f32 %v1993, %v2172
          %v2174 = vpop.f32.mrb[0].mxu0
          %v2175 = vpop.f32.mrb[0].mxu0
          %v2176 = vadd.f32 %v1993, %v2175
          %v2177 = vpop.f32.mrb[0].mxu0
          %2178 = vdwg.mxu0
          %2179 = vmatprep.subr.bf16.mxu0 0
          %2180 = vmatpush1.bf16.msra.mxu0 %v2106
          %2181 = vmatprep.subr.bf16.mxu0 0
          %2182 = vmatpush1.bf16.msra.mxu0 %v2107
          %2183 = vmatprep.subr.bf16.mxu0 0
          %2184 = vmatpush1.bf16.msra.mxu0 %v2108
          %2185 = vmatprep.subr.bf16.mxu0 0
          %2186 = vmatpush1.bf16.msra.mxu0 %v2109
          %2187 = vmatprep.subr.bf16.mxu0 0
          %2188 = vmatpush1.bf16.msra.mxu0 %v2110
          %2189 = vmatprep.subr.bf16.mxu0 0
          %2190 = vmatpush1.bf16.msra.mxu0 %v2111
          %2191 = vmatprep.subr.bf16.mxu0 0
          %2192 = vmatpush1.bf16.msra.mxu0 %v2112
          %2193 = vmatprep.subr.bf16.mxu0 0
          %2194 = vmatpush1.bf16.msra.mxu0 %v2113
          %2195 = vmatprep.subr.bf16.mxu0 0
          %2196 = vmatpush1.bf16.msra.mxu0 0
          %2197 = vmatprep.subr.bf16.mxu0 0
          %2198 = vmatpush1.bf16.msra.mxu0 0
          %2199 = vmatprep.subr.bf16.mxu0 0
          %2200 = vmatpush1.bf16.msra.mxu0 0
          %2201 = vmatprep.subr.bf16.mxu0 0
          %2202 = vmatpush1.bf16.msra.mxu0 0
          %2203 = vmatprep.subr.bf16.mxu0 0
          %2204 = vmatpush1.bf16.msra.mxu0 0
          %2205 = vmatprep.subr.bf16.mxu0 0
          %2206 = vmatpush1.bf16.msra.mxu0 0
          %2207 = vmatprep.subr.bf16.mxu0 0
          %2208 = vmatpush1.bf16.msra.mxu0 0
          %2209 = vmatprep.subr.bf16.mxu0 0
          %2210 = vmatpush1.bf16.msra.mxu0 0
          %2211 = vmatprep.mubr.bf16.mxu0 0
          %2212 = vmatmul.mubr.bf16.gmra.mrb[0].mxu0 %v1989
          %v2213 = vpop.f32.mrb[0].mxu0
          %v2214 = vadd.f32 %v2173, %v2213
          %v2215 = vpop.f32.mrb[0].mxu0
          %v2216 = vpop.f32.mrb[0].mxu0
          %v2217 = vadd.f32 %v2176, %v2216
          %v2218 = vpop.f32.mrb[0].mxu0
          %2219 = vdwg.mxu0
          %v2220 = vtanh.pop %v2214
          %v2221 = vtanh.pop %v2217
          %v2222 = vadd.f32 %v1594, %v2220
          %v2223 = vadd.f32 %v1595, %v2221
          %v2224 = vadd.f32 %v310, %v2222
          %v2225 = vadd.f32 %v311, %v2223
        $region65: #{tpu_custom_call.1} parent=39 // loop_footer
          %s309 = sadd.s32 1, %s305
        $region66: #{tpu_custom_call.1} parent=39 // loop_footer_branch
          %304 = sbr.rel target = $region62
        $region67: #{tpu_custom_call.1} parent=39 // loop_exit
          _
        %v2226 = vpack.c.bf16 %v311, %v310
        %2227 = vst [vmem:[#allocation2 + $0x8] sm:$0xff] %v2226
        %vm2228 = vcmask 1040384
        %vm2229 = vsmask.f32 256
        %vm2230 = vmand %vm2228, %vm2229
        %v2231 = vld [vmem:[#allocation2] sm:$0x1]
        %v2232 = vsel %vm2230, 0, %v2231
        %2233 = vst [vmem:[#allocation2] sm:$0x1] %v2232
        %v2235 = vshrl.u32 %v2226, 16
        %v2237 = vrot.slane %v2235, 7
        %v2238 = vshll.u32 %v2226, 16
        %v2240 = vor.u32 %v2237, %v2238
        %vm2242 = vcmask 1047552
        %vm2243 = vsmask.f32 7938
        %vm2244 = vmand %vm2242, %vm2243
        %v2245 = vld [vmem:[#allocation2] sm:$0xff]
        %v2246 = vsel %vm2244, %v2240, %v2245
        %2247 = vst [vmem:[#allocation2] sm:$0xff] %v2246
        %v2248 = vrot.slane %v2238, 1
        %v2249 = vor.u32 %v2235, %v2248
        %vm2251 = vsmask.f32 7424
        %vm2252 = vmand %vm2242, %vm2251
        %v2253 = vld [vmem:[#allocation2 + $0x10] sm:$0xff]
        %v2254 = vsel %vm2252, %v2249, %v2253
        %2255 = vst [vmem:[#allocation2 + $0x10] sm:$0xff] %v2254
        %vm2256 = vcmask 1047559
        %vm2257 = vsmask.f32 7966
        %vm2258 = vmand %vm2256, %vm2257
        %v2259 = vld [vmem:[#allocation2 + $0x10] sm:$0x80]
        %v2260 = vsel %vm2258, 0, %v2259
        %2261 = vst [vmem:[#allocation2 + $0x10] sm:$0x80] %v2260
        %s2262 = scalar_lea.vmem [#allocation6], 2304
        %v2263 = vld [vmem:[%s2262] sm:$0xf]
        %v2264 = vld [vmem:[%s2262 + $0x4] sm:$0xf]
        %v2265 = vld [vmem:[%s2262 + $0x8] sm:$0xf]
        %v2266 = vld [vmem:[%s2262 + $0xc] sm:$0xf]
        %v2267 = vld [vmem:[%s2262 + $0x10] sm:$0xf]
        %v2268 = vld [vmem:[%s2262 + $0x14] sm:$0xf]
        %v2269 = vld [vmem:[%s2262 + $0x18] sm:$0xf]
        %v2270 = vld [vmem:[%s2262 + $0x1c] sm:$0xf]
        %v2271 = vld [vmem:[%s2262 + $0x20] sm:$0xf]
        %v2272 = vld [vmem:[%s2262 + $0x24] sm:$0xf]
        %v2273 = vld [vmem:[%s2262 + $0x28] sm:$0xf]
        %v2274 = vld [vmem:[%s2262 + $0x2c] sm:$0xf]
        %v2275 = vld [vmem:[%s2262 + $0x30] sm:$0xf]
        %v2276 = vld [vmem:[%s2262 + $0x34] sm:$0xf]
        %v2277 = vld [vmem:[%s2262 + $0x38] sm:$0xf]
        %v2278 = vld [vmem:[%s2262 + $0x3c] sm:$0xf]
        %v2279 = vld [vmem:[%s2262 + $0x40] sm:$0xf]
        %v2280 = vld [vmem:[%s2262 + $0x44] sm:$0xf]
        %v2281 = vld [vmem:[%s2262 + $0x48] sm:$0xf]
        %v2282 = vld [vmem:[%s2262 + $0x4c] sm:$0xf]
        %v2283 = vld [vmem:[%s2262 + $0x50] sm:$0xf]
        %v2284 = vld [vmem:[%s2262 + $0x54] sm:$0xf]
        %v2285 = vld [vmem:[%s2262 + $0x58] sm:$0xf]
        %v2286 = vld [vmem:[%s2262 + $0x5c] sm:$0xf]
        %v2287 = vld [vmem:[%s2262 + $0x60] sm:$0xf]
        %v2288 = vld [vmem:[%s2262 + $0x64] sm:$0xf]
        %v2289 = vld [vmem:[%s2262 + $0x68] sm:$0xf]
        %v2290 = vld [vmem:[%s2262 + $0x6c] sm:$0xf]
        %v2291 = vld [vmem:[%s2262 + $0x70] sm:$0xf]
        %v2292 = vld [vmem:[%s2262 + $0x74] sm:$0xf]
        %v2293 = vld [vmem:[%s2262 + $0x78] sm:$0xf]
        %v2294 = vld [vmem:[%s2262 + $0x7c] sm:$0xf]
        %v2295 = vld [vmem:[%s2262 + $0x80] sm:$0xf]
        %v2296 = vld [vmem:[%s2262 + $0x84] sm:$0xf]
        %v2297 = vld [vmem:[%s2262 + $0x88] sm:$0xf]
        %v2298 = vld [vmem:[%s2262 + $0x8c] sm:$0xf]
        %v2299 = vld [vmem:[%s2262 + $0x90] sm:$0xf]
        %v2300 = vld [vmem:[%s2262 + $0x94] sm:$0xf]
        %v2301 = vld [vmem:[%s2262 + $0x98] sm:$0xf]
        %v2302 = vld [vmem:[%s2262 + $0x9c] sm:$0xf]
        %v2303 = vld [vmem:[%s2262 + $0xa0] sm:$0xf]
        %v2304 = vld [vmem:[%s2262 + $0xa4] sm:$0xf]
        %v2305 = vld [vmem:[%s2262 + $0xa8] sm:$0xf]
        %v2306 = vld [vmem:[%s2262 + $0xac] sm:$0xf]
        %v2307 = vld [vmem:[%s2262 + $0xb0] sm:$0xf]
        %v2308 = vld [vmem:[%s2262 + $0xb4] sm:$0xf]
        %v2309 = vld [vmem:[%s2262 + $0xb8] sm:$0xf]
        %v2310 = vld [vmem:[%s2262 + $0xbc] sm:$0xf]
        %v2311 = vld [vmem:[#allocation8 + $0xc] sm:$0x1]
        %v2312 = vld [vmem:[#allocation2] sm:$0xff]
        %v2313 = vld [vmem:[#allocation2 + $0x8] sm:$0xff]
        %v2314 = vld [vmem:[#allocation2 + $0x10] sm:$0xff]
        %v2315 = vlaneseq
        %v2316 = vshrl.u32 %v2315, 7
        %v2317 = vsub.s32 0, %v2316
        %v2318 = vrot.slane %v2311, %v2317
        %v2367 = vunpack.c.l.b16 %v2263
        %v2368 = vunpack.c.l.b16 %v2264
        %v2369 = vunpack.c.l.b16 %v2265
        %v2370 = vunpack.c.l.b16 %v2266
        %v2371 = vunpack.c.l.b16 %v2267
        %v2372 = vunpack.c.l.b16 %v2268
        %v2373 = vunpack.c.l.b16 %v2269
        %v2374 = vunpack.c.l.b16 %v2270
        %v2375 = vunpack.c.l.b16 %v2271
        %v2376 = vunpack.c.l.b16 %v2272
        %v2377 = vunpack.c.l.b16 %v2273
        %v2378 = vunpack.c.l.b16 %v2274
        %v2379 = vunpack.c.l.b16 %v2275
        %v2380 = vunpack.c.l.b16 %v2276
        %v2381 = vunpack.c.l.b16 %v2277
        %v2382 = vunpack.c.l.b16 %v2278
        %v2383 = vunpack.c.l.b16 %v2279
        %v2384 = vunpack.c.l.b16 %v2280
        %v2385 = vunpack.c.l.b16 %v2281
        %v2386 = vunpack.c.l.b16 %v2282
        %v2387 = vunpack.c.l.b16 %v2283
        %v2388 = vunpack.c.l.b16 %v2284
        %v2389 = vunpack.c.l.b16 %v2285
        %v2390 = vunpack.c.l.b16 %v2286
        %v2391 = vunpack.c.l.b16 %v2287
        %v2392 = vunpack.c.l.b16 %v2288
        %v2393 = vunpack.c.l.b16 %v2289
        %v2394 = vunpack.c.l.b16 %v2290
        %v2395 = vunpack.c.l.b16 %v2291
        %v2396 = vunpack.c.l.b16 %v2292
        %v2397 = vunpack.c.l.b16 %v2293
        %v2398 = vunpack.c.l.b16 %v2294
        %v2399 = vunpack.c.l.b16 %v2295
        %v2400 = vunpack.c.l.b16 %v2296
        %v2401 = vunpack.c.l.b16 %v2297
        %v2402 = vunpack.c.l.b16 %v2298
        %v2403 = vunpack.c.l.b16 %v2299
        %v2404 = vunpack.c.l.b16 %v2300
        %v2405 = vunpack.c.l.b16 %v2301
        %v2406 = vunpack.c.l.b16 %v2302
        %v2407 = vunpack.c.l.b16 %v2303
        %v2408 = vunpack.c.l.b16 %v2304
        %v2409 = vunpack.c.l.b16 %v2305
        %v2410 = vunpack.c.l.b16 %v2306
        %v2411 = vunpack.c.l.b16 %v2307
        %v2412 = vunpack.c.l.b16 %v2308
        %v2413 = vunpack.c.l.b16 %v2309
        %v2414 = vunpack.c.l.b16 %v2310
        %v2415 = vpack.c.b16 %v2368, %v2367
        %v2416 = vpack.c.b16 %v2370, %v2369
        %v2417 = vpack.c.b16 %v2372, %v2371
        %v2418 = vpack.c.b16 %v2374, %v2373
        %v2419 = vpack.c.b16 %v2376, %v2375
        %v2420 = vpack.c.b16 %v2378, %v2377
        %v2421 = vpack.c.b16 %v2380, %v2379
        %v2422 = vpack.c.b16 %v2382, %v2381
        %v2423 = vpack.c.b16 %v2384, %v2383
        %v2424 = vpack.c.b16 %v2386, %v2385
        %v2425 = vpack.c.b16 %v2388, %v2387
        %v2426 = vpack.c.b16 %v2390, %v2389
        %v2427 = vpack.c.b16 %v2392, %v2391
        %v2428 = vpack.c.b16 %v2394, %v2393
        %v2429 = vpack.c.b16 %v2396, %v2395
        %v2430 = vpack.c.b16 %v2398, %v2397
        %v2431 = vpack.c.b16 %v2400, %v2399
        %v2432 = vpack.c.b16 %v2402, %v2401
        %v2433 = vpack.c.b16 %v2404, %v2403
        %v2434 = vpack.c.b16 %v2406, %v2405
        %v2435 = vpack.c.b16 %v2408, %v2407
        %v2436 = vpack.c.b16 %v2410, %v2409
        %v2437 = vpack.c.b16 %v2412, %v2411
        %v2438 = vpack.c.b16 %v2414, %v2413
        %2463 = vmatprep.subr.bf16.mxu0 0
        %2464 = vmatpush1.bf16.msra.mxu0 %v2415
        %2465 = vmatprep.subr.bf16.mxu0 0
        %2466 = vmatpush1.bf16.msra.mxu0 %v2416
        %2467 = vmatprep.subr.bf16.mxu0 0
        %2468 = vmatpush1.bf16.msra.mxu0 %v2417
        %2469 = vmatprep.subr.bf16.mxu0 0
        %2470 = vmatpush1.bf16.msra.mxu0 %v2418
        %2471 = vmatprep.subr.bf16.mxu0 0
        %2472 = vmatpush1.bf16.msra.mxu0 %v2419
        %2473 = vmatprep.subr.bf16.mxu0 0
        %2474 = vmatpush1.bf16.msra.mxu0 %v2420
        %2475 = vmatprep.subr.bf16.mxu0 0
        %2476 = vmatpush1.bf16.msra.mxu0 %v2421
        %2477 = vmatprep.subr.bf16.mxu0 0
        %2478 = vmatpush1.bf16.msra.mxu0 %v2422
        %2479 = vmatprep.subr.bf16.mxu0 0
        %2480 = vmatpush1.bf16.msra.mxu0 %v2423
        %2481 = vmatprep.subr.bf16.mxu0 0
        %2482 = vmatpush1.bf16.msra.mxu0 %v2424
        %2483 = vmatprep.subr.bf16.mxu0 0
        %2484 = vmatpush1.bf16.msra.mxu0 %v2425
        %2485 = vmatprep.subr.bf16.mxu0 0
        %2486 = vmatpush1.bf16.msra.mxu0 %v2426
        %2487 = vmatprep.subr.bf16.mxu0 0
        %2488 = vmatpush1.bf16.msra.mxu0 %v2427
        %2489 = vmatprep.subr.bf16.mxu0 0
        %2490 = vmatpush1.bf16.msra.mxu0 %v2428
        %2491 = vmatprep.subr.bf16.mxu0 0
        %2492 = vmatpush1.bf16.msra.mxu0 %v2429
        %2493 = vmatprep.subr.bf16.mxu0 0
        %2494 = vmatpush1.bf16.msra.mxu0 %v2430
        %2495 = vmatprep.mubr.bf16.mxu0 %v2313
        %2496 = vmatmul.mubr.bf16.gmra.mrb[0].mxu0 %v2312
        %v2497 = vpop.f32.mrb[0].mxu0
        %v2498 = vadd.f32 %v2318, %v2497
        %v2499 = vpop.f32.mrb[0].mxu0
        %v2500 = vpop.f32.mrb[0].mxu0
        %v2501 = vadd.f32 %v2318, %v2500
        %v2502 = vpop.f32.mrb[0].mxu0
        %2503 = vdwg.mxu0
        %2504 = vmatprep.subr.bf16.mxu0 0
        %2505 = vmatpush1.bf16.msra.mxu0 %v2431
        %2506 = vmatprep.subr.bf16.mxu0 0
        %2507 = vmatpush1.bf16.msra.mxu0 %v2432
        %2508 = vmatprep.subr.bf16.mxu0 0
        %2509 = vmatpush1.bf16.msra.mxu0 %v2433
        %2510 = vmatprep.subr.bf16.mxu0 0
        %2511 = vmatpush1.bf16.msra.mxu0 %v2434
        %2512 = vmatprep.subr.bf16.mxu0 0
        %2513 = vmatpush1.bf16.msra.mxu0 %v2435
        %2514 = vmatprep.subr.bf16.mxu0 0
        %2515 = vmatpush1.bf16.msra.mxu0 %v2436
        %2516 = vmatprep.subr.bf16.mxu0 0
        %2517 = vmatpush1.bf16.msra.mxu0 %v2437
        %2518 = vmatprep.subr.bf16.mxu0 0
        %2519 = vmatpush1.bf16.msra.mxu0 %v2438
        %2520 = vmatprep.subr.bf16.mxu0 0
        %2521 = vmatpush1.bf16.msra.mxu0 0
        %2522 = vmatprep.subr.bf16.mxu0 0
        %2523 = vmatpush1.bf16.msra.mxu0 0
        %2524 = vmatprep.subr.bf16.mxu0 0
        %2525 = vmatpush1.bf16.msra.mxu0 0
        %2526 = vmatprep.subr.bf16.mxu0 0
        %2527 = vmatpush1.bf16.msra.mxu0 0
        %2528 = vmatprep.subr.bf16.mxu0 0
        %2529 = vmatpush1.bf16.msra.mxu0 0
        %2530 = vmatprep.subr.bf16.mxu0 0
        %2531 = vmatpush1.bf16.msra.mxu0 0
        %2532 = vmatprep.subr.bf16.mxu0 0
        %2533 = vmatpush1.bf16.msra.mxu0 0
        %2534 = vmatprep.subr.bf16.mxu0 0
        %2535 = vmatpush1.bf16.msra.mxu0 0
        %2536 = vmatprep.mubr.bf16.mxu0 0
        %2537 = vmatmul.mubr.bf16.gmra.mrb[0].mxu0 %v2314
        %v2538 = vpop.f32.mrb[0].mxu0
        %v2539 = vadd.f32 %v2498, %v2538
        %v2540 = vpop.f32.mrb[0].mxu0
        %v2541 = vpop.f32.mrb[0].mxu0
        %v2542 = vadd.f32 %v2501, %v2541
        %v2543 = vpop.f32.mrb[0].mxu0
        %2544 = vdwg.mxu0
        %v2545 = vtanh.pop %v2539
        %v2546 = vtanh.pop %v2542
        %v2547 = vpack.c.bf16 %v2546, %v2545
        %v2548 = vld [vmem:[#allocation9] sm:$0xf]
        %v2549 = vld [vmem:[#allocation9 + $0x4] sm:$0xf]
        %v2550 = vld [vmem:[#allocation9 + $0x8] sm:$0xf]
        %v2551 = vld [vmem:[#allocation9 + $0xc] sm:$0xf]
        %v2552 = vld [vmem:[#allocation9 + $0x10] sm:$0xf]
        %v2553 = vld [vmem:[#allocation9 + $0x14] sm:$0xf]
        %v2554 = vld [vmem:[#allocation9 + $0x18] sm:$0xf]
        %v2555 = vld [vmem:[#allocation9 + $0x1c] sm:$0xf]
        %v2556 = vld [vmem:[#allocation9 + $0x20] sm:$0xf]
        %v2557 = vld [vmem:[#allocation9 + $0x24] sm:$0xf]
        %v2558 = vld [vmem:[#allocation9 + $0x28] sm:$0xf]
        %v2559 = vld [vmem:[#allocation9 + $0x2c] sm:$0xf]
        %v2560 = vld [vmem:[#allocation9 + $0x30] sm:$0xf]
        %v2561 = vld [vmem:[#allocation9 + $0x34] sm:$0xf]
        %v2562 = vld [vmem:[#allocation9 + $0x38] sm:$0xf]
        %v2563 = vld [vmem:[#allocation9 + $0x3c] sm:$0xf]
        %v2564 = vld [vmem:[#allocation11] sm:$0x1]
        %v2566 = vlaneseq
        %v2567 = vshrl.u32 %v2566, 7
        %v2568 = vsub.s32 0, %v2567
        %v2569 = vrot.slane %v2564, %v2568
        %v2587 = vunpack.c.l.b16 %v2548
        %v2588 = vunpack.c.l.b16 %v2549
        %v2589 = vunpack.c.l.b16 %v2550
        %v2590 = vunpack.c.l.b16 %v2551
        %v2591 = vunpack.c.l.b16 %v2552
        %v2592 = vunpack.c.l.b16 %v2553
        %v2593 = vunpack.c.l.b16 %v2554
        %v2594 = vunpack.c.l.b16 %v2555
        %v2595 = vunpack.c.l.b16 %v2556
        %v2596 = vunpack.c.l.b16 %v2557
        %v2597 = vunpack.c.l.b16 %v2558
        %v2598 = vunpack.c.l.b16 %v2559
        %v2599 = vunpack.c.l.b16 %v2560
        %v2600 = vunpack.c.l.b16 %v2561
        %v2601 = vunpack.c.l.b16 %v2562
        %v2602 = vunpack.c.l.b16 %v2563
        %v2603 = vpack.c.b16 %v2588, %v2587
        %v2604 = vpack.c.b16 %v2590, %v2589
        %v2605 = vpack.c.b16 %v2592, %v2591
        %v2606 = vpack.c.b16 %v2594, %v2593
        %v2607 = vpack.c.b16 %v2596, %v2595
        %v2608 = vpack.c.b16 %v2598, %v2597
        %v2609 = vpack.c.b16 %v2600, %v2599
        %v2610 = vpack.c.b16 %v2602, %v2601
        %2619 = vmatprep.subr.bf16.mxu0 0
        %2620 = vmatpush1.bf16.msra.mxu0 %v2603
        %2621 = vmatprep.subr.bf16.mxu0 0
        %2622 = vmatpush1.bf16.msra.mxu0 %v2604
        %2623 = vmatprep.subr.bf16.mxu0 0
        %2624 = vmatpush1.bf16.msra.mxu0 %v2605
        %2625 = vmatprep.subr.bf16.mxu0 0
        %2626 = vmatpush1.bf16.msra.mxu0 %v2606
        %2627 = vmatprep.subr.bf16.mxu0 0
        %2628 = vmatpush1.bf16.msra.mxu0 %v2607
        %2629 = vmatprep.subr.bf16.mxu0 0
        %2630 = vmatpush1.bf16.msra.mxu0 %v2608
        %2631 = vmatprep.subr.bf16.mxu0 0
        %2632 = vmatpush1.bf16.msra.mxu0 %v2609
        %2633 = vmatprep.subr.bf16.mxu0 0
        %2634 = vmatpush1.bf16.msra.mxu0 %v2610
        %2635 = vmatprep.subr.bf16.mxu0 0
        %2636 = vmatpush1.bf16.msra.mxu0 0
        %2637 = vmatprep.subr.bf16.mxu0 0
        %2638 = vmatpush1.bf16.msra.mxu0 0
        %2639 = vmatprep.subr.bf16.mxu0 0
        %2640 = vmatpush1.bf16.msra.mxu0 0
        %2641 = vmatprep.subr.bf16.mxu0 0
        %2642 = vmatpush1.bf16.msra.mxu0 0
        %2643 = vmatprep.subr.bf16.mxu0 0
        %2644 = vmatpush1.bf16.msra.mxu0 0
        %2645 = vmatprep.subr.bf16.mxu0 0
        %2646 = vmatpush1.bf16.msra.mxu0 0
        %2647 = vmatprep.subr.bf16.mxu0 0
        %2648 = vmatpush1.bf16.msra.mxu0 0
        %2649 = vmatprep.subr.bf16.mxu0 0
        %2650 = vmatpush1.bf16.msra.mxu0 0
        %2651 = vmatprep.mubr.bf16.mxu0 0
        %2652 = vmatmul.mubr.bf16.gmra.mrb[0].mxu0 %v2547
        %v2653 = vpop.f32.mrb[0].mxu0
        %v2654 = vadd.f32 %v2569, %v2653
        %v2655 = vpop.f32.mrb[0].mxu0
        %v2656 = vpop.f32.mrb[0].mxu0
        %v2657 = vadd.f32 %v2569, %v2656
        %v2658 = vpop.f32.mrb[0].mxu0
        %2659 = vdwg.mxu0
        %2660 = vst [vmem:[%s298] sm:$0xff] %v2654
        %2661 = vst [vmem:[%s298 + $0x8] sm:$0xff] %v2657
        %s2662 = sand.u32 %s142, 1
        %s2663 = scalar_lea.sflag [#allocation5], %s2662
        %s2664 = sand.u32 %s142, 1
        %s2665 = smul.addr %s2664, 16
        %s2666 = scalar_lea.vmem [#allocation12], %s2665
        // Predicated region
        $region68: #{tpu_custom_call.1} parent=39 // pred_check
          %p2667 = pneg %p152
        $region69: #{tpu_custom_call.1} parent=39 // pred_check_branch
          %2669 = sbr.rel (%p2667) target = $region71
        $region70: #{tpu_custom_call.1} parent=39 // pred_region
          %s2671 = ssub.s32 256, 256
          %2672 = vsyncadd %s2663, %s2671
          %s2673 = smul.addr %s24, 2
          %s2674 = smul.addr %s2673, 128
          %s2675 = scalar_lea.hbm %s5, %s2674
          %s2676 = sshll.u32 %s2666, 4
          %s2677 = int_to_ptr.vmem [resolvable:$true] %s2676
          %2682 = dma.vmem_to_hbm [thread:$0]  %s2677, 256, %s2675, %s2663, 128, 128, 8
        $region71: #{tpu_custom_call.1} parent=39 // pred_fallthru
          _
      $region40: #{tpu_custom_call.1} parent=5 // pred_fallthru
        _
      %p2683 = scmp.le.s32.totalorder 2, %s19
      // Predicated region
      $region72: #{tpu_custom_call.1} parent=5 // pred_check
        %p2684 = pneg %p2683
      $region73: #{tpu_custom_call.1} parent=5 // pred_check_branch
        %2686 = sbr.rel (%p2684) target = $region75
      $region74: #{tpu_custom_call.1} parent=5 // pred_region
        %s2687 = ssub.s32 %s19, 2
        // Predicated region
        $region76: #{tpu_custom_call.1} parent=74 // pred_check
          %p2688 = pneg %p158
        $region77: #{tpu_custom_call.1} parent=74 // pred_check_branch
          %2690 = sbr.rel (%p2688) target = $region79
        $region78: #{tpu_custom_call.1} parent=74 // pred_region
          %s2691 = sand.u32 %s143, 1
          %s2692 = scalar_lea.sflag [#allocation5], %s2691
          %s2693 = sand.u32 %s143, 1
          %s2694 = smul.addr %s2693, 16
          %s2695 = scalar_lea.vmem [#allocation12], %s2694
          %2696 = dma.done %s2692, 256
        $region79: #{tpu_custom_call.1} parent=74 // pred_fallthru
          _
      $region75: #{tpu_custom_call.1} parent=5 // pred_fallthru
        _
    $region6: #{tpu_custom_call.1} parent=1 // loop_footer
      %s23 = sadd.s32 1, %s19
    $region7: #{tpu_custom_call.1} parent=1 // loop_footer_branch
      %18 = sbr.rel target = $region3
    $region8: #{tpu_custom_call.1} parent=1 // loop_exit
      _
    %2697 = vsyncpa [#allocation4], 1
    %s2698 = scalar_lea.sflag [#allocation4], 1
    %2699 = vsyncpa %s2698, 1
    %2700 = vsyncpa [#allocation7], 1
    %2701 = vsyncpa [#allocation10], 1
    %2702 = vsyncpa [#allocation5], 1
    %s2703 = scalar_lea.sflag [#allocation5], 1
    %2704 = vsyncpa %s2703, 1

</llo_original>
